<compile_context>
chip_gen: v7x
topology: tpu7x:2x2x1
jax: 0.10.0
libtpu: 0.0.40
codegen_flags: <defaults>
</compile_context>

<pallas_src>
import functools

import numpy as np
import jax
import jax.numpy as jnp
from jax.experimental import pallas as pl
from jax.experimental.pallas import tpu as pltpu

_SHELL_SIGMA = 0.75  # width of the Gaussian spherical shell of the synthetic TKE spectrum


def _round_up(x, m):
    return ((x + m - 1) // m) * m


# ----------------------------------------------------------------------------
# Pallas kernel: in-kernel shell-matrix generation + stacked spectrum
# projection.  Grid: (split, reduction-step) over the M (contraction) axis.
# ----------------------------------------------------------------------------
def _tke_proj_kernel(e_ref, kmag_ref, k_ref, out_ref, *, slab, num_slabs, bf16_exp):
    i = pl.program_id(1)

    @pl.when(i == 0)
    def _init():
        out_ref[...] = jnp.zeros_like(out_ref)

    n_pad = k_ref.shape[-1]
    # Hoisted broadcast of the (pre-scaled) Gauss-Legendre node row.
    k_row = jnp.broadcast_to(k_ref[...], (slab, n_pad))        # (slab, n_pad)

    acc = None
    for s in range(num_slabs):                                  # static unroll
        km = kmag_ref[s * slab:(s + 1) * slab, :]               # (slab, 1) pre-scaled |kappa|
        d = km - k_row                                          # (slab, n_pad)
        nd2 = -(d * d)
        if bf16_exp:
            # bf16 EUP path (v6e / v7x): ~2x exp throughput, bf16 W staging.
            w = jnp.exp(nd2.astype(jnp.bfloat16))
        else:
            # v5e and older: no bf16 EUP -> f32 exp, but still stage W as bf16.
            w = jnp.exp(nd2).astype(jnp.bfloat16)
        part = jnp.dot(e_ref[:, s * slab:(s + 1) * slab], w,    # (2T, slab) @ (slab, n_pad)
                       preferred_element_type=jnp.float32)
        acc = part if acc is None else acc + part
    out_ref[...] += acc


def _pallas_tke_projection(e_stacked_bf16, kmag_scaled, k_row_scaled, *, block_k=8192):
    """Returns per-split partial projections of shape (n_splits, 2T, n_pad), f32."""
    two_t, m_sz = e_stacked_bf16.shape
    n_pad = int(k_row_scaled.shape[-1])

    # --- tile the contraction (M) axis (lane-dense, multiple of 128)
    tk = min(_round_up(block_k, 128), _round_up(m_sz, 128))
    m_pad = _round_up(m_sz, tk)
    if m_pad != m_sz:
        e_stacked_bf16 = jnp.pad(e_stacked_bf16, ((0, 0), (0, m_pad - m_sz)))  # zero energy
        kmag_scaled = np.pad(kmag_scaled, (0, m_pad - m_sz))                   # W finite, * 0
    grid_k = m_pad // tk

    # Two-way reduction split for v7x's second TensorCore (outer loop on 1-TC chips).
    n_splits = 2 if (grid_k >= 2 and grid_k % 2 == 0) else 1
    steps = grid_k // n_splits

    # K-slab chunking inside the body (caps the W VMEM temporary).
    slab = 512 if tk % 512 == 0 else tk
    num_slabs = tk // slab

    # bf16 exp only where the EUP has a bf16 path.
    kind = jax.devices()[0].device_kind.lower()
    bf16_exp = not any(v in kind for v in ("v2", "v3", "v4", "v5"))

    kernel = functools.partial(_tke_proj_kernel, slab=slab, num_slabs=num_slabs,
                               bf16_exp=bf16_exp)

    partials = pl.pallas_call(
        kernel,
        out_shape=jax.ShapeDtypeStruct((n_splits, two_t, n_pad), jnp.float32),
        grid_spec=pltpu.PrefetchScalarGridSpec(
            num_scalar_prefetch=0,
            grid=(n_splits, steps),
            in_specs=[
                # stacked spectral energies (bf16), tile along M
                pl.BlockSpec((two_t, tk), lambda c, i: (0, c * steps + i)),
                # |kappa| column, tile along M.
                # TODO(synk): (tk,1) lane-pads to tk/8 vregs (~4 MiB @ tk=8192) in VMEM;
                # could be regenerated in-kernel from broadcasted_iota + the fftfreq
                # structure to free that padding entirely.
                pl.BlockSpec((tk, 1), lambda c, i: (c * steps + i, 0)),
                # pre-scaled GL node row, resident
                pl.BlockSpec((1, n_pad), lambda c, i: (0, 0)),
            ],
            # Output block resident across the reduction axis -> in-place f32 accumulator.
            out_specs=pl.BlockSpec((None, two_t, n_pad), lambda c, i: (c, 0, 0)),
        ),
        # TODO(synk): for repeated evaluation on a fixed (X,Y,Z,n) grid on v7x
        # (3.2 TB/s HBM), a cached bf16 W streamed via BlockSpec beats in-kernel
        # regeneration; the regen path is kept since it wins on v5e/v6e.
        compiler_params=pltpu.CompilerParams(
            dimension_semantics=("parallel", "arbitrary"),
            vmem_limit_bytes=32 * 1024 * 1024,
        ),
    )(
        e_stacked_bf16,
        jnp.asarray(kmag_scaled, dtype=jnp.float32).reshape(m_pad, 1),
        jnp.asarray(k_row_scaled, dtype=jnp.float32).reshape(1, n_pad),
    )
    return partials


# ----------------------------------------------------------------------------
# Synthetic `tke_spectrum` submodule (the PyTorch module receives it injected):
# 3-D FFT -> per-mode kinetic energy; the Gaussian spherical-shell projection
# onto E(k) is done inside the Pallas kernel.
# ----------------------------------------------------------------------------
def _mode_energy_and_kmag(u):
    """u: (T, 3, X, Y, Z) real fluctuation field -> ((T, M) energy, (M,) |kappa|)."""
    t, _, x, y, z = u.shape
    # TODO(synk): 3-D FFT has no Pallas primitive; kept in plain JAX (glue).
    u_hat = jnp.fft.fftn(u, axes=(-3, -2, -1)) / (x * y * z)
    e = 0.5 * jnp.sum(jnp.abs(u_hat) ** 2, axis=1)                 # (T, X, Y, Z)
    e = e.reshape(t, x * y * z).astype(jnp.float32)
    kx = np.fft.fftfreq(x) * x
    ky = np.fft.fftfreq(y) * y
    kz = np.fft.fftfreq(z) * z
    kxg, kyg, kzg = np.meshgrid(kx, ky, kz, indexing="ij")
    kmag = np.sqrt(kxg ** 2 + kyg ** 2 + kzg ** 2).reshape(-1).astype(np.float32)
    return e, kmag


def _shell_matrix(kmag, k):
    """Reference-only host shell matrix W[m, j] = N(|kappa_m|; k_j, sigma)."""
    d = kmag[:, None] - k[None, :]
    w = np.exp(-0.5 * (d / _SHELL_SIGMA) ** 2) / (_SHELL_SIGMA * np.sqrt(2.0 * np.pi))
    return w.astype(np.float32)


# ----------------------------------------------------------------------------
# Forward pass (mirrors LogTKESpectrumL2Distance.forward)
# ----------------------------------------------------------------------------
def log_tke_spectrum_l2_distance(u_a, u_b, u_mean=None, n=64, block_k=8192):
    u_a = jnp.transpose(u_a[0, :3], (1, 0, 2, 3, 4))   # (T, 3, X, Y, Z)
    u_b = jnp.transpose(u_b[0, :3], (1, 0, 2, 3, 4))
    if u_mean is None:
        u_mean = jnp.mean(u_b, axis=0)                 # (3, X, Y, Z)
    assert u_a.shape[-4] == 3
    assert u_b.shape[-4] == 3
    assert u_mean.shape[-4] == 3
    assert u_a.shape[-3:] == u_b.shape[-3:]
    assert u_a.shape[-3:] == u_mean.shape[-3:]
    assert u_a.shape[0] == u_b.shape[0]

    k_min = 1.0
    k_max = float((min(u_a.shape[-3:]) - 1) // 2)
    slope = (k_max - k_min) / 2.0
    # deterministic Gauss-Legendre nodes/weights (replaces scipy.roots_legendre)
    nodes, weights = np.polynomial.legendre.leggauss(n)
    k = (slope * nodes + ((k_max - k_min) / 2.0 + k_min)).astype(np.float32)   # (n,)
    gl_w = weights.astype(np.float32)

    e_a, kmag = _mode_energy_and_kmag(u_a - u_mean)    # (T, M), (M,)
    e_b, _ = _mode_energy_and_kmag(u_b - u_mean)       # (T, M)
    t = e_a.shape[0]
    # One MXU LHS: stacked energies in bf16 (DEFAULT MXU precision truncates
    # f32 to bf16 anyway; halves the e HBM stream).
    e_stacked = jnp.concatenate([e_a, e_b], axis=0).astype(jnp.bfloat16)

    # Host-side prescale (tiny numpy arrays): kernel computes exp(-(km'-k')^2)
    # with no per-element constant multiplies; shell_norm folded into the log.
    inv_sig_sqrt2 = 1.0 / (_SHELL_SIGMA * np.sqrt(2.0))
    n_pad = _round_up(n, 128)
    # pad GL nodes with a duplicate of the last node (finite W; columns sliced off)
    k_pad = np.concatenate([k, np.full((n_pad - n,), k[-1], dtype=np.float32)])
    k_pad = (k_pad * inv_sig_sqrt2).astype(np.float32)
    kmag_scaled = (kmag * inv_sig_sqrt2).astype(np.float32)

    partials = _pallas_tke_projection(e_stacked, kmag_scaled, k_pad, block_k=block_k)

    # Tiny epilogue in plain JAX (one (2T, n) slab): sum per-core partials,
    # add log(shell_norm), GL quadrature + sqrt + diagonal mean.
    proj = jnp.sum(partials, axis=0)[:, :n]                       # (2T, n) f32
    log_shell_norm = float(-np.log(_SHELL_SIGMA * np.sqrt(2.0 * np.pi)))
    log_e = jnp.log(jnp.maximum(proj, 1e-30)) + log_shell_norm    # clamp: -inf insurance
    log_a, log_b = log_e[:t], log_e[t:]
    diff = log_a - log_b
    d_rows = jnp.sqrt(slope * jnp.sum(diff * diff * jnp.asarray(gl_w)[None, :], axis=-1))
    return jnp.mean(d_rows), log_a, log_b, jnp.asarray(k)


# ----------------------------------------------------------------------------
# Pure-JAX reference (matches torch semantics: full pairwise D, then diagonal mean)
# ----------------------------------------------------------------------------
def _reference(u_a, u_b, n=64):
    ua = jnp.transpose(u_a[0, :3], (1, 0, 2, 3, 4))
    ub = jnp.transpose(u_b[0, :3], (1, 0, 2, 3, 4))
    um = jnp.mean(ub, axis=0)
    k_min = 1.0
    k_max = float((min(ua.shape[-3:]) - 1) // 2)
    slope = (k_max - k_min) / 2.0
    nodes, weights = np.polynomial.legendre.leggauss(n)
    k = (slope * nodes + ((k_max - k_min) / 2.0 + k_min)).astype(np.float32)
    e_a, kmag = _mode_energy_and_kmag(ua - um)
    e_b, _ = _mode_energy_and_kmag(ub - um)
    W = jnp.asarray(_shell_matrix(kmag, k))
    log_a = jnp.log(e_a @ W)
    log_b = jnp.log(e_b @ W)
    diff2 = (log_a[:, None, :] - log_b[None, :, :]) ** 2
    Dm = slope * jnp.einsum('ijk,k->ij', diff2, jnp.asarray(weights.astype(np.float32)))
    Dm = jnp.sqrt(Dm)
    return jnp.mean(jnp.diagonal(Dm)), log_a, log_b, jnp.asarray(k)


if __name__ == "__main__":
    key = jax.random.PRNGKey(0)
    ka, kb = jax.random.split(key)
    B, C, T, X, Y, Z = 1, 3, 4, 16, 16, 16
    u_a = jax.random.normal(ka, (B, C, T, X, Y, Z), dtype=jnp.float32)
    u_b = jax.random.normal(kb, (B, C, T, X, Y, Z), dtype=jnp.float32)

    D_ref, la_ref, lb_ref, k_ref = _reference(u_a, u_b)
    jax.block_until_ready((D_ref, la_ref, lb_ref))

    # block_k=8192 -> single-step grid; block_k=1024 -> split (2, 2) grid with
    # multi-step accumulation and the K-slab loop exercised.
    for bk in (8192, 1024):
        D, la, lb, k = log_tke_spectrum_l2_distance(u_a, u_b, block_k=bk)
        jax.block_until_ready((D, la, lb, k))
        np.testing.assert_allclose(np.asarray(la), np.asarray(la_ref), rtol=5e-3, atol=5e-3)
        np.testing.assert_allclose(np.asarray(lb), np.asarray(lb_ref), rtol=5e-3, atol=5e-3)
        np.testing.assert_allclose(np.asarray(D), np.asarray(D_ref), rtol=5e-3, atol=5e-3)
        np.testing.assert_allclose(np.asarray(k), np.asarray(k_ref), rtol=1e-6, atol=1e-6)

    print("KERNEL_OK")
</pallas_src>

<mosaic_0001>
module attributes {stable_mosaic.version = 11 : i64} {
  func.func @_tke_proj_kernel(%arg0: i32, %arg1: i32, %arg2: memref<8x4096xbf16, #tpu.memory_space<vmem>>, %arg3: memref<4096x1xf32, #tpu.memory_space<vmem>>, %arg4: memref<1x128xf32, #tpu.memory_space<vmem>>, %arg5: memref<1x8x128xf32, #tpu.memory_space<vmem>>) attributes {dimension_semantics = [#tpu.dimension_semantics<parallel>, #tpu.dimension_semantics<arbitrary>], iteration_bounds = array<i64: 1, 1>, scalar_prefetch = 0 : i64, scratch_operands = 0 : i64, tpu.core_type = #tpu.core_type<tc>, window_params = [{transform_indices = @transform_0, window_bounds = array<i64: 8, 4096>}, {transform_indices = @transform_1, window_bounds = array<i64: 4096, 1>}, {pipeline_mode = #tpu.pipeline_mode<synchronous>, transform_indices = @transform_2, window_bounds = array<i64: 1, 128>}, {transform_indices = @transform_3, window_bounds = array<i64: 1, 8, 128>}]} {
    %c0_i32 = arith.constant 0 : i32
    %0 = arith.cmpi eq, %arg1, %c0_i32 : i32
    %1 = arith.extui %0 : i1 to i32
    %c0_i32_0 = arith.constant 0 : i32
    %2 = arith.cmpi ne, %1, %c0_i32_0 : i32
    scf.if %2 {
      %cst_48 = arith.constant 0.000000e+00 : f32
      %99 = vector.broadcast %cst_48 : f32 to vector<8x128xf32>
      %c0_49 = arith.constant 0 : index
      %c0_50 = arith.constant 0 : index
      %c0_51 = arith.constant 0 : index
      %100 = vector.load %arg5[%c0_49, %c0_50, %c0_51] : memref<1x8x128xf32, #tpu.memory_space<vmem>>, vector<1x8x128xf32>
      %101 = vector.shape_cast %100 : vector<1x8x128xf32> to vector<8x128xf32>
      %102 = vector.shape_cast %99 : vector<8x128xf32> to vector<1x8x128xf32>
      tpu.vector_store %arg5[%c0_49, %c0_50, %c0_51], %102 {strides = array<i32>} : memref<1x8x128xf32, #tpu.memory_space<vmem>>, vector<1x8x128xf32>,
    } else {
    }
    %c0 = arith.constant 0 : index
    %c0_1 = arith.constant 0 : index
    %3 = vector.load %arg4[%c0, %c0_1] : memref<1x128xf32, #tpu.memory_space<vmem>>, vector<1x128xf32>
    %4 = vector.shape_cast %3 : vector<1x128xf32> to vector<1x128xf32>
    %5 = vector.broadcast %4 : vector<1x128xf32> to vector<512x128xf32>
    %c0_2 = arith.constant 0 : index
    %c0_3 = arith.constant 0 : index
    %6 = vector.load %arg3[%c0_2, %c0_3] : memref<4096x1xf32, #tpu.memory_space<vmem>>, vector<512x1xf32>
    %7 = vector.broadcast %6 : vector<512x1xf32> to vector<512x128xf32>
    %8 = arith.subf %7, %5 : vector<512x128xf32>
    %9 = arith.mulf %8, %8 : vector<512x128xf32>
    %cst = arith.constant 0.000000e+00 : f32
    %10 = vector.broadcast %cst : f32 to vector<512x128xf32>
    %11 = arith.subf %10, %9 : vector<512x128xf32>
    %12 = arith.truncf %11 : vector<512x128xf32> to vector<512x128xbf16>
    %13 = math.exp %12 : vector<512x128xbf16>
    %c0_4 = arith.constant 0 : index
    %c0_5 = arith.constant 0 : index
    %14 = vector.load %arg2[%c0_4, %c0_5] : memref<8x4096xbf16, #tpu.memory_space<vmem>>, vector<8x512xbf16>
    %cst_6 = arith.constant dense<0.000000e+00> : vector<8x128xf32>
    %15 = tpu.matmul %14, %13, %cst_6 {dimension_numbers = #tpu.dot_dimension_numbers<[1], [0], [0], [1], [0, 0, 1, 1], [], []>} : vector<8x512xbf16>, vector<512x128xbf16>, vector<8x128xf32> -> vector<8x128xf32>
    %c512 = arith.constant 512 : index
    %c0_7 = arith.constant 0 : index
    %16 = vector.load %arg3[%c512, %c0_7] : memref<4096x1xf32, #tpu.memory_space<vmem>>, vector<512x1xf32>
    %17 = vector.broadcast %16 : vector<512x1xf32> to vector<512x128xf32>
    %18 = arith.subf %17, %5 : vector<512x128xf32>
    %19 = arith.mulf %18, %18 : vector<512x128xf32>
    %cst_8 = arith.constant 0.000000e+00 : f32
    %20 = vector.broadcast %cst_8 : f32 to vector<512x128xf32>
    %21 = arith.subf %20, %19 : vector<512x128xf32>
    %22 = arith.truncf %21 : vector<512x128xf32> to vector<512x128xbf16>
    %23 = math.exp %22 : vector<512x128xbf16>
    %c0_9 = arith.constant 0 : index
    %c512_10 = arith.constant 512 : index
    %24 = vector.load %arg2[%c0_9, %c512_10] : memref<8x4096xbf16, #tpu.memory_space<vmem>>, vector<8x512xbf16>
    %cst_11 = arith.constant dense<0.000000e+00> : vector<8x128xf32>
    %25 = tpu.matmul %24, %23, %cst_11 {dimension_numbers = #tpu.dot_dimension_numbers<[1], [0], [0], [1], [0, 0, 1, 1], [], []>} : vector<8x512xbf16>, vector<512x128xbf16>, vector<8x128xf32> -> vector<8x128xf32>
    %26 = arith.addf %15, %25 : vector<8x128xf32>
    %c1024 = arith.constant 1024 : index
    %c0_12 = arith.constant 0 : index
    %27 = vector.load %arg3[%c1024, %c0_12] : memref<4096x1xf32, #tpu.memory_space<vmem>>, vector<512x1xf32>
    %28 = vector.broadcast %27 : vector<512x1xf32> to vector<512x128xf32>
    %29 = arith.subf %28, %5 : vector<512x128xf32>
    %30 = arith.mulf %29, %29 : vector<512x128xf32>
    %cst_13 = arith.constant 0.000000e+00 : f32
    %31 = vector.broadcast %cst_13 : f32 to vector<512x128xf32>
    %32 = arith.subf %31, %30 : vector<512x128xf32>
    %33 = arith.truncf %32 : vector<512x128xf32> to vector<512x128xbf16>
    %34 = math.exp %33 : vector<512x128xbf16>
    %c0_14 = arith.constant 0 : index
    %c1024_15 = arith.constant 1024 : index
    %35 = vector.load %arg2[%c0_14, %c1024_15] : memref<8x4096xbf16, #tpu.memory_space<vmem>>, vector<8x512xbf16>
    %cst_16 = arith.constant dense<0.000000e+00> : vector<8x128xf32>
    %36 = tpu.matmul %35, %34, %cst_16 {dimension_numbers = #tpu.dot_dimension_numbers<[1], [0], [0], [1], [0, 0, 1, 1], [], []>} : vector<8x512xbf16>, vector<512x128xbf16>, vector<8x128xf32> -> vector<8x128xf32>
    %37 = arith.addf %26, %36 : vector<8x128xf32>
    %c1536 = arith.constant 1536 : index
    %c0_17 = arith.constant 0 : index
    %38 = vector.load %arg3[%c1536, %c0_17] : memref<4096x1xf32, #tpu.memory_space<vmem>>, vector<512x1xf32>
    %39 = vector.broadcast %38 : vector<512x1xf32> to vector<512x128xf32>
    %40 = arith.subf %39, %5 : vector<512x128xf32>
    %41 = arith.mulf %40, %40 : vector<512x128xf32>
    %cst_18 = arith.constant 0.000000e+00 : f32
    %42 = vector.broadcast %cst_18 : f32 to vector<512x128xf32>
    %43 = arith.subf %42, %41 : vector<512x128xf32>
    %44 = arith.truncf %43 : vector<512x128xf32> to vector<512x128xbf16>
    %45 = math.exp %44 : vector<512x128xbf16>
    %c0_19 = arith.constant 0 : index
    %c1536_20 = arith.constant 1536 : index
    %46 = vector.load %arg2[%c0_19, %c1536_20] : memref<8x4096xbf16, #tpu.memory_space<vmem>>, vector<8x512xbf16>
    %cst_21 = arith.constant dense<0.000000e+00> : vector<8x128xf32>
    %47 = tpu.matmul %46, %45, %cst_21 {dimension_numbers = #tpu.dot_dimension_numbers<[1], [0], [0], [1], [0, 0, 1, 1], [], []>} : vector<8x512xbf16>, vector<512x128xbf16>, vector<8x128xf32> -> vector<8x128xf32>
    %48 = arith.addf %37, %47 : vector<8x128xf32>
    %c2048 = arith.constant 2048 : index
    %c0_22 = arith.constant 0 : index
    %49 = vector.load %arg3[%c2048, %c0_22] : memref<4096x1xf32, #tpu.memory_space<vmem>>, vector<512x1xf32>
    %50 = vector.broadcast %49 : vector<512x1xf32> to vector<512x128xf32>
    %51 = arith.subf %50, %5 : vector<512x128xf32>
    %52 = arith.mulf %51, %51 : vector<512x128xf32>
    %cst_23 = arith.constant 0.000000e+00 : f32
    %53 = vector.broadcast %cst_23 : f32 to vector<512x128xf32>
    %54 = arith.subf %53, %52 : vector<512x128xf32>
    %55 = arith.truncf %54 : vector<512x128xf32> to vector<512x128xbf16>
    %56 = math.exp %55 : vector<512x128xbf16>
    %c0_24 = arith.constant 0 : index
    %c2048_25 = arith.constant 2048 : index
    %57 = vector.load %arg2[%c0_24, %c2048_25] : memref<8x4096xbf16, #tpu.memory_space<vmem>>, vector<8x512xbf16>
    %cst_26 = arith.constant dense<0.000000e+00> : vector<8x128xf32>
    %58 = tpu.matmul %57, %56, %cst_26 {dimension_numbers = #tpu.dot_dimension_numbers<[1], [0], [0], [1], [0, 0, 1, 1], [], []>} : vector<8x512xbf16>, vector<512x128xbf16>, vector<8x128xf32> -> vector<8x128xf32>
    %59 = arith.addf %48, %58 : vector<8x128xf32>
    %c2560 = arith.constant 2560 : index
    %c0_27 = arith.constant 0 : index
    %60 = vector.load %arg3[%c2560, %c0_27] : memref<4096x1xf32, #tpu.memory_space<vmem>>, vector<512x1xf32>
    %61 = vector.broadcast %60 : vector<512x1xf32> to vector<512x128xf32>
    %62 = arith.subf %61, %5 : vector<512x128xf32>
    %63 = arith.mulf %62, %62 : vector<512x128xf32>
    %cst_28 = arith.constant 0.000000e+00 : f32
    %64 = vector.broadcast %cst_28 : f32 to vector<512x128xf32>
    %65 = arith.subf %64, %63 : vector<512x128xf32>
    %66 = arith.truncf %65 : vector<512x128xf32> to vector<512x128xbf16>
    %67 = math.exp %66 : vector<512x128xbf16>
    %c0_29 = arith.constant 0 : index
    %c2560_30 = arith.constant 2560 : index
    %68 = vector.load %arg2[%c0_29, %c2560_30] : memref<8x4096xbf16, #tpu.memory_space<vmem>>, vector<8x512xbf16>
    %cst_31 = arith.constant dense<0.000000e+00> : vector<8x128xf32>
    %69 = tpu.matmul %68, %67, %cst_31 {dimension_numbers = #tpu.dot_dimension_numbers<[1], [0], [0], [1], [0, 0, 1, 1], [], []>} : vector<8x512xbf16>, vector<512x128xbf16>, vector<8x128xf32> -> vector<8x128xf32>
    %70 = arith.addf %59, %69 : vector<8x128xf32>
    %c3072 = arith.constant 3072 : index
    %c0_32 = arith.constant 0 : index
    %71 = vector.load %arg3[%c3072, %c0_32] : memref<4096x1xf32, #tpu.memory_space<vmem>>, vector<512x1xf32>
    %72 = vector.broadcast %71 : vector<512x1xf32> to vector<512x128xf32>
    %73 = arith.subf %72, %5 : vector<512x128xf32>
    %74 = arith.mulf %73, %73 : vector<512x128xf32>
    %cst_33 = arith.constant 0.000000e+00 : f32
    %75 = vector.broadcast %cst_33 : f32 to vector<512x128xf32>
    %76 = arith.subf %75, %74 : vector<512x128xf32>
    %77 = arith.truncf %76 : vector<512x128xf32> to vector<512x128xbf16>
    %78 = math.exp %77 : vector<512x128xbf16>
    %c0_34 = arith.constant 0 : index
    %c3072_35 = arith.constant 3072 : index
    %79 = vector.load %arg2[%c0_34, %c3072_35] : memref<8x4096xbf16, #tpu.memory_space<vmem>>, vector<8x512xbf16>
    %cst_36 = arith.constant dense<0.000000e+00> : vector<8x128xf32>
    %80 = tpu.matmul %79, %78, %cst_36 {dimension_numbers = #tpu.dot_dimension_numbers<[1], [0], [0], [1], [0, 0, 1, 1], [], []>} : vector<8x512xbf16>, vector<512x128xbf16>, vector<8x128xf32> -> vector<8x128xf32>
    %81 = arith.addf %70, %80 : vector<8x128xf32>
    %c3584 = arith.constant 3584 : index
    %c0_37 = arith.constant 0 : index
    %82 = vector.load %arg3[%c3584, %c0_37] : memref<4096x1xf32, #tpu.memory_space<vmem>>, vector<512x1xf32>
    %83 = vector.broadcast %82 : vector<512x1xf32> to vector<512x128xf32>
    %84 = arith.subf %83, %5 : vector<512x128xf32>
    %85 = arith.mulf %84, %84 : vector<512x128xf32>
    %cst_38 = arith.constant 0.000000e+00 : f32
    %86 = vector.broadcast %cst_38 : f32 to vector<512x128xf32>
    %87 = arith.subf %86, %85 : vector<512x128xf32>
    %88 = arith.truncf %87 : vector<512x128xf32> to vector<512x128xbf16>
    %89 = math.exp %88 : vector<512x128xbf16>
    %c0_39 = arith.constant 0 : index
    %c3584_40 = arith.constant 3584 : index
    %90 = vector.load %arg2[%c0_39, %c3584_40] : memref<8x4096xbf16, #tpu.memory_space<vmem>>, vector<8x512xbf16>
    %cst_41 = arith.constant dense<0.000000e+00> : vector<8x128xf32>
    %91 = tpu.matmul %90, %89, %cst_41 {dimension_numbers = #tpu.dot_dimension_numbers<[1], [0], [0], [1], [0, 0, 1, 1], [], []>} : vector<8x512xbf16>, vector<512x128xbf16>, vector<8x128xf32> -> vector<8x128xf32>
    %92 = arith.addf %81, %91 : vector<8x128xf32>
    %c0_42 = arith.constant 0 : index
    %c0_43 = arith.constant 0 : index
    %c0_44 = arith.constant 0 : index
    %93 = vector.load %arg5[%c0_42, %c0_43, %c0_44] : memref<1x8x128xf32, #tpu.memory_space<vmem>>, vector<1x8x128xf32>
    %94 = vector.shape_cast %93 : vector<1x8x128xf32> to vector<8x128xf32>
    %95 = arith.addf %94, %92 : vector<8x128xf32>
    %c0_45 = arith.constant 0 : index
    %c0_46 = arith.constant 0 : index
    %c0_47 = arith.constant 0 : index
    %96 = vector.load %arg5[%c0_45, %c0_46, %c0_47] : memref<1x8x128xf32, #tpu.memory_space<vmem>>, vector<1x8x128xf32>
    %97 = vector.shape_cast %96 : vector<1x8x128xf32> to vector<8x128xf32>
    %98 = vector.shape_cast %95 : vector<8x128xf32> to vector<1x8x128xf32>
    tpu.vector_store %arg5[%c0_45, %c0_46, %c0_47], %98 {strides = array<i32>} : memref<1x8x128xf32, #tpu.memory_space<vmem>>, vector<1x8x128xf32>,
    return
  }
  func.func @transform_0(%arg0: i32, %arg1: i32) -> (i32, i32) {
    %c1_i32 = arith.constant 1 : i32
    %0 = arith.muli %arg0, %c1_i32 : i32
    %1 = arith.addi %0, %arg1 : i32
    %c0_i32 = arith.constant 0 : i32
    %c0_i32_0 = arith.constant 0 : i32
    return %c0_i32, %1 : i32, i32
  }
  func.func @transform_1(%arg0: i32, %arg1: i32) -> (i32, i32) {
    %c1_i32 = arith.constant 1 : i32
    %0 = arith.muli %arg0, %c1_i32 : i32
    %1 = arith.addi %0, %arg1 : i32
    %c0_i32 = arith.constant 0 : i32
    %c0_i32_0 = arith.constant 0 : i32
    return %1, %c0_i32 : i32, i32
  }
  func.func @transform_2(%arg0: i32, %arg1: i32) -> (i32, i32) {
    %c0_i32 = arith.constant 0 : i32
    %c0_i32_0 = arith.constant 0 : i32
    %c0_i32_1 = arith.constant 0 : i32
    return %c0_i32, %c0_i32_0 : i32, i32
  }
  func.func @transform_3(%arg0: i32, %arg1: i32) -> (i32, i32, i32) {
    %c0_i32 = arith.constant 0 : i32
    %c0_i32_0 = arith.constant 0 : i32
    %c0_i32_1 = arith.constant 0 : i32
    return %arg0, %c0_i32, %c0_i32_0 : i32, i32, i32
  }
}

</mosaic_0001>

<llo_original>
// kernel: tpu_custom_call.1
$region0: #{tpu_custom_call.1}
  #allocation0 [shape = 'u32[]', space=smem, size = 0x4, offset = 0x4, fixed_abs, tag = 'smem constant byte address 0x4 - core index']
  #allocation1 [shape = 'u32[144,128]{1,0:T(1,128)}', space=vmem, size = 0x12000, scoped, tag = 'internal scratch']
  %s0 = inlined_call_operand.vmem [shape: bf16[8,4096], index: 0, kind: input, shape index: {}]
  %s1 = inlined_call_operand.vmem [shape: f32[4096,1], index: 1, kind: input, shape index: {}]
  %s2 = inlined_call_operand.vmem [shape: f32[1,128], index: 2, kind: input, shape index: {}]
  %s3 = inlined_call_operand.hbm [shape: f32[1,8,128], index: 3, kind: output, shape index: {}]
  %s4 = sld [smem:[#allocation0]]
  $region26: #{tpu_custom_call.1} parent=0
    _
  %s6 = ssub.s32 1, %s4
  %s7 = scalar_select 0, %s6, %s4
  $region1: #{tpu_custom_call.1} parent=0
    #allocation2 [shape = 'u8[4096]{0}', space=vmem, size = 0x1000, scoped, tag = 'output window, operand 0, single buffered']
    #allocation3 [shape = 's32[1]{0}', space=sflag, size = 0x4, scoped, tag = 'scoped memory for tpu_custom_call.1']
    %8 = vsyncpa [#allocation3], 0
    // Predicated region
    $region2: #{tpu_custom_call.1} parent=1 // pred_check
      _
    $region3: #{tpu_custom_call.1} parent=1 // pred_check_branch
      %10 = sbr.rel (0) target = $region5
    $region4: #{tpu_custom_call.1} parent=1 // pred_region
      %s11 = sadd.s32 0, 0
      %s12 = smul.u32 32, %s11
      %p13 = scmp.lt.s32.totalorder %s12, 31
      %s14 = scalar_select %p13, %s12, 31
      %s15 = smul.addr %s14, 4
      %s16 = scalar_lea.vmem %s0, %s15
      %s17 = sadd.s32 0, 0
      %s18 = smul.u32 32, %s17
    $region5: #{tpu_custom_call.1} parent=1 // pred_fallthru
      _
    // Predicated region
    $region6: #{tpu_custom_call.1} parent=1 // pred_check
      _
    $region7: #{tpu_custom_call.1} parent=1 // pred_check_branch
      %20 = sbr.rel (0) target = $region9
    $region8: #{tpu_custom_call.1} parent=1 // pred_region
      %s21 = sadd.s32 0, 0
      %s22 = smul.u32 512, %s21
      %p23 = scmp.lt.s32.totalorder %s22, 511
      %s24 = scalar_select %p23, %s22, 511
      %s25 = smul.addr %s24, 8
      %s26 = scalar_lea.vmem %s1, %s25
      %s27 = sadd.s32 0, 0
      %s28 = smul.u32 512, %s27
    $region9: #{tpu_custom_call.1} parent=1 // pred_fallthru
      _
    // Predicated region
    $region10: #{tpu_custom_call.1} parent=1 // pred_check
      _
    $region11: #{tpu_custom_call.1} parent=1 // pred_check_branch
      %30 = sbr.rel (0) target = $region13
    $region12: #{tpu_custom_call.1} parent=1 // pred_region
      _
    $region13: #{tpu_custom_call.1} parent=1 // pred_fallthru
      _
    %s31 = sadd.s32 0, 0
    %s32 = smul.u32 32, %s31
    %p33 = scmp.lt.s32.totalorder %s32, 31
    %s34 = scalar_select %p33, %s32, 31
    %s35 = smul.addr %s34, 4
    %s36 = scalar_lea.vmem %s0, %s35
    %s37 = sadd.s32 0, 0
    %s38 = smul.u32 512, %s37
    %p39 = scmp.lt.s32.totalorder %s38, 511
    %s40 = scalar_select %p39, %s38, 511
    %s41 = smul.addr %s40, 8
    %s42 = scalar_lea.vmem %s1, %s41
    %s43 = sadd.s32 0, 0
    %s44 = smul.u32 32, %s43
    %p45 = scmp.lt.s32.totalorder %s44, 31
    %s46 = scalar_select %p45, %s44, 31
    %s47 = smul.addr %s46, 4
    %s48 = scalar_lea.vmem %s0, %s47
    %s49 = sadd.s32 0, 0
    %s50 = smul.u32 32, %s49
    %s51 = sadd.s32 0, 0
    %s52 = smul.u32 512, %s51
    %p53 = scmp.lt.s32.totalorder %s52, 511
    %s54 = scalar_select %p53, %s52, 511
    %s55 = smul.addr %s54, 8
    %s56 = scalar_lea.vmem %s1, %s55
    %s57 = sadd.s32 0, 0
    %s58 = smul.u32 512, %s57
    %p60 = scmp.eq.s32.totalorder 0, 0
    // Predicated region
    $region14: #{tpu_custom_call.1} parent=1 // pred_check
      %p61 = pneg %p60
    $region15: #{tpu_custom_call.1} parent=1 // pred_check_branch
      %63 = sbr.rel (%p61) target = $region17
    $region16: #{tpu_custom_call.1} parent=1 // pred_region
      %64 = vst [vmem:[#allocation2] sm:$0xff] 0.0
    $region17: #{tpu_custom_call.1} parent=1 // pred_fallthru
      _
    %v65 = vld [vmem:[%s2] sm:$0x1]
    %v67 = vlaneseq
    %v68 = vshrl.u32 %v67, 7
    %v69 = vsub.s32 0, %v68
    %v70 = vrot.slane %v65, %v69
    %v72 = vld [vmem:[%s56] sm:$0xff]
    %v73 = vld [vmem:[%s56 + $0x8] sm:$0xff]
    %v74 = vld [vmem:[%s56 + $0x10] sm:$0xff]
    %v75 = vld [vmem:[%s56 + $0x18] sm:$0xff]
    %v76 = vld [vmem:[%s56 + $0x20] sm:$0xff]
    %v77 = vld [vmem:[%s56 + $0x28] sm:$0xff]
    %v78 = vld [vmem:[%s56 + $0x30] sm:$0xff]
    %v79 = vld [vmem:[%s56 + $0x38] sm:$0xff]
    %v80 = vld [vmem:[%s56 + $0x40] sm:$0xff]
    %v81 = vld [vmem:[%s56 + $0x48] sm:$0xff]
    %v82 = vld [vmem:[%s56 + $0x50] sm:$0xff]
    %v83 = vld [vmem:[%s56 + $0x58] sm:$0xff]
    %v84 = vld [vmem:[%s56 + $0x60] sm:$0xff]
    %v85 = vld [vmem:[%s56 + $0x68] sm:$0xff]
    %v86 = vld [vmem:[%s56 + $0x70] sm:$0xff]
    %v87 = vld [vmem:[%s56 + $0x78] sm:$0xff]
    %v88 = vld [vmem:[%s56 + $0x80] sm:$0xff]
    %v89 = vld [vmem:[%s56 + $0x88] sm:$0xff]
    %v90 = vld [vmem:[%s56 + $0x90] sm:$0xff]
    %v91 = vld [vmem:[%s56 + $0x98] sm:$0xff]
    %v92 = vld [vmem:[%s56 + $0xa0] sm:$0xff]
    %v93 = vld [vmem:[%s56 + $0xa8] sm:$0xff]
    %v94 = vld [vmem:[%s56 + $0xb0] sm:$0xff]
    %v95 = vld [vmem:[%s56 + $0xb8] sm:$0xff]
    %v96 = vld [vmem:[%s56 + $0xc0] sm:$0xff]
    %v97 = vld [vmem:[%s56 + $0xc8] sm:$0xff]
    %v98 = vld [vmem:[%s56 + $0xd0] sm:$0xff]
    %v99 = vld [vmem:[%s56 + $0xd8] sm:$0xff]
    %v100 = vld [vmem:[%s56 + $0xe0] sm:$0xff]
    %v101 = vld [vmem:[%s56 + $0xe8] sm:$0xff]
    %v102 = vld [vmem:[%s56 + $0xf0] sm:$0xff]
    %v103 = vld [vmem:[%s56 + $0xf8] sm:$0xff]
    %v104 = vld [vmem:[%s56 + $0x100] sm:$0xff]
    %v105 = vld [vmem:[%s56 + $0x108] sm:$0xff]
    %v106 = vld [vmem:[%s56 + $0x110] sm:$0xff]
    %v107 = vld [vmem:[%s56 + $0x118] sm:$0xff]
    %v108 = vld [vmem:[%s56 + $0x120] sm:$0xff]
    %v109 = vld [vmem:[%s56 + $0x128] sm:$0xff]
    %v110 = vld [vmem:[%s56 + $0x130] sm:$0xff]
    %v111 = vld [vmem:[%s56 + $0x138] sm:$0xff]
    %v112 = vld [vmem:[%s56 + $0x140] sm:$0xff]
    %v113 = vld [vmem:[%s56 + $0x148] sm:$0xff]
    %v114 = vld [vmem:[%s56 + $0x150] sm:$0xff]
    %v115 = vld [vmem:[%s56 + $0x158] sm:$0xff]
    %v116 = vld [vmem:[%s56 + $0x160] sm:$0xff]
    %v117 = vld [vmem:[%s56 + $0x168] sm:$0xff]
    %v118 = vld [vmem:[%s56 + $0x170] sm:$0xff]
    %v119 = vld [vmem:[%s56 + $0x178] sm:$0xff]
    %v120 = vld [vmem:[%s56 + $0x180] sm:$0xff]
    %v121 = vld [vmem:[%s56 + $0x188] sm:$0xff]
    %v122 = vld [vmem:[%s56 + $0x190] sm:$0xff]
    %v123 = vld [vmem:[%s56 + $0x198] sm:$0xff]
    %v124 = vld [vmem:[%s56 + $0x1a0] sm:$0xff]
    %v125 = vld [vmem:[%s56 + $0x1a8] sm:$0xff]
    %v126 = vld [vmem:[%s56 + $0x1b0] sm:$0xff]
    %v127 = vld [vmem:[%s56 + $0x1b8] sm:$0xff]
    %v128 = vld [vmem:[%s56 + $0x1c0] sm:$0xff]
    %v129 = vld [vmem:[%s56 + $0x1c8] sm:$0xff]
    %v130 = vld [vmem:[%s56 + $0x1d0] sm:$0xff]
    %v131 = vld [vmem:[%s56 + $0x1d8] sm:$0xff]
    %v132 = vld [vmem:[%s56 + $0x1e0] sm:$0xff]
    %v133 = vld [vmem:[%s56 + $0x1e8] sm:$0xff]
    %v134 = vld [vmem:[%s56 + $0x1f0] sm:$0xff]
    %v135 = vld [vmem:[%s56 + $0x1f8] sm:$0xff]
    %137 = vset.pattern.permute.xlu0 0
    %138 = vperm.xlu0 %137, %v72
    %v139 = vpop.permute.xlu0 %138
    %142 = vset.pattern.permute.xlu0 0
    %143 = vperm.xlu0 %142, %v73
    %v144 = vpop.permute.xlu0 %143
    %147 = vset.pattern.permute.xlu0 0
    %148 = vperm.xlu0 %147, %v74
    %v149 = vpop.permute.xlu0 %148
    %152 = vset.pattern.permute.xlu0 0
    %153 = vperm.xlu0 %152, %v75
    %v154 = vpop.permute.xlu0 %153
    %157 = vset.pattern.permute.xlu0 0
    %158 = vperm.xlu0 %157, %v76
    %v159 = vpop.permute.xlu0 %158
    %162 = vset.pattern.permute.xlu0 0
    %163 = vperm.xlu0 %162, %v77
    %v164 = vpop.permute.xlu0 %163
    %167 = vset.pattern.permute.xlu0 0
    %168 = vperm.xlu0 %167, %v78
    %v169 = vpop.permute.xlu0 %168
    %172 = vset.pattern.permute.xlu0 0
    %173 = vperm.xlu0 %172, %v79
    %v174 = vpop.permute.xlu0 %173
    %177 = vset.pattern.permute.xlu0 0
    %178 = vperm.xlu0 %177, %v80
    %v179 = vpop.permute.xlu0 %178
    %182 = vset.pattern.permute.xlu0 0
    %183 = vperm.xlu0 %182, %v81
    %v184 = vpop.permute.xlu0 %183
    %187 = vset.pattern.permute.xlu0 0
    %188 = vperm.xlu0 %187, %v82
    %v189 = vpop.permute.xlu0 %188
    %192 = vset.pattern.permute.xlu0 0
    %193 = vperm.xlu0 %192, %v83
    %v194 = vpop.permute.xlu0 %193
    %197 = vset.pattern.permute.xlu0 0
    %198 = vperm.xlu0 %197, %v84
    %v199 = vpop.permute.xlu0 %198
    %202 = vset.pattern.permute.xlu0 0
    %203 = vperm.xlu0 %202, %v85
    %v204 = vpop.permute.xlu0 %203
    %207 = vset.pattern.permute.xlu0 0
    %208 = vperm.xlu0 %207, %v86
    %v209 = vpop.permute.xlu0 %208
    %212 = vset.pattern.permute.xlu0 0
    %213 = vperm.xlu0 %212, %v87
    %v214 = vpop.permute.xlu0 %213
    %217 = vset.pattern.permute.xlu0 0
    %218 = vperm.xlu0 %217, %v88
    %v219 = vpop.permute.xlu0 %218
    %222 = vset.pattern.permute.xlu0 0
    %223 = vperm.xlu0 %222, %v89
    %v224 = vpop.permute.xlu0 %223
    %227 = vset.pattern.permute.xlu0 0
    %228 = vperm.xlu0 %227, %v90
    %v229 = vpop.permute.xlu0 %228
    %232 = vset.pattern.permute.xlu0 0
    %233 = vperm.xlu0 %232, %v91
    %v234 = vpop.permute.xlu0 %233
    %237 = vset.pattern.permute.xlu0 0
    %238 = vperm.xlu0 %237, %v92
    %v239 = vpop.permute.xlu0 %238
    %242 = vset.pattern.permute.xlu0 0
    %243 = vperm.xlu0 %242, %v93
    %v244 = vpop.permute.xlu0 %243
    %247 = vset.pattern.permute.xlu0 0
    %248 = vperm.xlu0 %247, %v94
    %v249 = vpop.permute.xlu0 %248
    %252 = vset.pattern.permute.xlu0 0
    %253 = vperm.xlu0 %252, %v95
    %v254 = vpop.permute.xlu0 %253
    %257 = vset.pattern.permute.xlu0 0
    %258 = vperm.xlu0 %257, %v96
    %v259 = vpop.permute.xlu0 %258
    %262 = vset.pattern.permute.xlu0 0
    %263 = vperm.xlu0 %262, %v97
    %v264 = vpop.permute.xlu0 %263
    %267 = vset.pattern.permute.xlu0 0
    %268 = vperm.xlu0 %267, %v98
    %v269 = vpop.permute.xlu0 %268
    %272 = vset.pattern.permute.xlu0 0
    %273 = vperm.xlu0 %272, %v99
    %v274 = vpop.permute.xlu0 %273
    %277 = vset.pattern.permute.xlu0 0
    %278 = vperm.xlu0 %277, %v100
    %v279 = vpop.permute.xlu0 %278
    %282 = vset.pattern.permute.xlu0 0
    %283 = vperm.xlu0 %282, %v101
    %v284 = vpop.permute.xlu0 %283
    %287 = vset.pattern.permute.xlu0 0
    %288 = vperm.xlu0 %287, %v102
    %v289 = vpop.permute.xlu0 %288
    %292 = vset.pattern.permute.xlu0 0
    %293 = vperm.xlu0 %292, %v103
    %v294 = vpop.permute.xlu0 %293
    %297 = vset.pattern.permute.xlu0 0
    %298 = vperm.xlu0 %297, %v104
    %v299 = vpop.permute.xlu0 %298
    %302 = vset.pattern.permute.xlu0 0
    %303 = vperm.xlu0 %302, %v105
    %v304 = vpop.permute.xlu0 %303
    %307 = vset.pattern.permute.xlu0 0
    %308 = vperm.xlu0 %307, %v106
    %v309 = vpop.permute.xlu0 %308
    %312 = vset.pattern.permute.xlu0 0
    %313 = vperm.xlu0 %312, %v107
    %v314 = vpop.permute.xlu0 %313
    %317 = vset.pattern.permute.xlu0 0
    %318 = vperm.xlu0 %317, %v108
    %v319 = vpop.permute.xlu0 %318
    %322 = vset.pattern.permute.xlu0 0
    %323 = vperm.xlu0 %322, %v109
    %v324 = vpop.permute.xlu0 %323
    %327 = vset.pattern.permute.xlu0 0
    %328 = vperm.xlu0 %327, %v110
    %v329 = vpop.permute.xlu0 %328
    %332 = vset.pattern.permute.xlu0 0
    %333 = vperm.xlu0 %332, %v111
    %v334 = vpop.permute.xlu0 %333
    %337 = vset.pattern.permute.xlu0 0
    %338 = vperm.xlu0 %337, %v112
    %v339 = vpop.permute.xlu0 %338
    %342 = vset.pattern.permute.xlu0 0
    %343 = vperm.xlu0 %342, %v113
    %v344 = vpop.permute.xlu0 %343
    %347 = vset.pattern.permute.xlu0 0
    %348 = vperm.xlu0 %347, %v114
    %v349 = vpop.permute.xlu0 %348
    %352 = vset.pattern.permute.xlu0 0
    %353 = vperm.xlu0 %352, %v115
    %v354 = vpop.permute.xlu0 %353
    %357 = vset.pattern.permute.xlu0 0
    %358 = vperm.xlu0 %357, %v116
    %v359 = vpop.permute.xlu0 %358
    %362 = vset.pattern.permute.xlu0 0
    %363 = vperm.xlu0 %362, %v117
    %v364 = vpop.permute.xlu0 %363
    %367 = vset.pattern.permute.xlu0 0
    %368 = vperm.xlu0 %367, %v118
    %v369 = vpop.permute.xlu0 %368
    %372 = vset.pattern.permute.xlu0 0
    %373 = vperm.xlu0 %372, %v119
    %v374 = vpop.permute.xlu0 %373
    %377 = vset.pattern.permute.xlu0 0
    %378 = vperm.xlu0 %377, %v120
    %v379 = vpop.permute.xlu0 %378
    %382 = vset.pattern.permute.xlu0 0
    %383 = vperm.xlu0 %382, %v121
    %v384 = vpop.permute.xlu0 %383
    %387 = vset.pattern.permute.xlu0 0
    %388 = vperm.xlu0 %387, %v122
    %v389 = vpop.permute.xlu0 %388
    %392 = vset.pattern.permute.xlu0 0
    %393 = vperm.xlu0 %392, %v123
    %v394 = vpop.permute.xlu0 %393
    %397 = vset.pattern.permute.xlu0 0
    %398 = vperm.xlu0 %397, %v124
    %v399 = vpop.permute.xlu0 %398
    %402 = vset.pattern.permute.xlu0 0
    %403 = vperm.xlu0 %402, %v125
    %v404 = vpop.permute.xlu0 %403
    %407 = vset.pattern.permute.xlu0 0
    %408 = vperm.xlu0 %407, %v126
    %v409 = vpop.permute.xlu0 %408
    %412 = vset.pattern.permute.xlu0 0
    %413 = vperm.xlu0 %412, %v127
    %v414 = vpop.permute.xlu0 %413
    %417 = vset.pattern.permute.xlu0 0
    %418 = vperm.xlu0 %417, %v128
    %v419 = vpop.permute.xlu0 %418
    %422 = vset.pattern.permute.xlu0 0
    %423 = vperm.xlu0 %422, %v129
    %v424 = vpop.permute.xlu0 %423
    %427 = vset.pattern.permute.xlu0 0
    %428 = vperm.xlu0 %427, %v130
    %v429 = vpop.permute.xlu0 %428
    %432 = vset.pattern.permute.xlu0 0
    %433 = vperm.xlu0 %432, %v131
    %v434 = vpop.permute.xlu0 %433
    %437 = vset.pattern.permute.xlu0 0
    %438 = vperm.xlu0 %437, %v132
    %v439 = vpop.permute.xlu0 %438
    %442 = vset.pattern.permute.xlu0 0
    %443 = vperm.xlu0 %442, %v133
    %v444 = vpop.permute.xlu0 %443
    %447 = vset.pattern.permute.xlu0 0
    %448 = vperm.xlu0 %447, %v134
    %v449 = vpop.permute.xlu0 %448
    %452 = vset.pattern.permute.xlu0 0
    %453 = vperm.xlu0 %452, %v135
    %v454 = vpop.permute.xlu0 %453
    %v456 = vsub.f32 %v139, %v70
    %v457 = vsub.f32 %v144, %v70
    %v458 = vsub.f32 %v149, %v70
    %v459 = vsub.f32 %v154, %v70
    %v460 = vsub.f32 %v159, %v70
    %v461 = vsub.f32 %v164, %v70
    %v462 = vsub.f32 %v169, %v70
    %v463 = vsub.f32 %v174, %v70
    %v464 = vsub.f32 %v179, %v70
    %v465 = vsub.f32 %v184, %v70
    %v466 = vsub.f32 %v189, %v70
    %v467 = vsub.f32 %v194, %v70
    %v468 = vsub.f32 %v199, %v70
    %v469 = vsub.f32 %v204, %v70
    %v470 = vsub.f32 %v209, %v70
    %v471 = vsub.f32 %v214, %v70
    %v472 = vsub.f32 %v219, %v70
    %v473 = vsub.f32 %v224, %v70
    %v474 = vsub.f32 %v229, %v70
    %v475 = vsub.f32 %v234, %v70
    %v476 = vsub.f32 %v239, %v70
    %v477 = vsub.f32 %v244, %v70
    %v478 = vsub.f32 %v249, %v70
    %v479 = vsub.f32 %v254, %v70
    %v480 = vsub.f32 %v259, %v70
    %v481 = vsub.f32 %v264, %v70
    %v482 = vsub.f32 %v269, %v70
    %v483 = vsub.f32 %v274, %v70
    %v484 = vsub.f32 %v279, %v70
    %v485 = vsub.f32 %v284, %v70
    %v486 = vsub.f32 %v289, %v70
    %v487 = vsub.f32 %v294, %v70
    %v488 = vsub.f32 %v299, %v70
    %v489 = vsub.f32 %v304, %v70
    %v490 = vsub.f32 %v309, %v70
    %v491 = vsub.f32 %v314, %v70
    %v492 = vsub.f32 %v319, %v70
    %v493 = vsub.f32 %v324, %v70
    %v494 = vsub.f32 %v329, %v70
    %v495 = vsub.f32 %v334, %v70
    %v496 = vsub.f32 %v339, %v70
    %v497 = vsub.f32 %v344, %v70
    %v498 = vsub.f32 %v349, %v70
    %v499 = vsub.f32 %v354, %v70
    %v500 = vsub.f32 %v359, %v70
    %v501 = vsub.f32 %v364, %v70
    %v502 = vsub.f32 %v369, %v70
    %v503 = vsub.f32 %v374, %v70
    %v504 = vsub.f32 %v379, %v70
    %v505 = vsub.f32 %v384, %v70
    %v506 = vsub.f32 %v389, %v70
    %v507 = vsub.f32 %v394, %v70
    %v508 = vsub.f32 %v399, %v70
    %v509 = vsub.f32 %v404, %v70
    %v510 = vsub.f32 %v409, %v70
    %v511 = vsub.f32 %v414, %v70
    %v512 = vsub.f32 %v419, %v70
    %v513 = vsub.f32 %v424, %v70
    %v514 = vsub.f32 %v429, %v70
    %v515 = vsub.f32 %v434, %v70
    %v516 = vsub.f32 %v439, %v70
    %v517 = vsub.f32 %v444, %v70
    %v518 = vsub.f32 %v449, %v70
    %v519 = vsub.f32 %v454, %v70
    %v520 = vmul.f32 %v456, %v456
    %v521 = vmul.f32 %v457, %v457
    %v522 = vmul.f32 %v458, %v458
    %v523 = vmul.f32 %v459, %v459
    %v524 = vmul.f32 %v460, %v460
    %v525 = vmul.f32 %v461, %v461
    %v526 = vmul.f32 %v462, %v462
    %v527 = vmul.f32 %v463, %v463
    %v528 = vmul.f32 %v464, %v464
    %v529 = vmul.f32 %v465, %v465
    %v530 = vmul.f32 %v466, %v466
    %v531 = vmul.f32 %v467, %v467
    %v532 = vmul.f32 %v468, %v468
    %v533 = vmul.f32 %v469, %v469
    %v534 = vmul.f32 %v470, %v470
    %v535 = vmul.f32 %v471, %v471
    %v536 = vmul.f32 %v472, %v472
    %v537 = vmul.f32 %v473, %v473
    %v538 = vmul.f32 %v474, %v474
    %v539 = vmul.f32 %v475, %v475
    %v540 = vmul.f32 %v476, %v476
    %v541 = vmul.f32 %v477, %v477
    %v542 = vmul.f32 %v478, %v478
    %v543 = vmul.f32 %v479, %v479
    %v544 = vmul.f32 %v480, %v480
    %v545 = vmul.f32 %v481, %v481
    %v546 = vmul.f32 %v482, %v482
    %v547 = vmul.f32 %v483, %v483
    %v548 = vmul.f32 %v484, %v484
    %v549 = vmul.f32 %v485, %v485
    %v550 = vmul.f32 %v486, %v486
    %v551 = vmul.f32 %v487, %v487
    %v552 = vmul.f32 %v488, %v488
    %v553 = vmul.f32 %v489, %v489
    %v554 = vmul.f32 %v490, %v490
    %v555 = vmul.f32 %v491, %v491
    %v556 = vmul.f32 %v492, %v492
    %v557 = vmul.f32 %v493, %v493
    %v558 = vmul.f32 %v494, %v494
    %v559 = vmul.f32 %v495, %v495
    %v560 = vmul.f32 %v496, %v496
    %v561 = vmul.f32 %v497, %v497
    %v562 = vmul.f32 %v498, %v498
    %v563 = vmul.f32 %v499, %v499
    %v564 = vmul.f32 %v500, %v500
    %v565 = vmul.f32 %v501, %v501
    %v566 = vmul.f32 %v502, %v502
    %v567 = vmul.f32 %v503, %v503
    %v568 = vmul.f32 %v504, %v504
    %v569 = vmul.f32 %v505, %v505
    %v570 = vmul.f32 %v506, %v506
    %v571 = vmul.f32 %v507, %v507
    %v572 = vmul.f32 %v508, %v508
    %v573 = vmul.f32 %v509, %v509
    %v574 = vmul.f32 %v510, %v510
    %v575 = vmul.f32 %v511, %v511
    %v576 = vmul.f32 %v512, %v512
    %v577 = vmul.f32 %v513, %v513
    %v578 = vmul.f32 %v514, %v514
    %v579 = vmul.f32 %v515, %v515
    %v580 = vmul.f32 %v516, %v516
    %v581 = vmul.f32 %v517, %v517
    %v582 = vmul.f32 %v518, %v518
    %v583 = vmul.f32 %v519, %v519
    %v584 = vsub.f32 0.0, %v520
    %v585 = vsub.f32 0.0, %v521
    %v586 = vsub.f32 0.0, %v522
    %v587 = vsub.f32 0.0, %v523
    %v588 = vsub.f32 0.0, %v524
    %v589 = vsub.f32 0.0, %v525
    %v590 = vsub.f32 0.0, %v526
    %v591 = vsub.f32 0.0, %v527
    %v592 = vsub.f32 0.0, %v528
    %v593 = vsub.f32 0.0, %v529
    %v594 = vsub.f32 0.0, %v530
    %v595 = vsub.f32 0.0, %v531
    %v596 = vsub.f32 0.0, %v532
    %v597 = vsub.f32 0.0, %v533
    %v598 = vsub.f32 0.0, %v534
    %v599 = vsub.f32 0.0, %v535
    %v600 = vsub.f32 0.0, %v536
    %v601 = vsub.f32 0.0, %v537
    %v602 = vsub.f32 0.0, %v538
    %v603 = vsub.f32 0.0, %v539
    %v604 = vsub.f32 0.0, %v540
    %v605 = vsub.f32 0.0, %v541
    %v606 = vsub.f32 0.0, %v542
    %v607 = vsub.f32 0.0, %v543
    %v608 = vsub.f32 0.0, %v544
    %v609 = vsub.f32 0.0, %v545
    %v610 = vsub.f32 0.0, %v546
    %v611 = vsub.f32 0.0, %v547
    %v612 = vsub.f32 0.0, %v548
    %v613 = vsub.f32 0.0, %v549
    %v614 = vsub.f32 0.0, %v550
    %v615 = vsub.f32 0.0, %v551
    %v616 = vsub.f32 0.0, %v552
    %v617 = vsub.f32 0.0, %v553
    %v618 = vsub.f32 0.0, %v554
    %v619 = vsub.f32 0.0, %v555
    %v620 = vsub.f32 0.0, %v556
    %v621 = vsub.f32 0.0, %v557
    %v622 = vsub.f32 0.0, %v558
    %v623 = vsub.f32 0.0, %v559
    %v624 = vsub.f32 0.0, %v560
    %v625 = vsub.f32 0.0, %v561
    %v626 = vsub.f32 0.0, %v562
    %v627 = vsub.f32 0.0, %v563
    %v628 = vsub.f32 0.0, %v564
    %v629 = vsub.f32 0.0, %v565
    %v630 = vsub.f32 0.0, %v566
    %v631 = vsub.f32 0.0, %v567
    %v632 = vsub.f32 0.0, %v568
    %v633 = vsub.f32 0.0, %v569
    %v634 = vsub.f32 0.0, %v570
    %v635 = vsub.f32 0.0, %v571
    %v636 = vsub.f32 0.0, %v572
    %v637 = vsub.f32 0.0, %v573
    %v638 = vsub.f32 0.0, %v574
    %v639 = vsub.f32 0.0, %v575
    %v640 = vsub.f32 0.0, %v576
    %v641 = vsub.f32 0.0, %v577
    %v642 = vsub.f32 0.0, %v578
    %v643 = vsub.f32 0.0, %v579
    %v644 = vsub.f32 0.0, %v580
    %v645 = vsub.f32 0.0, %v581
    %v646 = vsub.f32 0.0, %v582
    %v647 = vsub.f32 0.0, %v583
    %v648 = vpack.c.bf16 %v585, %v584
    %v649 = vpack.c.bf16 %v587, %v586
    %v650 = vpack.c.bf16 %v589, %v588
    %v651 = vpack.c.bf16 %v591, %v590
    %v652 = vpack.c.bf16 %v593, %v592
    %v653 = vpack.c.bf16 %v595, %v594
    %v654 = vpack.c.bf16 %v597, %v596
    %v655 = vpack.c.bf16 %v599, %v598
    %v656 = vpack.c.bf16 %v601, %v600
    %v657 = vpack.c.bf16 %v603, %v602
    %v658 = vpack.c.bf16 %v605, %v604
    %v659 = vpack.c.bf16 %v607, %v606
    %v660 = vpack.c.bf16 %v609, %v608
    %v661 = vpack.c.bf16 %v611, %v610
    %v662 = vpack.c.bf16 %v613, %v612
    %v663 = vpack.c.bf16 %v615, %v614
    %v664 = vpack.c.bf16 %v617, %v616
    %v665 = vpack.c.bf16 %v619, %v618
    %v666 = vpack.c.bf16 %v621, %v620
    %v667 = vpack.c.bf16 %v623, %v622
    %v668 = vpack.c.bf16 %v625, %v624
    %v669 = vpack.c.bf16 %v627, %v626
    %v670 = vpack.c.bf16 %v629, %v628
    %v671 = vpack.c.bf16 %v631, %v630
    %v672 = vpack.c.bf16 %v633, %v632
    %v673 = vpack.c.bf16 %v635, %v634
    %v674 = vpack.c.bf16 %v637, %v636
    %v675 = vpack.c.bf16 %v639, %v638
    %v676 = vpack.c.bf16 %v641, %v640
    %v677 = vpack.c.bf16 %v643, %v642
    %v678 = vpack.c.bf16 %v645, %v644
    %v679 = vpack.c.bf16 %v647, %v646
    %v681 = vmul.bf16 %v648, 1069105081
    %v682 = vpow.bf16.pop %v681
    %v684 = vmul.bf16 %v649, 1069105081
    %v685 = vpow.bf16.pop %v684
    %v687 = vmul.bf16 %v650, 1069105081
    %v688 = vpow.bf16.pop %v687
    %v690 = vmul.bf16 %v651, 1069105081
    %v691 = vpow.bf16.pop %v690
    %v693 = vmul.bf16 %v652, 1069105081
    %v694 = vpow.bf16.pop %v693
    %v696 = vmul.bf16 %v653, 1069105081
    %v697 = vpow.bf16.pop %v696
    %v699 = vmul.bf16 %v654, 1069105081
    %v700 = vpow.bf16.pop %v699
    %v702 = vmul.bf16 %v655, 1069105081
    %v703 = vpow.bf16.pop %v702
    %v705 = vmul.bf16 %v656, 1069105081
    %v706 = vpow.bf16.pop %v705
    %v708 = vmul.bf16 %v657, 1069105081
    %v709 = vpow.bf16.pop %v708
    %v711 = vmul.bf16 %v658, 1069105081
    %v712 = vpow.bf16.pop %v711
    %v714 = vmul.bf16 %v659, 1069105081
    %v715 = vpow.bf16.pop %v714
    %v717 = vmul.bf16 %v660, 1069105081
    %v718 = vpow.bf16.pop %v717
    %v720 = vmul.bf16 %v661, 1069105081
    %v721 = vpow.bf16.pop %v720
    %v723 = vmul.bf16 %v662, 1069105081
    %v724 = vpow.bf16.pop %v723
    %v726 = vmul.bf16 %v663, 1069105081
    %v727 = vpow.bf16.pop %v726
    %v729 = vmul.bf16 %v664, 1069105081
    %v730 = vpow.bf16.pop %v729
    %v732 = vmul.bf16 %v665, 1069105081
    %v733 = vpow.bf16.pop %v732
    %v735 = vmul.bf16 %v666, 1069105081
    %v736 = vpow.bf16.pop %v735
    %v738 = vmul.bf16 %v667, 1069105081
    %v739 = vpow.bf16.pop %v738
    %v741 = vmul.bf16 %v668, 1069105081
    %v742 = vpow.bf16.pop %v741
    %v744 = vmul.bf16 %v669, 1069105081
    %v745 = vpow.bf16.pop %v744
    %v747 = vmul.bf16 %v670, 1069105081
    %v748 = vpow.bf16.pop %v747
    %v750 = vmul.bf16 %v671, 1069105081
    %v751 = vpow.bf16.pop %v750
    %v753 = vmul.bf16 %v672, 1069105081
    %v754 = vpow.bf16.pop %v753
    %v756 = vmul.bf16 %v673, 1069105081
    %v757 = vpow.bf16.pop %v756
    %v759 = vmul.bf16 %v674, 1069105081
    %v760 = vpow.bf16.pop %v759
    %v762 = vmul.bf16 %v675, 1069105081
    %v763 = vpow.bf16.pop %v762
    %v765 = vmul.bf16 %v676, 1069105081
    %v766 = vpow.bf16.pop %v765
    %v768 = vmul.bf16 %v677, 1069105081
    %v769 = vpow.bf16.pop %v768
    %v771 = vmul.bf16 %v678, 1069105081
    %v772 = vpow.bf16.pop %v771
    %v774 = vmul.bf16 %v679, 1069105081
    %v775 = vpow.bf16.pop %v774
    %v776 = vld [vmem:[%s48] sm:$0xff]
    %v777 = vld [vmem:[%s48 + $0x8] sm:$0xff]
    %v778 = vld [vmem:[%s56 + $0x200] sm:$0xff]
    %v779 = vld [vmem:[%s56 + $0x208] sm:$0xff]
    %v780 = vld [vmem:[%s56 + $0x210] sm:$0xff]
    %v781 = vld [vmem:[%s56 + $0x218] sm:$0xff]
    %v782 = vld [vmem:[%s56 + $0x220] sm:$0xff]
    %v783 = vld [vmem:[%s56 + $0x228] sm:$0xff]
    %v784 = vld [vmem:[%s56 + $0x230] sm:$0xff]
    %v785 = vld [vmem:[%s56 + $0x238] sm:$0xff]
    %v786 = vld [vmem:[%s56 + $0x240] sm:$0xff]
    %v787 = vld [vmem:[%s56 + $0x248] sm:$0xff]
    %v788 = vld [vmem:[%s56 + $0x250] sm:$0xff]
    %v789 = vld [vmem:[%s56 + $0x258] sm:$0xff]
    %v790 = vld [vmem:[%s56 + $0x260] sm:$0xff]
    %v791 = vld [vmem:[%s56 + $0x268] sm:$0xff]
    %v792 = vld [vmem:[%s56 + $0x270] sm:$0xff]
    %v793 = vld [vmem:[%s56 + $0x278] sm:$0xff]
    %v794 = vld [vmem:[%s56 + $0x280] sm:$0xff]
    %v795 = vld [vmem:[%s56 + $0x288] sm:$0xff]
    %v796 = vld [vmem:[%s56 + $0x290] sm:$0xff]
    %v797 = vld [vmem:[%s56 + $0x298] sm:$0xff]
    %v798 = vld [vmem:[%s56 + $0x2a0] sm:$0xff]
    %v799 = vld [vmem:[%s56 + $0x2a8] sm:$0xff]
    %v800 = vld [vmem:[%s56 + $0x2b0] sm:$0xff]
    %v801 = vld [vmem:[%s56 + $0x2b8] sm:$0xff]
    %v802 = vld [vmem:[%s56 + $0x2c0] sm:$0xff]
    %v803 = vld [vmem:[%s56 + $0x2c8] sm:$0xff]
    %v804 = vld [vmem:[%s56 + $0x2d0] sm:$0xff]
    %v805 = vld [vmem:[%s56 + $0x2d8] sm:$0xff]
    %v806 = vld [vmem:[%s56 + $0x2e0] sm:$0xff]
    %v807 = vld [vmem:[%s56 + $0x2e8] sm:$0xff]
    %v808 = vld [vmem:[%s56 + $0x2f0] sm:$0xff]
    %v809 = vld [vmem:[%s56 + $0x2f8] sm:$0xff]
    %v810 = vld [vmem:[%s56 + $0x300] sm:$0xff]
    %v811 = vld [vmem:[%s56 + $0x308] sm:$0xff]
    %v812 = vld [vmem:[%s56 + $0x310] sm:$0xff]
    %v813 = vld [vmem:[%s56 + $0x318] sm:$0xff]
    %v814 = vld [vmem:[%s56 + $0x320] sm:$0xff]
    %v815 = vld [vmem:[%s56 + $0x328] sm:$0xff]
    %v816 = vld [vmem:[%s56 + $0x330] sm:$0xff]
    %v817 = vld [vmem:[%s56 + $0x338] sm:$0xff]
    %v818 = vld [vmem:[%s56 + $0x340] sm:$0xff]
    %v819 = vld [vmem:[%s56 + $0x348] sm:$0xff]
    %v820 = vld [vmem:[%s56 + $0x350] sm:$0xff]
    %v821 = vld [vmem:[%s56 + $0x358] sm:$0xff]
    %v822 = vld [vmem:[%s56 + $0x360] sm:$0xff]
    %v823 = vld [vmem:[%s56 + $0x368] sm:$0xff]
    %v824 = vld [vmem:[%s56 + $0x370] sm:$0xff]
    %v825 = vld [vmem:[%s56 + $0x378] sm:$0xff]
    %v826 = vld [vmem:[%s56 + $0x380] sm:$0xff]
    %v827 = vld [vmem:[%s56 + $0x388] sm:$0xff]
    %v828 = vld [vmem:[%s56 + $0x390] sm:$0xff]
    %v829 = vld [vmem:[%s56 + $0x398] sm:$0xff]
    %v830 = vld [vmem:[%s56 + $0x3a0] sm:$0xff]
    %v831 = vld [vmem:[%s56 + $0x3a8] sm:$0xff]
    %v832 = vld [vmem:[%s56 + $0x3b0] sm:$0xff]
    %v833 = vld [vmem:[%s56 + $0x3b8] sm:$0xff]
    %v834 = vld [vmem:[%s56 + $0x3c0] sm:$0xff]
    %v835 = vld [vmem:[%s56 + $0x3c8] sm:$0xff]
    %v836 = vld [vmem:[%s56 + $0x3d0] sm:$0xff]
    %v837 = vld [vmem:[%s56 + $0x3d8] sm:$0xff]
    %v838 = vld [vmem:[%s56 + $0x3e0] sm:$0xff]
    %v839 = vld [vmem:[%s56 + $0x3e8] sm:$0xff]
    %v840 = vld [vmem:[%s56 + $0x3f0] sm:$0xff]
    %v841 = vld [vmem:[%s56 + $0x3f8] sm:$0xff]
    %843 = vset.pattern.permute.xlu0 0
    %844 = vperm.xlu0 %843, %v778
    %v845 = vpop.permute.xlu0 %844
    %848 = vset.pattern.permute.xlu0 0
    %849 = vperm.xlu0 %848, %v779
    %v850 = vpop.permute.xlu0 %849
    %853 = vset.pattern.permute.xlu0 0
    %854 = vperm.xlu0 %853, %v780
    %v855 = vpop.permute.xlu0 %854
    %858 = vset.pattern.permute.xlu0 0
    %859 = vperm.xlu0 %858, %v781
    %v860 = vpop.permute.xlu0 %859
    %863 = vset.pattern.permute.xlu0 0
    %864 = vperm.xlu0 %863, %v782
    %v865 = vpop.permute.xlu0 %864
    %868 = vset.pattern.permute.xlu0 0
    %869 = vperm.xlu0 %868, %v783
    %v870 = vpop.permute.xlu0 %869
    %873 = vset.pattern.permute.xlu0 0
    %874 = vperm.xlu0 %873, %v784
    %v875 = vpop.permute.xlu0 %874
    %878 = vset.pattern.permute.xlu0 0
    %879 = vperm.xlu0 %878, %v785
    %v880 = vpop.permute.xlu0 %879
    %883 = vset.pattern.permute.xlu0 0
    %884 = vperm.xlu0 %883, %v786
    %v885 = vpop.permute.xlu0 %884
    %888 = vset.pattern.permute.xlu0 0
    %889 = vperm.xlu0 %888, %v787
    %v890 = vpop.permute.xlu0 %889
    %893 = vset.pattern.permute.xlu0 0
    %894 = vperm.xlu0 %893, %v788
    %v895 = vpop.permute.xlu0 %894
    %898 = vset.pattern.permute.xlu0 0
    %899 = vperm.xlu0 %898, %v789
    %v900 = vpop.permute.xlu0 %899
    %903 = vset.pattern.permute.xlu0 0
    %904 = vperm.xlu0 %903, %v790
    %v905 = vpop.permute.xlu0 %904
    %908 = vset.pattern.permute.xlu0 0
    %909 = vperm.xlu0 %908, %v791
    %v910 = vpop.permute.xlu0 %909
    %913 = vset.pattern.permute.xlu0 0
    %914 = vperm.xlu0 %913, %v792
    %v915 = vpop.permute.xlu0 %914
    %918 = vset.pattern.permute.xlu0 0
    %919 = vperm.xlu0 %918, %v793
    %v920 = vpop.permute.xlu0 %919
    %923 = vset.pattern.permute.xlu0 0
    %924 = vperm.xlu0 %923, %v794
    %v925 = vpop.permute.xlu0 %924
    %928 = vset.pattern.permute.xlu0 0
    %929 = vperm.xlu0 %928, %v795
    %v930 = vpop.permute.xlu0 %929
    %933 = vset.pattern.permute.xlu0 0
    %934 = vperm.xlu0 %933, %v796
    %v935 = vpop.permute.xlu0 %934
    %938 = vset.pattern.permute.xlu0 0
    %939 = vperm.xlu0 %938, %v797
    %v940 = vpop.permute.xlu0 %939
    %943 = vset.pattern.permute.xlu0 0
    %944 = vperm.xlu0 %943, %v798
    %v945 = vpop.permute.xlu0 %944
    %948 = vset.pattern.permute.xlu0 0
    %949 = vperm.xlu0 %948, %v799
    %v950 = vpop.permute.xlu0 %949
    %953 = vset.pattern.permute.xlu0 0
    %954 = vperm.xlu0 %953, %v800
    %v955 = vpop.permute.xlu0 %954
    %958 = vset.pattern.permute.xlu0 0
    %959 = vperm.xlu0 %958, %v801
    %v960 = vpop.permute.xlu0 %959
    %963 = vset.pattern.permute.xlu0 0
    %964 = vperm.xlu0 %963, %v802
    %v965 = vpop.permute.xlu0 %964
    %968 = vset.pattern.permute.xlu0 0
    %969 = vperm.xlu0 %968, %v803
    %v970 = vpop.permute.xlu0 %969
    %973 = vset.pattern.permute.xlu0 0
    %974 = vperm.xlu0 %973, %v804
    %v975 = vpop.permute.xlu0 %974
    %978 = vset.pattern.permute.xlu0 0
    %979 = vperm.xlu0 %978, %v805
    %v980 = vpop.permute.xlu0 %979
    %983 = vset.pattern.permute.xlu0 0
    %984 = vperm.xlu0 %983, %v806
    %v985 = vpop.permute.xlu0 %984
    %988 = vset.pattern.permute.xlu0 0
    %989 = vperm.xlu0 %988, %v807
    %v990 = vpop.permute.xlu0 %989
    %993 = vset.pattern.permute.xlu0 0
    %994 = vperm.xlu0 %993, %v808
    %v995 = vpop.permute.xlu0 %994
    %998 = vset.pattern.permute.xlu0 0
    %999 = vperm.xlu0 %998, %v809
    %v1000 = vpop.permute.xlu0 %999
    %1003 = vset.pattern.permute.xlu0 0
    %1004 = vperm.xlu0 %1003, %v810
    %v1005 = vpop.permute.xlu0 %1004
    %1008 = vset.pattern.permute.xlu0 0
    %1009 = vperm.xlu0 %1008, %v811
    %v1010 = vpop.permute.xlu0 %1009
    %1013 = vset.pattern.permute.xlu0 0
    %1014 = vperm.xlu0 %1013, %v812
    %v1015 = vpop.permute.xlu0 %1014
    %1018 = vset.pattern.permute.xlu0 0
    %1019 = vperm.xlu0 %1018, %v813
    %v1020 = vpop.permute.xlu0 %1019
    %1023 = vset.pattern.permute.xlu0 0
    %1024 = vperm.xlu0 %1023, %v814
    %v1025 = vpop.permute.xlu0 %1024
    %1028 = vset.pattern.permute.xlu0 0
    %1029 = vperm.xlu0 %1028, %v815
    %v1030 = vpop.permute.xlu0 %1029
    %1033 = vset.pattern.permute.xlu0 0
    %1034 = vperm.xlu0 %1033, %v816
    %v1035 = vpop.permute.xlu0 %1034
    %1038 = vset.pattern.permute.xlu0 0
    %1039 = vperm.xlu0 %1038, %v817
    %v1040 = vpop.permute.xlu0 %1039
    %1043 = vset.pattern.permute.xlu0 0
    %1044 = vperm.xlu0 %1043, %v818
    %v1045 = vpop.permute.xlu0 %1044
    %1048 = vset.pattern.permute.xlu0 0
    %1049 = vperm.xlu0 %1048, %v819
    %v1050 = vpop.permute.xlu0 %1049
    %1053 = vset.pattern.permute.xlu0 0
    %1054 = vperm.xlu0 %1053, %v820
    %v1055 = vpop.permute.xlu0 %1054
    %1058 = vset.pattern.permute.xlu0 0
    %1059 = vperm.xlu0 %1058, %v821
    %v1060 = vpop.permute.xlu0 %1059
    %1063 = vset.pattern.permute.xlu0 0
    %1064 = vperm.xlu0 %1063, %v822
    %v1065 = vpop.permute.xlu0 %1064
    %1068 = vset.pattern.permute.xlu0 0
    %1069 = vperm.xlu0 %1068, %v823
    %v1070 = vpop.permute.xlu0 %1069
    %1073 = vset.pattern.permute.xlu0 0
    %1074 = vperm.xlu0 %1073, %v824
    %v1075 = vpop.permute.xlu0 %1074
    %1078 = vset.pattern.permute.xlu0 0
    %1079 = vperm.xlu0 %1078, %v825
    %v1080 = vpop.permute.xlu0 %1079
    %1083 = vset.pattern.permute.xlu0 0
    %1084 = vperm.xlu0 %1083, %v826
    %v1085 = vpop.permute.xlu0 %1084
    %1088 = vset.pattern.permute.xlu0 0
    %1089 = vperm.xlu0 %1088, %v827
    %v1090 = vpop.permute.xlu0 %1089
    %1093 = vset.pattern.permute.xlu0 0
    %1094 = vperm.xlu0 %1093, %v828
    %v1095 = vpop.permute.xlu0 %1094
    %1098 = vset.pattern.permute.xlu0 0
    %1099 = vperm.xlu0 %1098, %v829
    %v1100 = vpop.permute.xlu0 %1099
    %1103 = vset.pattern.permute.xlu0 0
    %1104 = vperm.xlu0 %1103, %v830
    %v1105 = vpop.permute.xlu0 %1104
    %1108 = vset.pattern.permute.xlu0 0
    %1109 = vperm.xlu0 %1108, %v831
    %v1110 = vpop.permute.xlu0 %1109
    %1113 = vset.pattern.permute.xlu0 0
    %1114 = vperm.xlu0 %1113, %v832
    %v1115 = vpop.permute.xlu0 %1114
    %1118 = vset.pattern.permute.xlu0 0
    %1119 = vperm.xlu0 %1118, %v833
    %v1120 = vpop.permute.xlu0 %1119
    %1123 = vset.pattern.permute.xlu0 0
    %1124 = vperm.xlu0 %1123, %v834
    %v1125 = vpop.permute.xlu0 %1124
    %1128 = vset.pattern.permute.xlu0 0
    %1129 = vperm.xlu0 %1128, %v835
    %v1130 = vpop.permute.xlu0 %1129
    %1133 = vset.pattern.permute.xlu0 0
    %1134 = vperm.xlu0 %1133, %v836
    %v1135 = vpop.permute.xlu0 %1134
    %1138 = vset.pattern.permute.xlu0 0
    %1139 = vperm.xlu0 %1138, %v837
    %v1140 = vpop.permute.xlu0 %1139
    %1143 = vset.pattern.permute.xlu0 0
    %1144 = vperm.xlu0 %1143, %v838
    %v1145 = vpop.permute.xlu0 %1144
    %1148 = vset.pattern.permute.xlu0 0
    %1149 = vperm.xlu0 %1148, %v839
    %v1150 = vpop.permute.xlu0 %1149
    %1153 = vset.pattern.permute.xlu0 0
    %1154 = vperm.xlu0 %1153, %v840
    %v1155 = vpop.permute.xlu0 %1154
    %1158 = vset.pattern.permute.xlu0 0
    %1159 = vperm.xlu0 %1158, %v841
    %v1160 = vpop.permute.xlu0 %1159
    %v1162 = vsub.f32 %v845, %v70
    %v1163 = vsub.f32 %v850, %v70
    %v1164 = vsub.f32 %v855, %v70
    %v1165 = vsub.f32 %v860, %v70
    %v1166 = vsub.f32 %v865, %v70
    %v1167 = vsub.f32 %v870, %v70
    %v1168 = vsub.f32 %v875, %v70
    %v1169 = vsub.f32 %v880, %v70
    %v1170 = vsub.f32 %v885, %v70
    %v1171 = vsub.f32 %v890, %v70
    %v1172 = vsub.f32 %v895, %v70
    %v1173 = vsub.f32 %v900, %v70
    %v1174 = vsub.f32 %v905, %v70
    %v1175 = vsub.f32 %v910, %v70
    %v1176 = vsub.f32 %v915, %v70
    %v1177 = vsub.f32 %v920, %v70
    %v1178 = vsub.f32 %v925, %v70
    %v1179 = vsub.f32 %v930, %v70
    %v1180 = vsub.f32 %v935, %v70
    %v1181 = vsub.f32 %v940, %v70
    %v1182 = vsub.f32 %v945, %v70
    %v1183 = vsub.f32 %v950, %v70
    %v1184 = vsub.f32 %v955, %v70
    %v1185 = vsub.f32 %v960, %v70
    %v1186 = vsub.f32 %v965, %v70
    %v1187 = vsub.f32 %v970, %v70
    %v1188 = vsub.f32 %v975, %v70
    %v1189 = vsub.f32 %v980, %v70
    %v1190 = vsub.f32 %v985, %v70
    %v1191 = vsub.f32 %v990, %v70
    %v1192 = vsub.f32 %v995, %v70
    %v1193 = vsub.f32 %v1000, %v70
    %v1194 = vsub.f32 %v1005, %v70
    %v1195 = vsub.f32 %v1010, %v70
    %v1196 = vsub.f32 %v1015, %v70
    %v1197 = vsub.f32 %v1020, %v70
    %v1198 = vsub.f32 %v1025, %v70
    %v1199 = vsub.f32 %v1030, %v70
    %v1200 = vsub.f32 %v1035, %v70
    %v1201 = vsub.f32 %v1040, %v70
    %v1202 = vsub.f32 %v1045, %v70
    %v1203 = vsub.f32 %v1050, %v70
    %v1204 = vsub.f32 %v1055, %v70
    %v1205 = vsub.f32 %v1060, %v70
    %v1206 = vsub.f32 %v1065, %v70
    %v1207 = vsub.f32 %v1070, %v70
    %v1208 = vsub.f32 %v1075, %v70
    %v1209 = vsub.f32 %v1080, %v70
    %v1210 = vsub.f32 %v1085, %v70
    %v1211 = vsub.f32 %v1090, %v70
    %v1212 = vsub.f32 %v1095, %v70
    %v1213 = vsub.f32 %v1100, %v70
    %v1214 = vsub.f32 %v1105, %v70
    %v1215 = vsub.f32 %v1110, %v70
    %v1216 = vsub.f32 %v1115, %v70
    %v1217 = vsub.f32 %v1120, %v70
    %v1218 = vsub.f32 %v1125, %v70
    %v1219 = vsub.f32 %v1130, %v70
    %v1220 = vsub.f32 %v1135, %v70
    %v1221 = vsub.f32 %v1140, %v70
    %v1222 = vsub.f32 %v1145, %v70
    %v1223 = vsub.f32 %v1150, %v70
    %v1224 = vsub.f32 %v1155, %v70
    %v1225 = vsub.f32 %v1160, %v70
    %v1226 = vmul.f32 %v1162, %v1162
    %v1227 = vmul.f32 %v1163, %v1163
    %v1228 = vmul.f32 %v1164, %v1164
    %v1229 = vmul.f32 %v1165, %v1165
    %v1230 = vmul.f32 %v1166, %v1166
    %v1231 = vmul.f32 %v1167, %v1167
    %v1232 = vmul.f32 %v1168, %v1168
    %v1233 = vmul.f32 %v1169, %v1169
    %v1234 = vmul.f32 %v1170, %v1170
    %v1235 = vmul.f32 %v1171, %v1171
    %v1236 = vmul.f32 %v1172, %v1172
    %v1237 = vmul.f32 %v1173, %v1173
    %v1238 = vmul.f32 %v1174, %v1174
    %v1239 = vmul.f32 %v1175, %v1175
    %v1240 = vmul.f32 %v1176, %v1176
    %v1241 = vmul.f32 %v1177, %v1177
    %v1242 = vmul.f32 %v1178, %v1178
    %v1243 = vmul.f32 %v1179, %v1179
    %v1244 = vmul.f32 %v1180, %v1180
    %v1245 = vmul.f32 %v1181, %v1181
    %v1246 = vmul.f32 %v1182, %v1182
    %v1247 = vmul.f32 %v1183, %v1183
    %v1248 = vmul.f32 %v1184, %v1184
    %v1249 = vmul.f32 %v1185, %v1185
    %v1250 = vmul.f32 %v1186, %v1186
    %v1251 = vmul.f32 %v1187, %v1187
    %v1252 = vmul.f32 %v1188, %v1188
    %v1253 = vmul.f32 %v1189, %v1189
    %v1254 = vmul.f32 %v1190, %v1190
    %v1255 = vmul.f32 %v1191, %v1191
    %v1256 = vmul.f32 %v1192, %v1192
    %v1257 = vmul.f32 %v1193, %v1193
    %v1258 = vmul.f32 %v1194, %v1194
    %v1259 = vmul.f32 %v1195, %v1195
    %v1260 = vmul.f32 %v1196, %v1196
    %v1261 = vmul.f32 %v1197, %v1197
    %v1262 = vmul.f32 %v1198, %v1198
    %v1263 = vmul.f32 %v1199, %v1199
    %v1264 = vmul.f32 %v1200, %v1200
    %v1265 = vmul.f32 %v1201, %v1201
    %v1266 = vmul.f32 %v1202, %v1202
    %v1267 = vmul.f32 %v1203, %v1203
    %v1268 = vmul.f32 %v1204, %v1204
    %v1269 = vmul.f32 %v1205, %v1205
    %v1270 = vmul.f32 %v1206, %v1206
    %v1271 = vmul.f32 %v1207, %v1207
    %v1272 = vmul.f32 %v1208, %v1208
    %v1273 = vmul.f32 %v1209, %v1209
    %v1274 = vmul.f32 %v1210, %v1210
    %v1275 = vmul.f32 %v1211, %v1211
    %v1276 = vmul.f32 %v1212, %v1212
    %v1277 = vmul.f32 %v1213, %v1213
    %v1278 = vmul.f32 %v1214, %v1214
    %v1279 = vmul.f32 %v1215, %v1215
    %v1280 = vmul.f32 %v1216, %v1216
    %v1281 = vmul.f32 %v1217, %v1217
    %v1282 = vmul.f32 %v1218, %v1218
    %v1283 = vmul.f32 %v1219, %v1219
    %v1284 = vmul.f32 %v1220, %v1220
    %v1285 = vmul.f32 %v1221, %v1221
    %v1286 = vmul.f32 %v1222, %v1222
    %v1287 = vmul.f32 %v1223, %v1223
    %v1288 = vmul.f32 %v1224, %v1224
    %v1289 = vmul.f32 %v1225, %v1225
    %v1290 = vsub.f32 0.0, %v1226
    %v1291 = vsub.f32 0.0, %v1227
    %v1292 = vsub.f32 0.0, %v1228
    %v1293 = vsub.f32 0.0, %v1229
    %v1294 = vsub.f32 0.0, %v1230
    %v1295 = vsub.f32 0.0, %v1231
    %v1296 = vsub.f32 0.0, %v1232
    %v1297 = vsub.f32 0.0, %v1233
    %v1298 = vsub.f32 0.0, %v1234
    %v1299 = vsub.f32 0.0, %v1235
    %v1300 = vsub.f32 0.0, %v1236
    %v1301 = vsub.f32 0.0, %v1237
    %v1302 = vsub.f32 0.0, %v1238
    %v1303 = vsub.f32 0.0, %v1239
    %v1304 = vsub.f32 0.0, %v1240
    %v1305 = vsub.f32 0.0, %v1241
    %v1306 = vsub.f32 0.0, %v1242
    %v1307 = vsub.f32 0.0, %v1243
    %v1308 = vsub.f32 0.0, %v1244
    %v1309 = vsub.f32 0.0, %v1245
    %v1310 = vsub.f32 0.0, %v1246
    %v1311 = vsub.f32 0.0, %v1247
    %v1312 = vsub.f32 0.0, %v1248
    %v1313 = vsub.f32 0.0, %v1249
    %v1314 = vsub.f32 0.0, %v1250
    %v1315 = vsub.f32 0.0, %v1251
    %v1316 = vsub.f32 0.0, %v1252
    %v1317 = vsub.f32 0.0, %v1253
    %v1318 = vsub.f32 0.0, %v1254
    %v1319 = vsub.f32 0.0, %v1255
    %v1320 = vsub.f32 0.0, %v1256
    %v1321 = vsub.f32 0.0, %v1257
    %v1322 = vsub.f32 0.0, %v1258
    %v1323 = vsub.f32 0.0, %v1259
    %v1324 = vsub.f32 0.0, %v1260
    %v1325 = vsub.f32 0.0, %v1261
    %v1326 = vsub.f32 0.0, %v1262
    %v1327 = vsub.f32 0.0, %v1263
    %v1328 = vsub.f32 0.0, %v1264
    %v1329 = vsub.f32 0.0, %v1265
    %v1330 = vsub.f32 0.0, %v1266
    %v1331 = vsub.f32 0.0, %v1267
    %v1332 = vsub.f32 0.0, %v1268
    %v1333 = vsub.f32 0.0, %v1269
    %v1334 = vsub.f32 0.0, %v1270
    %v1335 = vsub.f32 0.0, %v1271
    %v1336 = vsub.f32 0.0, %v1272
    %v1337 = vsub.f32 0.0, %v1273
    %v1338 = vsub.f32 0.0, %v1274
    %v1339 = vsub.f32 0.0, %v1275
    %v1340 = vsub.f32 0.0, %v1276
    %v1341 = vsub.f32 0.0, %v1277
    %v1342 = vsub.f32 0.0, %v1278
    %v1343 = vsub.f32 0.0, %v1279
    %v1344 = vsub.f32 0.0, %v1280
    %v1345 = vsub.f32 0.0, %v1281
    %v1346 = vsub.f32 0.0, %v1282
    %v1347 = vsub.f32 0.0, %v1283
    %v1348 = vsub.f32 0.0, %v1284
    %v1349 = vsub.f32 0.0, %v1285
    %v1350 = vsub.f32 0.0, %v1286
    %v1351 = vsub.f32 0.0, %v1287
    %v1352 = vsub.f32 0.0, %v1288
    %v1353 = vsub.f32 0.0, %v1289
    %v1354 = vpack.c.bf16 %v1291, %v1290
    %v1355 = vpack.c.bf16 %v1293, %v1292
    %v1356 = vpack.c.bf16 %v1295, %v1294
    %v1357 = vpack.c.bf16 %v1297, %v1296
    %v1358 = vpack.c.bf16 %v1299, %v1298
    %v1359 = vpack.c.bf16 %v1301, %v1300
    %v1360 = vpack.c.bf16 %v1303, %v1302
    %v1361 = vpack.c.bf16 %v1305, %v1304
    %v1362 = vpack.c.bf16 %v1307, %v1306
    %v1363 = vpack.c.bf16 %v1309, %v1308
    %v1364 = vpack.c.bf16 %v1311, %v1310
    %v1365 = vpack.c.bf16 %v1313, %v1312
    %v1366 = vpack.c.bf16 %v1315, %v1314
    %v1367 = vpack.c.bf16 %v1317, %v1316
    %v1368 = vpack.c.bf16 %v1319, %v1318
    %v1369 = vpack.c.bf16 %v1321, %v1320
    %v1370 = vpack.c.bf16 %v1323, %v1322
    %v1371 = vpack.c.bf16 %v1325, %v1324
    %v1372 = vpack.c.bf16 %v1327, %v1326
    %v1373 = vpack.c.bf16 %v1329, %v1328
    %v1374 = vpack.c.bf16 %v1331, %v1330
    %v1375 = vpack.c.bf16 %v1333, %v1332
    %v1376 = vpack.c.bf16 %v1335, %v1334
    %v1377 = vpack.c.bf16 %v1337, %v1336
    %v1378 = vpack.c.bf16 %v1339, %v1338
    %v1379 = vpack.c.bf16 %v1341, %v1340
    %v1380 = vpack.c.bf16 %v1343, %v1342
    %v1381 = vpack.c.bf16 %v1345, %v1344
    %v1382 = vpack.c.bf16 %v1347, %v1346
    %v1383 = vpack.c.bf16 %v1349, %v1348
    %v1384 = vpack.c.bf16 %v1351, %v1350
    %v1385 = vpack.c.bf16 %v1353, %v1352
    %v1387 = vmul.bf16 %v1354, 1069105081
    %v1388 = vpow.bf16.pop %v1387
    %v1390 = vmul.bf16 %v1355, 1069105081
    %v1391 = vpow.bf16.pop %v1390
    %v1393 = vmul.bf16 %v1356, 1069105081
    %v1394 = vpow.bf16.pop %v1393
    %v1396 = vmul.bf16 %v1357, 1069105081
    %v1397 = vpow.bf16.pop %v1396
    %v1399 = vmul.bf16 %v1358, 1069105081
    %v1400 = vpow.bf16.pop %v1399
    %v1402 = vmul.bf16 %v1359, 1069105081
    %v1403 = vpow.bf16.pop %v1402
    %v1405 = vmul.bf16 %v1360, 1069105081
    %v1406 = vpow.bf16.pop %v1405
    %v1408 = vmul.bf16 %v1361, 1069105081
    %v1409 = vpow.bf16.pop %v1408
    %v1411 = vmul.bf16 %v1362, 1069105081
    %v1412 = vpow.bf16.pop %v1411
    %v1414 = vmul.bf16 %v1363, 1069105081
    %v1415 = vpow.bf16.pop %v1414
    %v1417 = vmul.bf16 %v1364, 1069105081
    %v1418 = vpow.bf16.pop %v1417
    %v1420 = vmul.bf16 %v1365, 1069105081
    %v1421 = vpow.bf16.pop %v1420
    %v1423 = vmul.bf16 %v1366, 1069105081
    %v1424 = vpow.bf16.pop %v1423
    %v1426 = vmul.bf16 %v1367, 1069105081
    %v1427 = vpow.bf16.pop %v1426
    %v1429 = vmul.bf16 %v1368, 1069105081
    %v1430 = vpow.bf16.pop %v1429
    %v1432 = vmul.bf16 %v1369, 1069105081
    %v1433 = vpow.bf16.pop %v1432
    %v1435 = vmul.bf16 %v1370, 1069105081
    %v1436 = vpow.bf16.pop %v1435
    %v1438 = vmul.bf16 %v1371, 1069105081
    %v1439 = vpow.bf16.pop %v1438
    %v1441 = vmul.bf16 %v1372, 1069105081
    %v1442 = vpow.bf16.pop %v1441
    %v1444 = vmul.bf16 %v1373, 1069105081
    %v1445 = vpow.bf16.pop %v1444
    %v1447 = vmul.bf16 %v1374, 1069105081
    %v1448 = vpow.bf16.pop %v1447
    %v1450 = vmul.bf16 %v1375, 1069105081
    %v1451 = vpow.bf16.pop %v1450
    %v1453 = vmul.bf16 %v1376, 1069105081
    %v1454 = vpow.bf16.pop %v1453
    %v1456 = vmul.bf16 %v1377, 1069105081
    %v1457 = vpow.bf16.pop %v1456
    %v1459 = vmul.bf16 %v1378, 1069105081
    %v1460 = vpow.bf16.pop %v1459
    %v1462 = vmul.bf16 %v1379, 1069105081
    %v1463 = vpow.bf16.pop %v1462
    %v1465 = vmul.bf16 %v1380, 1069105081
    %v1466 = vpow.bf16.pop %v1465
    %v1468 = vmul.bf16 %v1381, 1069105081
    %v1469 = vpow.bf16.pop %v1468
    %v1471 = vmul.bf16 %v1382, 1069105081
    %v1472 = vpow.bf16.pop %v1471
    %v1474 = vmul.bf16 %v1383, 1069105081
    %v1475 = vpow.bf16.pop %v1474
    %v1477 = vmul.bf16 %v1384, 1069105081
    %v1478 = vpow.bf16.pop %v1477
    %v1480 = vmul.bf16 %v1385, 1069105081
    %v1481 = vpow.bf16.pop %v1480
    %v1482 = vld [vmem:[%s48 + $0x10] sm:$0xff]
    %v1483 = vld [vmem:[%s48 + $0x18] sm:$0xff]
    %v1486 = vunpack.c.l.b16 %v1482
    %v1487 = vunpack.c.h.b16 %v1482
    %v1488 = vunpack.c.l.b16 %v1483
    %v1489 = vunpack.c.h.b16 %v1483
    %v1490 = vpack.c.b16 %v1486, %v1486
    %v1491 = vpack.c.b16 %v1487, %v1487
    %v1492 = vpack.c.b16 %v1488, %v1488
    %v1493 = vpack.c.b16 %v1489, %v1489
    %1498 = vmatprep.subr.bf16.mxu0 0
    %1499 = vmatpush1.bf16.msra.mxu0 %v1388
    %1500 = vmatprep.subr.bf16.mxu0 0
    %1501 = vmatpush1.bf16.msra.mxu0 %v1391
    %1502 = vmatprep.subr.bf16.mxu0 0
    %1503 = vmatpush1.bf16.msra.mxu0 %v1394
    %1504 = vmatprep.subr.bf16.mxu0 0
    %1505 = vmatpush1.bf16.msra.mxu0 %v1397
    %1506 = vmatprep.subr.bf16.mxu0 0
    %1507 = vmatpush1.bf16.msra.mxu0 %v1400
    %1508 = vmatprep.subr.bf16.mxu0 0
    %1509 = vmatpush1.bf16.msra.mxu0 %v1403
    %1510 = vmatprep.subr.bf16.mxu0 0
    %1511 = vmatpush1.bf16.msra.mxu0 %v1406
    %1512 = vmatprep.subr.bf16.mxu0 0
    %1513 = vmatpush1.bf16.msra.mxu0 %v1409
    %1514 = vmatprep.subr.bf16.mxu0 0
    %1515 = vmatpush1.bf16.msra.mxu0 %v1412
    %1516 = vmatprep.subr.bf16.mxu0 0
    %1517 = vmatpush1.bf16.msra.mxu0 %v1415
    %1518 = vmatprep.subr.bf16.mxu0 0
    %1519 = vmatpush1.bf16.msra.mxu0 %v1418
    %1520 = vmatprep.subr.bf16.mxu0 0
    %1521 = vmatpush1.bf16.msra.mxu0 %v1421
    %1522 = vmatprep.subr.bf16.mxu0 0
    %1523 = vmatpush1.bf16.msra.mxu0 %v1424
    %1524 = vmatprep.subr.bf16.mxu0 0
    %1525 = vmatpush1.bf16.msra.mxu0 %v1427
    %1526 = vmatprep.subr.bf16.mxu0 0
    %1527 = vmatpush1.bf16.msra.mxu0 %v1430
    %1528 = vmatprep.subr.bf16.mxu0 0
    %1529 = vmatpush1.bf16.msra.mxu0 %v1433
    %1530 = vmatprep.mubr.bf16.mxu0 %v1491
    %1531 = vmatmul.mubr.bf16.gmra.mrb[0].mxu0 %v1490
    %v1532 = vpop.f32.mrb[0].mxu0
    %v1533 = vadd.f32 0.0, %v1532
    %v1534 = vpop.f32.mrb[0].mxu0
    %v1535 = vpop.f32.mrb[0].mxu0
    %v1536 = vpop.f32.mrb[0].mxu0
    %1537 = vdwg.mxu0
    %1538 = vmatprep.subr.bf16.mxu0 0
    %1539 = vmatpush1.bf16.msra.mxu0 %v1436
    %1540 = vmatprep.subr.bf16.mxu0 0
    %1541 = vmatpush1.bf16.msra.mxu0 %v1439
    %1542 = vmatprep.subr.bf16.mxu0 0
    %1543 = vmatpush1.bf16.msra.mxu0 %v1442
    %1544 = vmatprep.subr.bf16.mxu0 0
    %1545 = vmatpush1.bf16.msra.mxu0 %v1445
    %1546 = vmatprep.subr.bf16.mxu0 0
    %1547 = vmatpush1.bf16.msra.mxu0 %v1448
    %1548 = vmatprep.subr.bf16.mxu0 0
    %1549 = vmatpush1.bf16.msra.mxu0 %v1451
    %1550 = vmatprep.subr.bf16.mxu0 0
    %1551 = vmatpush1.bf16.msra.mxu0 %v1454
    %1552 = vmatprep.subr.bf16.mxu0 0
    %1553 = vmatpush1.bf16.msra.mxu0 %v1457
    %1554 = vmatprep.subr.bf16.mxu0 0
    %1555 = vmatpush1.bf16.msra.mxu0 %v1460
    %1556 = vmatprep.subr.bf16.mxu0 0
    %1557 = vmatpush1.bf16.msra.mxu0 %v1463
    %1558 = vmatprep.subr.bf16.mxu0 0
    %1559 = vmatpush1.bf16.msra.mxu0 %v1466
    %1560 = vmatprep.subr.bf16.mxu0 0
    %1561 = vmatpush1.bf16.msra.mxu0 %v1469
    %1562 = vmatprep.subr.bf16.mxu0 0
    %1563 = vmatpush1.bf16.msra.mxu0 %v1472
    %1564 = vmatprep.subr.bf16.mxu0 0
    %1565 = vmatpush1.bf16.msra.mxu0 %v1475
    %1566 = vmatprep.subr.bf16.mxu0 0
    %1567 = vmatpush1.bf16.msra.mxu0 %v1478
    %1568 = vmatprep.subr.bf16.mxu0 0
    %1569 = vmatpush1.bf16.msra.mxu0 %v1481
    %1570 = vmatprep.mubr.bf16.mxu0 %v1493
    %1571 = vmatmul.mubr.bf16.gmra.mrb[0].mxu0 %v1492
    %v1572 = vpop.f32.mrb[0].mxu0
    %v1573 = vadd.f32 %v1533, %v1572
    %v1574 = vpop.f32.mrb[0].mxu0
    %v1575 = vpop.f32.mrb[0].mxu0
    %v1576 = vpop.f32.mrb[0].mxu0
    %1577 = vdwg.mxu0
    %v1580 = vunpack.c.l.b16 %v776
    %v1581 = vunpack.c.h.b16 %v776
    %v1582 = vunpack.c.l.b16 %v777
    %v1583 = vunpack.c.h.b16 %v777
    %v1584 = vpack.c.b16 %v1580, %v1580
    %v1585 = vpack.c.b16 %v1581, %v1581
    %v1586 = vpack.c.b16 %v1582, %v1582
    %v1587 = vpack.c.b16 %v1583, %v1583
    %1592 = vmatprep.subr.bf16.mxu0 0
    %1593 = vmatpush1.bf16.msra.mxu0 %v682
    %1594 = vmatprep.subr.bf16.mxu0 0
    %1595 = vmatpush1.bf16.msra.mxu0 %v685
    %1596 = vmatprep.subr.bf16.mxu0 0
    %1597 = vmatpush1.bf16.msra.mxu0 %v688
    %1598 = vmatprep.subr.bf16.mxu0 0
    %1599 = vmatpush1.bf16.msra.mxu0 %v691
    %1600 = vmatprep.subr.bf16.mxu0 0
    %1601 = vmatpush1.bf16.msra.mxu0 %v694
    %1602 = vmatprep.subr.bf16.mxu0 0
    %1603 = vmatpush1.bf16.msra.mxu0 %v697
    %1604 = vmatprep.subr.bf16.mxu0 0
    %1605 = vmatpush1.bf16.msra.mxu0 %v700
    %1606 = vmatprep.subr.bf16.mxu0 0
    %1607 = vmatpush1.bf16.msra.mxu0 %v703
    %1608 = vmatprep.subr.bf16.mxu0 0
    %1609 = vmatpush1.bf16.msra.mxu0 %v706
    %1610 = vmatprep.subr.bf16.mxu0 0
    %1611 = vmatpush1.bf16.msra.mxu0 %v709
    %1612 = vmatprep.subr.bf16.mxu0 0
    %1613 = vmatpush1.bf16.msra.mxu0 %v712
    %1614 = vmatprep.subr.bf16.mxu0 0
    %1615 = vmatpush1.bf16.msra.mxu0 %v715
    %1616 = vmatprep.subr.bf16.mxu0 0
    %1617 = vmatpush1.bf16.msra.mxu0 %v718
    %1618 = vmatprep.subr.bf16.mxu0 0
    %1619 = vmatpush1.bf16.msra.mxu0 %v721
    %1620 = vmatprep.subr.bf16.mxu0 0
    %1621 = vmatpush1.bf16.msra.mxu0 %v724
    %1622 = vmatprep.subr.bf16.mxu0 0
    %1623 = vmatpush1.bf16.msra.mxu0 %v727
    %1624 = vmatprep.mubr.bf16.mxu0 %v1585
    %1625 = vmatmul.mubr.bf16.gmra.mrb[0].mxu0 %v1584
    %v1626 = vpop.f32.mrb[0].mxu0
    %v1627 = vadd.f32 %v1573, %v1626
    %v1628 = vpop.f32.mrb[0].mxu0
    %v1629 = vpop.f32.mrb[0].mxu0
    %v1630 = vpop.f32.mrb[0].mxu0
    %1631 = vdwg.mxu0
    %1632 = vmatprep.subr.bf16.mxu0 0
    %1633 = vmatpush1.bf16.msra.mxu0 %v730
    %1634 = vmatprep.subr.bf16.mxu0 0
    %1635 = vmatpush1.bf16.msra.mxu0 %v733
    %1636 = vmatprep.subr.bf16.mxu0 0
    %1637 = vmatpush1.bf16.msra.mxu0 %v736
    %1638 = vmatprep.subr.bf16.mxu0 0
    %1639 = vmatpush1.bf16.msra.mxu0 %v739
    %1640 = vmatprep.subr.bf16.mxu0 0
    %1641 = vmatpush1.bf16.msra.mxu0 %v742
    %1642 = vmatprep.subr.bf16.mxu0 0
    %1643 = vmatpush1.bf16.msra.mxu0 %v745
    %1644 = vmatprep.subr.bf16.mxu0 0
    %1645 = vmatpush1.bf16.msra.mxu0 %v748
    %1646 = vmatprep.subr.bf16.mxu0 0
    %1647 = vmatpush1.bf16.msra.mxu0 %v751
    %1648 = vmatprep.subr.bf16.mxu0 0
    %1649 = vmatpush1.bf16.msra.mxu0 %v754
    %1650 = vmatprep.subr.bf16.mxu0 0
    %1651 = vmatpush1.bf16.msra.mxu0 %v757
    %1652 = vmatprep.subr.bf16.mxu0 0
    %1653 = vmatpush1.bf16.msra.mxu0 %v760
    %1654 = vmatprep.subr.bf16.mxu0 0
    %1655 = vmatpush1.bf16.msra.mxu0 %v763
    %1656 = vmatprep.subr.bf16.mxu0 0
    %1657 = vmatpush1.bf16.msra.mxu0 %v766
    %1658 = vmatprep.subr.bf16.mxu0 0
    %1659 = vmatpush1.bf16.msra.mxu0 %v769
    %1660 = vmatprep.subr.bf16.mxu0 0
    %1661 = vmatpush1.bf16.msra.mxu0 %v772
    %1662 = vmatprep.subr.bf16.mxu0 0
    %1663 = vmatpush1.bf16.msra.mxu0 %v775
    %1664 = vmatprep.mubr.bf16.mxu0 %v1587
    %1665 = vmatmul.mubr.bf16.gmra.mrb[0].mxu0 %v1586
    %v1666 = vpop.f32.mrb[0].mxu0
    %v1667 = vadd.f32 %v1627, %v1666
    %v1668 = vpop.f32.mrb[0].mxu0
    %v1669 = vpop.f32.mrb[0].mxu0
    %v1670 = vpop.f32.mrb[0].mxu0
    %1671 = vdwg.mxu0
    %v1672 = vld [vmem:[%s56 + $0x400] sm:$0xff]
    %v1673 = vld [vmem:[%s56 + $0x408] sm:$0xff]
    %v1674 = vld [vmem:[%s56 + $0x410] sm:$0xff]
    %v1675 = vld [vmem:[%s56 + $0x418] sm:$0xff]
    %v1676 = vld [vmem:[%s56 + $0x420] sm:$0xff]
    %v1677 = vld [vmem:[%s56 + $0x428] sm:$0xff]
    %v1678 = vld [vmem:[%s56 + $0x430] sm:$0xff]
    %v1679 = vld [vmem:[%s56 + $0x438] sm:$0xff]
    %v1680 = vld [vmem:[%s56 + $0x440] sm:$0xff]
    %v1681 = vld [vmem:[%s56 + $0x448] sm:$0xff]
    %v1682 = vld [vmem:[%s56 + $0x450] sm:$0xff]
    %v1683 = vld [vmem:[%s56 + $0x458] sm:$0xff]
    %v1684 = vld [vmem:[%s56 + $0x460] sm:$0xff]
    %v1685 = vld [vmem:[%s56 + $0x468] sm:$0xff]
    %v1686 = vld [vmem:[%s56 + $0x470] sm:$0xff]
    %v1687 = vld [vmem:[%s56 + $0x478] sm:$0xff]
    %v1688 = vld [vmem:[%s56 + $0x480] sm:$0xff]
    %v1689 = vld [vmem:[%s56 + $0x488] sm:$0xff]
    %v1690 = vld [vmem:[%s56 + $0x490] sm:$0xff]
    %v1691 = vld [vmem:[%s56 + $0x498] sm:$0xff]
    %v1692 = vld [vmem:[%s56 + $0x4a0] sm:$0xff]
    %v1693 = vld [vmem:[%s56 + $0x4a8] sm:$0xff]
    %v1694 = vld [vmem:[%s56 + $0x4b0] sm:$0xff]
    %v1695 = vld [vmem:[%s56 + $0x4b8] sm:$0xff]
    %v1696 = vld [vmem:[%s56 + $0x4c0] sm:$0xff]
    %v1697 = vld [vmem:[%s56 + $0x4c8] sm:$0xff]
    %v1698 = vld [vmem:[%s56 + $0x4d0] sm:$0xff]
    %v1699 = vld [vmem:[%s56 + $0x4d8] sm:$0xff]
    %v1700 = vld [vmem:[%s56 + $0x4e0] sm:$0xff]
    %v1701 = vld [vmem:[%s56 + $0x4e8] sm:$0xff]
    %v1702 = vld [vmem:[%s56 + $0x4f0] sm:$0xff]
    %v1703 = vld [vmem:[%s56 + $0x4f8] sm:$0xff]
    %v1704 = vld [vmem:[%s56 + $0x500] sm:$0xff]
    %v1705 = vld [vmem:[%s56 + $0x508] sm:$0xff]
    %v1706 = vld [vmem:[%s56 + $0x510] sm:$0xff]
    %v1707 = vld [vmem:[%s56 + $0x518] sm:$0xff]
    %v1708 = vld [vmem:[%s56 + $0x520] sm:$0xff]
    %v1709 = vld [vmem:[%s56 + $0x528] sm:$0xff]
    %v1710 = vld [vmem:[%s56 + $0x530] sm:$0xff]
    %v1711 = vld [vmem:[%s56 + $0x538] sm:$0xff]
    %v1712 = vld [vmem:[%s56 + $0x540] sm:$0xff]
    %v1713 = vld [vmem:[%s56 + $0x548] sm:$0xff]
    %v1714 = vld [vmem:[%s56 + $0x550] sm:$0xff]
    %v1715 = vld [vmem:[%s56 + $0x558] sm:$0xff]
    %v1716 = vld [vmem:[%s56 + $0x560] sm:$0xff]
    %v1717 = vld [vmem:[%s56 + $0x568] sm:$0xff]
    %v1718 = vld [vmem:[%s56 + $0x570] sm:$0xff]
    %v1719 = vld [vmem:[%s56 + $0x578] sm:$0xff]
    %v1720 = vld [vmem:[%s56 + $0x580] sm:$0xff]
    %v1721 = vld [vmem:[%s56 + $0x588] sm:$0xff]
    %v1722 = vld [vmem:[%s56 + $0x590] sm:$0xff]
    %v1723 = vld [vmem:[%s56 + $0x598] sm:$0xff]
    %v1724 = vld [vmem:[%s56 + $0x5a0] sm:$0xff]
    %v1725 = vld [vmem:[%s56 + $0x5a8] sm:$0xff]
    %v1726 = vld [vmem:[%s56 + $0x5b0] sm:$0xff]
    %v1727 = vld [vmem:[%s56 + $0x5b8] sm:$0xff]
    %v1728 = vld [vmem:[%s56 + $0x5c0] sm:$0xff]
    %v1729 = vld [vmem:[%s56 + $0x5c8] sm:$0xff]
    %v1730 = vld [vmem:[%s56 + $0x5d0] sm:$0xff]
    %v1731 = vld [vmem:[%s56 + $0x5d8] sm:$0xff]
    %v1732 = vld [vmem:[%s56 + $0x5e0] sm:$0xff]
    %v1733 = vld [vmem:[%s56 + $0x5e8] sm:$0xff]
    %v1734 = vld [vmem:[%s56 + $0x5f0] sm:$0xff]
    %v1735 = vld [vmem:[%s56 + $0x5f8] sm:$0xff]
    %1737 = vset.pattern.permute.xlu0 0
    %1738 = vperm.xlu0 %1737, %v1672
    %v1739 = vpop.permute.xlu0 %1738
    %1742 = vset.pattern.permute.xlu0 0
    %1743 = vperm.xlu0 %1742, %v1673
    %v1744 = vpop.permute.xlu0 %1743
    %1747 = vset.pattern.permute.xlu0 0
    %1748 = vperm.xlu0 %1747, %v1674
    %v1749 = vpop.permute.xlu0 %1748
    %1752 = vset.pattern.permute.xlu0 0
    %1753 = vperm.xlu0 %1752, %v1675
    %v1754 = vpop.permute.xlu0 %1753
    %1757 = vset.pattern.permute.xlu0 0
    %1758 = vperm.xlu0 %1757, %v1676
    %v1759 = vpop.permute.xlu0 %1758
    %1762 = vset.pattern.permute.xlu0 0
    %1763 = vperm.xlu0 %1762, %v1677
    %v1764 = vpop.permute.xlu0 %1763
    %1767 = vset.pattern.permute.xlu0 0
    %1768 = vperm.xlu0 %1767, %v1678
    %v1769 = vpop.permute.xlu0 %1768
    %1772 = vset.pattern.permute.xlu0 0
    %1773 = vperm.xlu0 %1772, %v1679
    %v1774 = vpop.permute.xlu0 %1773
    %1777 = vset.pattern.permute.xlu0 0
    %1778 = vperm.xlu0 %1777, %v1680
    %v1779 = vpop.permute.xlu0 %1778
    %1782 = vset.pattern.permute.xlu0 0
    %1783 = vperm.xlu0 %1782, %v1681
    %v1784 = vpop.permute.xlu0 %1783
    %1787 = vset.pattern.permute.xlu0 0
    %1788 = vperm.xlu0 %1787, %v1682
    %v1789 = vpop.permute.xlu0 %1788
    %1792 = vset.pattern.permute.xlu0 0
    %1793 = vperm.xlu0 %1792, %v1683
    %v1794 = vpop.permute.xlu0 %1793
    %1797 = vset.pattern.permute.xlu0 0
    %1798 = vperm.xlu0 %1797, %v1684
    %v1799 = vpop.permute.xlu0 %1798
    %1802 = vset.pattern.permute.xlu0 0
    %1803 = vperm.xlu0 %1802, %v1685
    %v1804 = vpop.permute.xlu0 %1803
    %1807 = vset.pattern.permute.xlu0 0
    %1808 = vperm.xlu0 %1807, %v1686
    %v1809 = vpop.permute.xlu0 %1808
    %1812 = vset.pattern.permute.xlu0 0
    %1813 = vperm.xlu0 %1812, %v1687
    %v1814 = vpop.permute.xlu0 %1813
    %1817 = vset.pattern.permute.xlu0 0
    %1818 = vperm.xlu0 %1817, %v1688
    %v1819 = vpop.permute.xlu0 %1818
    %1822 = vset.pattern.permute.xlu0 0
    %1823 = vperm.xlu0 %1822, %v1689
    %v1824 = vpop.permute.xlu0 %1823
    %1827 = vset.pattern.permute.xlu0 0
    %1828 = vperm.xlu0 %1827, %v1690
    %v1829 = vpop.permute.xlu0 %1828
    %1832 = vset.pattern.permute.xlu0 0
    %1833 = vperm.xlu0 %1832, %v1691
    %v1834 = vpop.permute.xlu0 %1833
    %1837 = vset.pattern.permute.xlu0 0
    %1838 = vperm.xlu0 %1837, %v1692
    %v1839 = vpop.permute.xlu0 %1838
    %1842 = vset.pattern.permute.xlu0 0
    %1843 = vperm.xlu0 %1842, %v1693
    %v1844 = vpop.permute.xlu0 %1843
    %1847 = vset.pattern.permute.xlu0 0
    %1848 = vperm.xlu0 %1847, %v1694
    %v1849 = vpop.permute.xlu0 %1848
    %1852 = vset.pattern.permute.xlu0 0
    %1853 = vperm.xlu0 %1852, %v1695
    %v1854 = vpop.permute.xlu0 %1853
    %1857 = vset.pattern.permute.xlu0 0
    %1858 = vperm.xlu0 %1857, %v1696
    %v1859 = vpop.permute.xlu0 %1858
    %1862 = vset.pattern.permute.xlu0 0
    %1863 = vperm.xlu0 %1862, %v1697
    %v1864 = vpop.permute.xlu0 %1863
    %1867 = vset.pattern.permute.xlu0 0
    %1868 = vperm.xlu0 %1867, %v1698
    %v1869 = vpop.permute.xlu0 %1868
    %1872 = vset.pattern.permute.xlu0 0
    %1873 = vperm.xlu0 %1872, %v1699
    %v1874 = vpop.permute.xlu0 %1873
    %1877 = vset.pattern.permute.xlu0 0
    %1878 = vperm.xlu0 %1877, %v1700
    %v1879 = vpop.permute.xlu0 %1878
    %1882 = vset.pattern.permute.xlu0 0
    %1883 = vperm.xlu0 %1882, %v1701
    %v1884 = vpop.permute.xlu0 %1883
    %1887 = vset.pattern.permute.xlu0 0
    %1888 = vperm.xlu0 %1887, %v1702
    %v1889 = vpop.permute.xlu0 %1888
    %1892 = vset.pattern.permute.xlu0 0
    %1893 = vperm.xlu0 %1892, %v1703
    %v1894 = vpop.permute.xlu0 %1893
    %1897 = vset.pattern.permute.xlu0 0
    %1898 = vperm.xlu0 %1897, %v1704
    %v1899 = vpop.permute.xlu0 %1898
    %1902 = vset.pattern.permute.xlu0 0
    %1903 = vperm.xlu0 %1902, %v1705
    %v1904 = vpop.permute.xlu0 %1903
    %1907 = vset.pattern.permute.xlu0 0
    %1908 = vperm.xlu0 %1907, %v1706
    %v1909 = vpop.permute.xlu0 %1908
    %1912 = vset.pattern.permute.xlu0 0
    %1913 = vperm.xlu0 %1912, %v1707
    %v1914 = vpop.permute.xlu0 %1913
    %1917 = vset.pattern.permute.xlu0 0
    %1918 = vperm.xlu0 %1917, %v1708
    %v1919 = vpop.permute.xlu0 %1918
    %1922 = vset.pattern.permute.xlu0 0
    %1923 = vperm.xlu0 %1922, %v1709
    %v1924 = vpop.permute.xlu0 %1923
    %1927 = vset.pattern.permute.xlu0 0
    %1928 = vperm.xlu0 %1927, %v1710
    %v1929 = vpop.permute.xlu0 %1928
    %1932 = vset.pattern.permute.xlu0 0
    %1933 = vperm.xlu0 %1932, %v1711
    %v1934 = vpop.permute.xlu0 %1933
    %1937 = vset.pattern.permute.xlu0 0
    %1938 = vperm.xlu0 %1937, %v1712
    %v1939 = vpop.permute.xlu0 %1938
    %1942 = vset.pattern.permute.xlu0 0
    %1943 = vperm.xlu0 %1942, %v1713
    %v1944 = vpop.permute.xlu0 %1943
    %1947 = vset.pattern.permute.xlu0 0
    %1948 = vperm.xlu0 %1947, %v1714
    %v1949 = vpop.permute.xlu0 %1948
    %1952 = vset.pattern.permute.xlu0 0
    %1953 = vperm.xlu0 %1952, %v1715
    %v1954 = vpop.permute.xlu0 %1953
    %1957 = vset.pattern.permute.xlu0 0
    %1958 = vperm.xlu0 %1957, %v1716
    %v1959 = vpop.permute.xlu0 %1958
    %1962 = vset.pattern.permute.xlu0 0
    %1963 = vperm.xlu0 %1962, %v1717
    %v1964 = vpop.permute.xlu0 %1963
    %1967 = vset.pattern.permute.xlu0 0
    %1968 = vperm.xlu0 %1967, %v1718
    %v1969 = vpop.permute.xlu0 %1968
    %1972 = vset.pattern.permute.xlu0 0
    %1973 = vperm.xlu0 %1972, %v1719
    %v1974 = vpop.permute.xlu0 %1973
    %1977 = vset.pattern.permute.xlu0 0
    %1978 = vperm.xlu0 %1977, %v1720
    %v1979 = vpop.permute.xlu0 %1978
    %1982 = vset.pattern.permute.xlu0 0
    %1983 = vperm.xlu0 %1982, %v1721
    %v1984 = vpop.permute.xlu0 %1983
    %1987 = vset.pattern.permute.xlu0 0
    %1988 = vperm.xlu0 %1987, %v1722
    %v1989 = vpop.permute.xlu0 %1988
    %1992 = vset.pattern.permute.xlu0 0
    %1993 = vperm.xlu0 %1992, %v1723
    %v1994 = vpop.permute.xlu0 %1993
    %1997 = vset.pattern.permute.xlu0 0
    %1998 = vperm.xlu0 %1997, %v1724
    %v1999 = vpop.permute.xlu0 %1998
    %2002 = vset.pattern.permute.xlu0 0
    %2003 = vperm.xlu0 %2002, %v1725
    %v2004 = vpop.permute.xlu0 %2003
    %2007 = vset.pattern.permute.xlu0 0
    %2008 = vperm.xlu0 %2007, %v1726
    %v2009 = vpop.permute.xlu0 %2008
    %2012 = vset.pattern.permute.xlu0 0
    %2013 = vperm.xlu0 %2012, %v1727
    %v2014 = vpop.permute.xlu0 %2013
    %2017 = vset.pattern.permute.xlu0 0
    %2018 = vperm.xlu0 %2017, %v1728
    %v2019 = vpop.permute.xlu0 %2018
    %2022 = vset.pattern.permute.xlu0 0
    %2023 = vperm.xlu0 %2022, %v1729
    %v2024 = vpop.permute.xlu0 %2023
    %2027 = vset.pattern.permute.xlu0 0
    %2028 = vperm.xlu0 %2027, %v1730
    %v2029 = vpop.permute.xlu0 %2028
    %2032 = vset.pattern.permute.xlu0 0
    %2033 = vperm.xlu0 %2032, %v1731
    %v2034 = vpop.permute.xlu0 %2033
    %2037 = vset.pattern.permute.xlu0 0
    %2038 = vperm.xlu0 %2037, %v1732
    %v2039 = vpop.permute.xlu0 %2038
    %2042 = vset.pattern.permute.xlu0 0
    %2043 = vperm.xlu0 %2042, %v1733
    %v2044 = vpop.permute.xlu0 %2043
    %2047 = vset.pattern.permute.xlu0 0
    %2048 = vperm.xlu0 %2047, %v1734
    %v2049 = vpop.permute.xlu0 %2048
    %2052 = vset.pattern.permute.xlu0 0
    %2053 = vperm.xlu0 %2052, %v1735
    %v2054 = vpop.permute.xlu0 %2053
    %v2056 = vsub.f32 %v1739, %v70
    %v2057 = vsub.f32 %v1744, %v70
    %v2058 = vsub.f32 %v1749, %v70
    %v2059 = vsub.f32 %v1754, %v70
    %v2060 = vsub.f32 %v1759, %v70
    %v2061 = vsub.f32 %v1764, %v70
    %v2062 = vsub.f32 %v1769, %v70
    %v2063 = vsub.f32 %v1774, %v70
    %v2064 = vsub.f32 %v1779, %v70
    %v2065 = vsub.f32 %v1784, %v70
    %v2066 = vsub.f32 %v1789, %v70
    %v2067 = vsub.f32 %v1794, %v70
    %v2068 = vsub.f32 %v1799, %v70
    %v2069 = vsub.f32 %v1804, %v70
    %v2070 = vsub.f32 %v1809, %v70
    %v2071 = vsub.f32 %v1814, %v70
    %v2072 = vsub.f32 %v1819, %v70
    %v2073 = vsub.f32 %v1824, %v70
    %v2074 = vsub.f32 %v1829, %v70
    %v2075 = vsub.f32 %v1834, %v70
    %v2076 = vsub.f32 %v1839, %v70
    %v2077 = vsub.f32 %v1844, %v70
    %v2078 = vsub.f32 %v1849, %v70
    %v2079 = vsub.f32 %v1854, %v70
    %v2080 = vsub.f32 %v1859, %v70
    %v2081 = vsub.f32 %v1864, %v70
    %v2082 = vsub.f32 %v1869, %v70
    %v2083 = vsub.f32 %v1874, %v70
    %v2084 = vsub.f32 %v1879, %v70
    %v2085 = vsub.f32 %v1884, %v70
    %v2086 = vsub.f32 %v1889, %v70
    %v2087 = vsub.f32 %v1894, %v70
    %v2088 = vsub.f32 %v1899, %v70
    %v2089 = vsub.f32 %v1904, %v70
    %v2090 = vsub.f32 %v1909, %v70
    %v2091 = vsub.f32 %v1914, %v70
    %v2092 = vsub.f32 %v1919, %v70
    %v2093 = vsub.f32 %v1924, %v70
    %v2094 = vsub.f32 %v1929, %v70
    %v2095 = vsub.f32 %v1934, %v70
    %v2096 = vsub.f32 %v1939, %v70
    %v2097 = vsub.f32 %v1944, %v70
    %v2098 = vsub.f32 %v1949, %v70
    %v2099 = vsub.f32 %v1954, %v70
    %v2100 = vsub.f32 %v1959, %v70
    %v2101 = vsub.f32 %v1964, %v70
    %v2102 = vsub.f32 %v1969, %v70
    %v2103 = vsub.f32 %v1974, %v70
    %v2104 = vsub.f32 %v1979, %v70
    %v2105 = vsub.f32 %v1984, %v70
    %v2106 = vsub.f32 %v1989, %v70
    %v2107 = vsub.f32 %v1994, %v70
    %v2108 = vsub.f32 %v1999, %v70
    %v2109 = vsub.f32 %v2004, %v70
    %v2110 = vsub.f32 %v2009, %v70
    %v2111 = vsub.f32 %v2014, %v70
    %v2112 = vsub.f32 %v2019, %v70
    %v2113 = vsub.f32 %v2024, %v70
    %v2114 = vsub.f32 %v2029, %v70
    %v2115 = vsub.f32 %v2034, %v70
    %v2116 = vsub.f32 %v2039, %v70
    %v2117 = vsub.f32 %v2044, %v70
    %v2118 = vsub.f32 %v2049, %v70
    %v2119 = vsub.f32 %v2054, %v70
    %v2120 = vmul.f32 %v2056, %v2056
    %v2121 = vmul.f32 %v2057, %v2057
    %v2122 = vmul.f32 %v2058, %v2058
    %v2123 = vmul.f32 %v2059, %v2059
    %v2124 = vmul.f32 %v2060, %v2060
    %v2125 = vmul.f32 %v2061, %v2061
    %v2126 = vmul.f32 %v2062, %v2062
    %v2127 = vmul.f32 %v2063, %v2063
    %v2128 = vmul.f32 %v2064, %v2064
    %v2129 = vmul.f32 %v2065, %v2065
    %v2130 = vmul.f32 %v2066, %v2066
    %v2131 = vmul.f32 %v2067, %v2067
    %v2132 = vmul.f32 %v2068, %v2068
    %v2133 = vmul.f32 %v2069, %v2069
    %v2134 = vmul.f32 %v2070, %v2070
    %v2135 = vmul.f32 %v2071, %v2071
    %v2136 = vmul.f32 %v2072, %v2072
    %v2137 = vmul.f32 %v2073, %v2073
    %v2138 = vmul.f32 %v2074, %v2074
    %v2139 = vmul.f32 %v2075, %v2075
    %v2140 = vmul.f32 %v2076, %v2076
    %v2141 = vmul.f32 %v2077, %v2077
    %v2142 = vmul.f32 %v2078, %v2078
    %v2143 = vmul.f32 %v2079, %v2079
    %v2144 = vmul.f32 %v2080, %v2080
    %v2145 = vmul.f32 %v2081, %v2081
    %v2146 = vmul.f32 %v2082, %v2082
    %v2147 = vmul.f32 %v2083, %v2083
    %v2148 = vmul.f32 %v2084, %v2084
    %v2149 = vmul.f32 %v2085, %v2085
    %v2150 = vmul.f32 %v2086, %v2086
    %v2151 = vmul.f32 %v2087, %v2087
    %v2152 = vmul.f32 %v2088, %v2088
    %v2153 = vmul.f32 %v2089, %v2089
    %v2154 = vmul.f32 %v2090, %v2090
    %v2155 = vmul.f32 %v2091, %v2091
    %v2156 = vmul.f32 %v2092, %v2092
    %v2157 = vmul.f32 %v2093, %v2093
    %v2158 = vmul.f32 %v2094, %v2094
    %v2159 = vmul.f32 %v2095, %v2095
    %v2160 = vmul.f32 %v2096, %v2096
    %v2161 = vmul.f32 %v2097, %v2097
    %v2162 = vmul.f32 %v2098, %v2098
    %v2163 = vmul.f32 %v2099, %v2099
    %v2164 = vmul.f32 %v2100, %v2100
    %v2165 = vmul.f32 %v2101, %v2101
    %v2166 = vmul.f32 %v2102, %v2102
    %v2167 = vmul.f32 %v2103, %v2103
    %v2168 = vmul.f32 %v2104, %v2104
    %v2169 = vmul.f32 %v2105, %v2105
    %v2170 = vmul.f32 %v2106, %v2106
    %v2171 = vmul.f32 %v2107, %v2107
    %v2172 = vmul.f32 %v2108, %v2108
    %v2173 = vmul.f32 %v2109, %v2109
    %v2174 = vmul.f32 %v2110, %v2110
    %v2175 = vmul.f32 %v2111, %v2111
    %v2176 = vmul.f32 %v2112, %v2112
    %v2177 = vmul.f32 %v2113, %v2113
    %v2178 = vmul.f32 %v2114, %v2114
    %v2179 = vmul.f32 %v2115, %v2115
    %v2180 = vmul.f32 %v2116, %v2116
    %v2181 = vmul.f32 %v2117, %v2117
    %v2182 = vmul.f32 %v2118, %v2118
    %v2183 = vmul.f32 %v2119, %v2119
    %v2184 = vsub.f32 0.0, %v2120
    %v2185 = vsub.f32 0.0, %v2121
    %v2186 = vsub.f32 0.0, %v2122
    %v2187 = vsub.f32 0.0, %v2123
    %v2188 = vsub.f32 0.0, %v2124
    %v2189 = vsub.f32 0.0, %v2125
    %v2190 = vsub.f32 0.0, %v2126
    %v2191 = vsub.f32 0.0, %v2127
    %v2192 = vsub.f32 0.0, %v2128
    %v2193 = vsub.f32 0.0, %v2129
    %v2194 = vsub.f32 0.0, %v2130
    %v2195 = vsub.f32 0.0, %v2131
    %v2196 = vsub.f32 0.0, %v2132
    %v2197 = vsub.f32 0.0, %v2133
    %v2198 = vsub.f32 0.0, %v2134
    %v2199 = vsub.f32 0.0, %v2135
    %v2200 = vsub.f32 0.0, %v2136
    %v2201 = vsub.f32 0.0, %v2137
    %v2202 = vsub.f32 0.0, %v2138
    %v2203 = vsub.f32 0.0, %v2139
    %v2204 = vsub.f32 0.0, %v2140
    %v2205 = vsub.f32 0.0, %v2141
    %v2206 = vsub.f32 0.0, %v2142
    %v2207 = vsub.f32 0.0, %v2143
    %v2208 = vsub.f32 0.0, %v2144
    %v2209 = vsub.f32 0.0, %v2145
    %v2210 = vsub.f32 0.0, %v2146
    %v2211 = vsub.f32 0.0, %v2147
    %v2212 = vsub.f32 0.0, %v2148
    %v2213 = vsub.f32 0.0, %v2149
    %v2214 = vsub.f32 0.0, %v2150
    %v2215 = vsub.f32 0.0, %v2151
    %v2216 = vsub.f32 0.0, %v2152
    %v2217 = vsub.f32 0.0, %v2153
    %v2218 = vsub.f32 0.0, %v2154
    %v2219 = vsub.f32 0.0, %v2155
    %v2220 = vsub.f32 0.0, %v2156
    %v2221 = vsub.f32 0.0, %v2157
    %v2222 = vsub.f32 0.0, %v2158
    %v2223 = vsub.f32 0.0, %v2159
    %v2224 = vsub.f32 0.0, %v2160
    %v2225 = vsub.f32 0.0, %v2161
    %v2226 = vsub.f32 0.0, %v2162
    %v2227 = vsub.f32 0.0, %v2163
    %v2228 = vsub.f32 0.0, %v2164
    %v2229 = vsub.f32 0.0, %v2165
    %v2230 = vsub.f32 0.0, %v2166
    %v2231 = vsub.f32 0.0, %v2167
    %v2232 = vsub.f32 0.0, %v2168
    %v2233 = vsub.f32 0.0, %v2169
    %v2234 = vsub.f32 0.0, %v2170
    %v2235 = vsub.f32 0.0, %v2171
    %v2236 = vsub.f32 0.0, %v2172
    %v2237 = vsub.f32 0.0, %v2173
    %v2238 = vsub.f32 0.0, %v2174
    %v2239 = vsub.f32 0.0, %v2175
    %v2240 = vsub.f32 0.0, %v2176
    %v2241 = vsub.f32 0.0, %v2177
    %v2242 = vsub.f32 0.0, %v2178
    %v2243 = vsub.f32 0.0, %v2179
    %v2244 = vsub.f32 0.0, %v2180
    %v2245 = vsub.f32 0.0, %v2181
    %v2246 = vsub.f32 0.0, %v2182
    %v2247 = vsub.f32 0.0, %v2183
    %v2248 = vpack.c.bf16 %v2185, %v2184
    %v2249 = vpack.c.bf16 %v2187, %v2186
    %v2250 = vpack.c.bf16 %v2189, %v2188
    %v2251 = vpack.c.bf16 %v2191, %v2190
    %v2252 = vpack.c.bf16 %v2193, %v2192
    %v2253 = vpack.c.bf16 %v2195, %v2194
    %v2254 = vpack.c.bf16 %v2197, %v2196
    %v2255 = vpack.c.bf16 %v2199, %v2198
    %v2256 = vpack.c.bf16 %v2201, %v2200
    %v2257 = vpack.c.bf16 %v2203, %v2202
    %v2258 = vpack.c.bf16 %v2205, %v2204
    %v2259 = vpack.c.bf16 %v2207, %v2206
    %v2260 = vpack.c.bf16 %v2209, %v2208
    %v2261 = vpack.c.bf16 %v2211, %v2210
    %v2262 = vpack.c.bf16 %v2213, %v2212
    %v2263 = vpack.c.bf16 %v2215, %v2214
    %v2264 = vpack.c.bf16 %v2217, %v2216
    %v2265 = vpack.c.bf16 %v2219, %v2218
    %v2266 = vpack.c.bf16 %v2221, %v2220
    %v2267 = vpack.c.bf16 %v2223, %v2222
    %v2268 = vpack.c.bf16 %v2225, %v2224
    %v2269 = vpack.c.bf16 %v2227, %v2226
    %v2270 = vpack.c.bf16 %v2229, %v2228
    %v2271 = vpack.c.bf16 %v2231, %v2230
    %v2272 = vpack.c.bf16 %v2233, %v2232
    %v2273 = vpack.c.bf16 %v2235, %v2234
    %v2274 = vpack.c.bf16 %v2237, %v2236
    %v2275 = vpack.c.bf16 %v2239, %v2238
    %v2276 = vpack.c.bf16 %v2241, %v2240
    %v2277 = vpack.c.bf16 %v2243, %v2242
    %v2278 = vpack.c.bf16 %v2245, %v2244
    %v2279 = vpack.c.bf16 %v2247, %v2246
    %v2281 = vmul.bf16 %v2248, 1069105081
    %v2282 = vpow.bf16.pop %v2281
    %v2284 = vmul.bf16 %v2249, 1069105081
    %v2285 = vpow.bf16.pop %v2284
    %v2287 = vmul.bf16 %v2250, 1069105081
    %v2288 = vpow.bf16.pop %v2287
    %v2290 = vmul.bf16 %v2251, 1069105081
    %v2291 = vpow.bf16.pop %v2290
    %v2293 = vmul.bf16 %v2252, 1069105081
    %v2294 = vpow.bf16.pop %v2293
    %v2296 = vmul.bf16 %v2253, 1069105081
    %v2297 = vpow.bf16.pop %v2296
    %v2299 = vmul.bf16 %v2254, 1069105081
    %v2300 = vpow.bf16.pop %v2299
    %v2302 = vmul.bf16 %v2255, 1069105081
    %v2303 = vpow.bf16.pop %v2302
    %v2305 = vmul.bf16 %v2256, 1069105081
    %v2306 = vpow.bf16.pop %v2305
    %v2308 = vmul.bf16 %v2257, 1069105081
    %v2309 = vpow.bf16.pop %v2308
    %v2311 = vmul.bf16 %v2258, 1069105081
    %v2312 = vpow.bf16.pop %v2311
    %v2314 = vmul.bf16 %v2259, 1069105081
    %v2315 = vpow.bf16.pop %v2314
    %v2317 = vmul.bf16 %v2260, 1069105081
    %v2318 = vpow.bf16.pop %v2317
    %v2320 = vmul.bf16 %v2261, 1069105081
    %v2321 = vpow.bf16.pop %v2320
    %v2323 = vmul.bf16 %v2262, 1069105081
    %v2324 = vpow.bf16.pop %v2323
    %v2326 = vmul.bf16 %v2263, 1069105081
    %v2327 = vpow.bf16.pop %v2326
    %v2329 = vmul.bf16 %v2264, 1069105081
    %v2330 = vpow.bf16.pop %v2329
    %v2332 = vmul.bf16 %v2265, 1069105081
    %v2333 = vpow.bf16.pop %v2332
    %v2335 = vmul.bf16 %v2266, 1069105081
    %v2336 = vpow.bf16.pop %v2335
    %v2338 = vmul.bf16 %v2267, 1069105081
    %v2339 = vpow.bf16.pop %v2338
    %v2341 = vmul.bf16 %v2268, 1069105081
    %v2342 = vpow.bf16.pop %v2341
    %v2344 = vmul.bf16 %v2269, 1069105081
    %v2345 = vpow.bf16.pop %v2344
    %v2347 = vmul.bf16 %v2270, 1069105081
    %v2348 = vpow.bf16.pop %v2347
    %v2350 = vmul.bf16 %v2271, 1069105081
    %v2351 = vpow.bf16.pop %v2350
    %v2353 = vmul.bf16 %v2272, 1069105081
    %v2354 = vpow.bf16.pop %v2353
    %v2356 = vmul.bf16 %v2273, 1069105081
    %v2357 = vpow.bf16.pop %v2356
    %v2359 = vmul.bf16 %v2274, 1069105081
    %v2360 = vpow.bf16.pop %v2359
    %v2362 = vmul.bf16 %v2275, 1069105081
    %v2363 = vpow.bf16.pop %v2362
    %v2365 = vmul.bf16 %v2276, 1069105081
    %v2366 = vpow.bf16.pop %v2365
    %v2368 = vmul.bf16 %v2277, 1069105081
    %v2369 = vpow.bf16.pop %v2368
    %v2371 = vmul.bf16 %v2278, 1069105081
    %v2372 = vpow.bf16.pop %v2371
    %v2374 = vmul.bf16 %v2279, 1069105081
    %v2375 = vpow.bf16.pop %v2374
    %v2376 = vld [vmem:[%s48 + $0x20] sm:$0xff]
    %v2377 = vld [vmem:[%s48 + $0x28] sm:$0xff]
    %v2380 = vunpack.c.l.b16 %v2376
    %v2381 = vunpack.c.h.b16 %v2376
    %v2382 = vunpack.c.l.b16 %v2377
    %v2383 = vunpack.c.h.b16 %v2377
    %v2384 = vpack.c.b16 %v2380, %v2380
    %v2385 = vpack.c.b16 %v2381, %v2381
    %v2386 = vpack.c.b16 %v2382, %v2382
    %v2387 = vpack.c.b16 %v2383, %v2383
    %2392 = vmatprep.subr.bf16.mxu0 0
    %2393 = vmatpush1.bf16.msra.mxu0 %v2282
    %2394 = vmatprep.subr.bf16.mxu0 0
    %2395 = vmatpush1.bf16.msra.mxu0 %v2285
    %2396 = vmatprep.subr.bf16.mxu0 0
    %2397 = vmatpush1.bf16.msra.mxu0 %v2288
    %2398 = vmatprep.subr.bf16.mxu0 0
    %2399 = vmatpush1.bf16.msra.mxu0 %v2291
    %2400 = vmatprep.subr.bf16.mxu0 0
    %2401 = vmatpush1.bf16.msra.mxu0 %v2294
    %2402 = vmatprep.subr.bf16.mxu0 0
    %2403 = vmatpush1.bf16.msra.mxu0 %v2297
    %2404 = vmatprep.subr.bf16.mxu0 0
    %2405 = vmatpush1.bf16.msra.mxu0 %v2300
    %2406 = vmatprep.subr.bf16.mxu0 0
    %2407 = vmatpush1.bf16.msra.mxu0 %v2303
    %2408 = vmatprep.subr.bf16.mxu0 0
    %2409 = vmatpush1.bf16.msra.mxu0 %v2306
    %2410 = vmatprep.subr.bf16.mxu0 0
    %2411 = vmatpush1.bf16.msra.mxu0 %v2309
    %2412 = vmatprep.subr.bf16.mxu0 0
    %2413 = vmatpush1.bf16.msra.mxu0 %v2312
    %2414 = vmatprep.subr.bf16.mxu0 0
    %2415 = vmatpush1.bf16.msra.mxu0 %v2315
    %2416 = vmatprep.subr.bf16.mxu0 0
    %2417 = vmatpush1.bf16.msra.mxu0 %v2318
    %2418 = vmatprep.subr.bf16.mxu0 0
    %2419 = vmatpush1.bf16.msra.mxu0 %v2321
    %2420 = vmatprep.subr.bf16.mxu0 0
    %2421 = vmatpush1.bf16.msra.mxu0 %v2324
    %2422 = vmatprep.subr.bf16.mxu0 0
    %2423 = vmatpush1.bf16.msra.mxu0 %v2327
    %2424 = vmatprep.mubr.bf16.mxu0 %v2385
    %2425 = vmatmul.mubr.bf16.gmra.mrb[0].mxu0 %v2384
    %v2426 = vpop.f32.mrb[0].mxu0
    %v2427 = vadd.f32 0.0, %v2426
    %v2428 = vpop.f32.mrb[0].mxu0
    %v2429 = vpop.f32.mrb[0].mxu0
    %v2430 = vpop.f32.mrb[0].mxu0
    %2431 = vdwg.mxu0
    %2432 = vmatprep.subr.bf16.mxu0 0
    %2433 = vmatpush1.bf16.msra.mxu0 %v2330
    %2434 = vmatprep.subr.bf16.mxu0 0
    %2435 = vmatpush1.bf16.msra.mxu0 %v2333
    %2436 = vmatprep.subr.bf16.mxu0 0
    %2437 = vmatpush1.bf16.msra.mxu0 %v2336
    %2438 = vmatprep.subr.bf16.mxu0 0
    %2439 = vmatpush1.bf16.msra.mxu0 %v2339
    %2440 = vmatprep.subr.bf16.mxu0 0
    %2441 = vmatpush1.bf16.msra.mxu0 %v2342
    %2442 = vmatprep.subr.bf16.mxu0 0
    %2443 = vmatpush1.bf16.msra.mxu0 %v2345
    %2444 = vmatprep.subr.bf16.mxu0 0
    %2445 = vmatpush1.bf16.msra.mxu0 %v2348
    %2446 = vmatprep.subr.bf16.mxu0 0
    %2447 = vmatpush1.bf16.msra.mxu0 %v2351
    %2448 = vmatprep.subr.bf16.mxu0 0
    %2449 = vmatpush1.bf16.msra.mxu0 %v2354
    %2450 = vmatprep.subr.bf16.mxu0 0
    %2451 = vmatpush1.bf16.msra.mxu0 %v2357
    %2452 = vmatprep.subr.bf16.mxu0 0
    %2453 = vmatpush1.bf16.msra.mxu0 %v2360
    %2454 = vmatprep.subr.bf16.mxu0 0
    %2455 = vmatpush1.bf16.msra.mxu0 %v2363
    %2456 = vmatprep.subr.bf16.mxu0 0
    %2457 = vmatpush1.bf16.msra.mxu0 %v2366
    %2458 = vmatprep.subr.bf16.mxu0 0
    %2459 = vmatpush1.bf16.msra.mxu0 %v2369
    %2460 = vmatprep.subr.bf16.mxu0 0
    %2461 = vmatpush1.bf16.msra.mxu0 %v2372
    %2462 = vmatprep.subr.bf16.mxu0 0
    %2463 = vmatpush1.bf16.msra.mxu0 %v2375
    %2464 = vmatprep.mubr.bf16.mxu0 %v2387
    %2465 = vmatmul.mubr.bf16.gmra.mrb[0].mxu0 %v2386
    %v2466 = vpop.f32.mrb[0].mxu0
    %v2467 = vadd.f32 %v2427, %v2466
    %v2468 = vpop.f32.mrb[0].mxu0
    %v2469 = vpop.f32.mrb[0].mxu0
    %v2470 = vpop.f32.mrb[0].mxu0
    %2471 = vdwg.mxu0
    %v2472 = vadd.f32 %v1667, %v2467
    %v2473 = vld [vmem:[%s56 + $0x600] sm:$0xff]
    %v2474 = vld [vmem:[%s56 + $0x608] sm:$0xff]
    %v2475 = vld [vmem:[%s56 + $0x610] sm:$0xff]
    %v2476 = vld [vmem:[%s56 + $0x618] sm:$0xff]
    %v2477 = vld [vmem:[%s56 + $0x620] sm:$0xff]
    %v2478 = vld [vmem:[%s56 + $0x628] sm:$0xff]
    %v2479 = vld [vmem:[%s56 + $0x630] sm:$0xff]
    %v2480 = vld [vmem:[%s56 + $0x638] sm:$0xff]
    %v2481 = vld [vmem:[%s56 + $0x640] sm:$0xff]
    %v2482 = vld [vmem:[%s56 + $0x648] sm:$0xff]
    %v2483 = vld [vmem:[%s56 + $0x650] sm:$0xff]
    %v2484 = vld [vmem:[%s56 + $0x658] sm:$0xff]
    %v2485 = vld [vmem:[%s56 + $0x660] sm:$0xff]
    %v2486 = vld [vmem:[%s56 + $0x668] sm:$0xff]
    %v2487 = vld [vmem:[%s56 + $0x670] sm:$0xff]
    %v2488 = vld [vmem:[%s56 + $0x678] sm:$0xff]
    %v2489 = vld [vmem:[%s56 + $0x680] sm:$0xff]
    %v2490 = vld [vmem:[%s56 + $0x688] sm:$0xff]
    %v2491 = vld [vmem:[%s56 + $0x690] sm:$0xff]
    %v2492 = vld [vmem:[%s56 + $0x698] sm:$0xff]
    %v2493 = vld [vmem:[%s56 + $0x6a0] sm:$0xff]
    %v2494 = vld [vmem:[%s56 + $0x6a8] sm:$0xff]
    %v2495 = vld [vmem:[%s56 + $0x6b0] sm:$0xff]
    %v2496 = vld [vmem:[%s56 + $0x6b8] sm:$0xff]
    %v2497 = vld [vmem:[%s56 + $0x6c0] sm:$0xff]
    %v2498 = vld [vmem:[%s56 + $0x6c8] sm:$0xff]
    %v2499 = vld [vmem:[%s56 + $0x6d0] sm:$0xff]
    %v2500 = vld [vmem:[%s56 + $0x6d8] sm:$0xff]
    %v2501 = vld [vmem:[%s56 + $0x6e0] sm:$0xff]
    %v2502 = vld [vmem:[%s56 + $0x6e8] sm:$0xff]
    %v2503 = vld [vmem:[%s56 + $0x6f0] sm:$0xff]
    %v2504 = vld [vmem:[%s56 + $0x6f8] sm:$0xff]
    %v2505 = vld [vmem:[%s56 + $0x700] sm:$0xff]
    %v2506 = vld [vmem:[%s56 + $0x708] sm:$0xff]
    %v2507 = vld [vmem:[%s56 + $0x710] sm:$0xff]
    %v2508 = vld [vmem:[%s56 + $0x718] sm:$0xff]
    %v2509 = vld [vmem:[%s56 + $0x720] sm:$0xff]
    %v2510 = vld [vmem:[%s56 + $0x728] sm:$0xff]
    %v2511 = vld [vmem:[%s56 + $0x730] sm:$0xff]
    %v2512 = vld [vmem:[%s56 + $0x738] sm:$0xff]
    %v2513 = vld [vmem:[%s56 + $0x740] sm:$0xff]
    %v2514 = vld [vmem:[%s56 + $0x748] sm:$0xff]
    %v2515 = vld [vmem:[%s56 + $0x750] sm:$0xff]
    %v2516 = vld [vmem:[%s56 + $0x758] sm:$0xff]
    %v2517 = vld [vmem:[%s56 + $0x760] sm:$0xff]
    %v2518 = vld [vmem:[%s56 + $0x768] sm:$0xff]
    %v2519 = vld [vmem:[%s56 + $0x770] sm:$0xff]
    %v2520 = vld [vmem:[%s56 + $0x778] sm:$0xff]
    %v2521 = vld [vmem:[%s56 + $0x780] sm:$0xff]
    %v2522 = vld [vmem:[%s56 + $0x788] sm:$0xff]
    %v2523 = vld [vmem:[%s56 + $0x790] sm:$0xff]
    %v2524 = vld [vmem:[%s56 + $0x798] sm:$0xff]
    %v2525 = vld [vmem:[%s56 + $0x7a0] sm:$0xff]
    %v2526 = vld [vmem:[%s56 + $0x7a8] sm:$0xff]
    %v2527 = vld [vmem:[%s56 + $0x7b0] sm:$0xff]
    %v2528 = vld [vmem:[%s56 + $0x7b8] sm:$0xff]
    %v2529 = vld [vmem:[%s56 + $0x7c0] sm:$0xff]
    %v2530 = vld [vmem:[%s56 + $0x7c8] sm:$0xff]
    %v2531 = vld [vmem:[%s56 + $0x7d0] sm:$0xff]
    %v2532 = vld [vmem:[%s56 + $0x7d8] sm:$0xff]
    %v2533 = vld [vmem:[%s56 + $0x7e0] sm:$0xff]
    %v2534 = vld [vmem:[%s56 + $0x7e8] sm:$0xff]
    %v2535 = vld [vmem:[%s56 + $0x7f0] sm:$0xff]
    %v2536 = vld [vmem:[%s56 + $0x7f8] sm:$0xff]
    %2538 = vset.pattern.permute.xlu0 0
    %2539 = vperm.xlu0 %2538, %v2473
    %v2540 = vpop.permute.xlu0 %2539
    %2543 = vset.pattern.permute.xlu0 0
    %2544 = vperm.xlu0 %2543, %v2474
    %v2545 = vpop.permute.xlu0 %2544
    %2548 = vset.pattern.permute.xlu0 0
    %2549 = vperm.xlu0 %2548, %v2475
    %v2550 = vpop.permute.xlu0 %2549
    %2553 = vset.pattern.permute.xlu0 0
    %2554 = vperm.xlu0 %2553, %v2476
    %v2555 = vpop.permute.xlu0 %2554
    %2558 = vset.pattern.permute.xlu0 0
    %2559 = vperm.xlu0 %2558, %v2477
    %v2560 = vpop.permute.xlu0 %2559
    %2563 = vset.pattern.permute.xlu0 0
    %2564 = vperm.xlu0 %2563, %v2478
    %v2565 = vpop.permute.xlu0 %2564
    %2568 = vset.pattern.permute.xlu0 0
    %2569 = vperm.xlu0 %2568, %v2479
    %v2570 = vpop.permute.xlu0 %2569
    %2573 = vset.pattern.permute.xlu0 0
    %2574 = vperm.xlu0 %2573, %v2480
    %v2575 = vpop.permute.xlu0 %2574
    %2578 = vset.pattern.permute.xlu0 0
    %2579 = vperm.xlu0 %2578, %v2481
    %v2580 = vpop.permute.xlu0 %2579
    %2583 = vset.pattern.permute.xlu0 0
    %2584 = vperm.xlu0 %2583, %v2482
    %v2585 = vpop.permute.xlu0 %2584
    %2588 = vset.pattern.permute.xlu0 0
    %2589 = vperm.xlu0 %2588, %v2483
    %v2590 = vpop.permute.xlu0 %2589
    %2593 = vset.pattern.permute.xlu0 0
    %2594 = vperm.xlu0 %2593, %v2484
    %v2595 = vpop.permute.xlu0 %2594
    %2598 = vset.pattern.permute.xlu0 0
    %2599 = vperm.xlu0 %2598, %v2485
    %v2600 = vpop.permute.xlu0 %2599
    %2603 = vset.pattern.permute.xlu0 0
    %2604 = vperm.xlu0 %2603, %v2486
    %v2605 = vpop.permute.xlu0 %2604
    %2608 = vset.pattern.permute.xlu0 0
    %2609 = vperm.xlu0 %2608, %v2487
    %v2610 = vpop.permute.xlu0 %2609
    %2613 = vset.pattern.permute.xlu0 0
    %2614 = vperm.xlu0 %2613, %v2488
    %v2615 = vpop.permute.xlu0 %2614
    %2618 = vset.pattern.permute.xlu0 0
    %2619 = vperm.xlu0 %2618, %v2489
    %v2620 = vpop.permute.xlu0 %2619
    %2623 = vset.pattern.permute.xlu0 0
    %2624 = vperm.xlu0 %2623, %v2490
    %v2625 = vpop.permute.xlu0 %2624
    %2628 = vset.pattern.permute.xlu0 0
    %2629 = vperm.xlu0 %2628, %v2491
    %v2630 = vpop.permute.xlu0 %2629
    %2633 = vset.pattern.permute.xlu0 0
    %2634 = vperm.xlu0 %2633, %v2492
    %v2635 = vpop.permute.xlu0 %2634
    %2638 = vset.pattern.permute.xlu0 0
    %2639 = vperm.xlu0 %2638, %v2493
    %v2640 = vpop.permute.xlu0 %2639
    %2643 = vset.pattern.permute.xlu0 0
    %2644 = vperm.xlu0 %2643, %v2494
    %v2645 = vpop.permute.xlu0 %2644
    %2648 = vset.pattern.permute.xlu0 0
    %2649 = vperm.xlu0 %2648, %v2495
    %v2650 = vpop.permute.xlu0 %2649
    %2653 = vset.pattern.permute.xlu0 0
    %2654 = vperm.xlu0 %2653, %v2496
    %v2655 = vpop.permute.xlu0 %2654
    %2658 = vset.pattern.permute.xlu0 0
    %2659 = vperm.xlu0 %2658, %v2497
    %v2660 = vpop.permute.xlu0 %2659
    %2663 = vset.pattern.permute.xlu0 0
    %2664 = vperm.xlu0 %2663, %v2498
    %v2665 = vpop.permute.xlu0 %2664
    %2668 = vset.pattern.permute.xlu0 0
    %2669 = vperm.xlu0 %2668, %v2499
    %v2670 = vpop.permute.xlu0 %2669
    %2673 = vset.pattern.permute.xlu0 0
    %2674 = vperm.xlu0 %2673, %v2500
    %v2675 = vpop.permute.xlu0 %2674
    %2678 = vset.pattern.permute.xlu0 0
    %2679 = vperm.xlu0 %2678, %v2501
    %v2680 = vpop.permute.xlu0 %2679
    %2683 = vset.pattern.permute.xlu0 0
    %2684 = vperm.xlu0 %2683, %v2502
    %v2685 = vpop.permute.xlu0 %2684
    %2688 = vset.pattern.permute.xlu0 0
    %2689 = vperm.xlu0 %2688, %v2503
    %v2690 = vpop.permute.xlu0 %2689
    %2693 = vset.pattern.permute.xlu0 0
    %2694 = vperm.xlu0 %2693, %v2504
    %v2695 = vpop.permute.xlu0 %2694
    %2698 = vset.pattern.permute.xlu0 0
    %2699 = vperm.xlu0 %2698, %v2505
    %v2700 = vpop.permute.xlu0 %2699
    %2703 = vset.pattern.permute.xlu0 0
    %2704 = vperm.xlu0 %2703, %v2506
    %v2705 = vpop.permute.xlu0 %2704
    %2708 = vset.pattern.permute.xlu0 0
    %2709 = vperm.xlu0 %2708, %v2507
    %v2710 = vpop.permute.xlu0 %2709
    %2713 = vset.pattern.permute.xlu0 0
    %2714 = vperm.xlu0 %2713, %v2508
    %v2715 = vpop.permute.xlu0 %2714
    %2718 = vset.pattern.permute.xlu0 0
    %2719 = vperm.xlu0 %2718, %v2509
    %v2720 = vpop.permute.xlu0 %2719
    %2723 = vset.pattern.permute.xlu0 0
    %2724 = vperm.xlu0 %2723, %v2510
    %v2725 = vpop.permute.xlu0 %2724
    %2728 = vset.pattern.permute.xlu0 0
    %2729 = vperm.xlu0 %2728, %v2511
    %v2730 = vpop.permute.xlu0 %2729
    %2733 = vset.pattern.permute.xlu0 0
    %2734 = vperm.xlu0 %2733, %v2512
    %v2735 = vpop.permute.xlu0 %2734
    %2738 = vset.pattern.permute.xlu0 0
    %2739 = vperm.xlu0 %2738, %v2513
    %v2740 = vpop.permute.xlu0 %2739
    %2743 = vset.pattern.permute.xlu0 0
    %2744 = vperm.xlu0 %2743, %v2514
    %v2745 = vpop.permute.xlu0 %2744
    %2748 = vset.pattern.permute.xlu0 0
    %2749 = vperm.xlu0 %2748, %v2515
    %v2750 = vpop.permute.xlu0 %2749
    %2753 = vset.pattern.permute.xlu0 0
    %2754 = vperm.xlu0 %2753, %v2516
    %v2755 = vpop.permute.xlu0 %2754
    %2758 = vset.pattern.permute.xlu0 0
    %2759 = vperm.xlu0 %2758, %v2517
    %v2760 = vpop.permute.xlu0 %2759
    %2763 = vset.pattern.permute.xlu0 0
    %2764 = vperm.xlu0 %2763, %v2518
    %v2765 = vpop.permute.xlu0 %2764
    %2768 = vset.pattern.permute.xlu0 0
    %2769 = vperm.xlu0 %2768, %v2519
    %v2770 = vpop.permute.xlu0 %2769
    %2773 = vset.pattern.permute.xlu0 0
    %2774 = vperm.xlu0 %2773, %v2520
    %v2775 = vpop.permute.xlu0 %2774
    %2778 = vset.pattern.permute.xlu0 0
    %2779 = vperm.xlu0 %2778, %v2521
    %v2780 = vpop.permute.xlu0 %2779
    %2783 = vset.pattern.permute.xlu0 0
    %2784 = vperm.xlu0 %2783, %v2522
    %v2785 = vpop.permute.xlu0 %2784
    %2788 = vset.pattern.permute.xlu0 0
    %2789 = vperm.xlu0 %2788, %v2523
    %v2790 = vpop.permute.xlu0 %2789
    %2793 = vset.pattern.permute.xlu0 0
    %2794 = vperm.xlu0 %2793, %v2524
    %v2795 = vpop.permute.xlu0 %2794
    %2798 = vset.pattern.permute.xlu0 0
    %2799 = vperm.xlu0 %2798, %v2525
    %v2800 = vpop.permute.xlu0 %2799
    %2803 = vset.pattern.permute.xlu0 0
    %2804 = vperm.xlu0 %2803, %v2526
    %v2805 = vpop.permute.xlu0 %2804
    %2808 = vset.pattern.permute.xlu0 0
    %2809 = vperm.xlu0 %2808, %v2527
    %v2810 = vpop.permute.xlu0 %2809
    %2813 = vset.pattern.permute.xlu0 0
    %2814 = vperm.xlu0 %2813, %v2528
    %v2815 = vpop.permute.xlu0 %2814
    %2818 = vset.pattern.permute.xlu0 0
    %2819 = vperm.xlu0 %2818, %v2529
    %v2820 = vpop.permute.xlu0 %2819
    %2823 = vset.pattern.permute.xlu0 0
    %2824 = vperm.xlu0 %2823, %v2530
    %v2825 = vpop.permute.xlu0 %2824
    %2828 = vset.pattern.permute.xlu0 0
    %2829 = vperm.xlu0 %2828, %v2531
    %v2830 = vpop.permute.xlu0 %2829
    %2833 = vset.pattern.permute.xlu0 0
    %2834 = vperm.xlu0 %2833, %v2532
    %v2835 = vpop.permute.xlu0 %2834
    %2838 = vset.pattern.permute.xlu0 0
    %2839 = vperm.xlu0 %2838, %v2533
    %v2840 = vpop.permute.xlu0 %2839
    %2843 = vset.pattern.permute.xlu0 0
    %2844 = vperm.xlu0 %2843, %v2534
    %v2845 = vpop.permute.xlu0 %2844
    %2848 = vset.pattern.permute.xlu0 0
    %2849 = vperm.xlu0 %2848, %v2535
    %v2850 = vpop.permute.xlu0 %2849
    %2853 = vset.pattern.permute.xlu0 0
    %2854 = vperm.xlu0 %2853, %v2536
    %v2855 = vpop.permute.xlu0 %2854
    %v2857 = vsub.f32 %v2540, %v70
    %v2858 = vsub.f32 %v2545, %v70
    %v2859 = vsub.f32 %v2550, %v70
    %v2860 = vsub.f32 %v2555, %v70
    %v2861 = vsub.f32 %v2560, %v70
    %v2862 = vsub.f32 %v2565, %v70
    %v2863 = vsub.f32 %v2570, %v70
    %v2864 = vsub.f32 %v2575, %v70
    %v2865 = vsub.f32 %v2580, %v70
    %v2866 = vsub.f32 %v2585, %v70
    %v2867 = vsub.f32 %v2590, %v70
    %v2868 = vsub.f32 %v2595, %v70
    %v2869 = vsub.f32 %v2600, %v70
    %v2870 = vsub.f32 %v2605, %v70
    %v2871 = vsub.f32 %v2610, %v70
    %v2872 = vsub.f32 %v2615, %v70
    %v2873 = vsub.f32 %v2620, %v70
    %v2874 = vsub.f32 %v2625, %v70
    %v2875 = vsub.f32 %v2630, %v70
    %v2876 = vsub.f32 %v2635, %v70
    %v2877 = vsub.f32 %v2640, %v70
    %v2878 = vsub.f32 %v2645, %v70
    %v2879 = vsub.f32 %v2650, %v70
    %v2880 = vsub.f32 %v2655, %v70
    %v2881 = vsub.f32 %v2660, %v70
    %v2882 = vsub.f32 %v2665, %v70
    %v2883 = vsub.f32 %v2670, %v70
    %v2884 = vsub.f32 %v2675, %v70
    %v2885 = vsub.f32 %v2680, %v70
    %v2886 = vsub.f32 %v2685, %v70
    %v2887 = vsub.f32 %v2690, %v70
    %v2888 = vsub.f32 %v2695, %v70
    %v2889 = vsub.f32 %v2700, %v70
    %v2890 = vsub.f32 %v2705, %v70
    %v2891 = vsub.f32 %v2710, %v70
    %v2892 = vsub.f32 %v2715, %v70
    %v2893 = vsub.f32 %v2720, %v70
    %v2894 = vsub.f32 %v2725, %v70
    %v2895 = vsub.f32 %v2730, %v70
    %v2896 = vsub.f32 %v2735, %v70
    %v2897 = vsub.f32 %v2740, %v70
    %v2898 = vsub.f32 %v2745, %v70
    %v2899 = vsub.f32 %v2750, %v70
    %v2900 = vsub.f32 %v2755, %v70
    %v2901 = vsub.f32 %v2760, %v70
    %v2902 = vsub.f32 %v2765, %v70
    %v2903 = vsub.f32 %v2770, %v70
    %v2904 = vsub.f32 %v2775, %v70
    %v2905 = vsub.f32 %v2780, %v70
    %v2906 = vsub.f32 %v2785, %v70
    %v2907 = vsub.f32 %v2790, %v70
    %v2908 = vsub.f32 %v2795, %v70
    %v2909 = vsub.f32 %v2800, %v70
    %v2910 = vsub.f32 %v2805, %v70
    %v2911 = vsub.f32 %v2810, %v70
    %v2912 = vsub.f32 %v2815, %v70
    %v2913 = vsub.f32 %v2820, %v70
    %v2914 = vsub.f32 %v2825, %v70
    %v2915 = vsub.f32 %v2830, %v70
    %v2916 = vsub.f32 %v2835, %v70
    %v2917 = vsub.f32 %v2840, %v70
    %v2918 = vsub.f32 %v2845, %v70
    %v2919 = vsub.f32 %v2850, %v70
    %v2920 = vsub.f32 %v2855, %v70
    %v2921 = vmul.f32 %v2857, %v2857
    %v2922 = vmul.f32 %v2858, %v2858
    %v2923 = vmul.f32 %v2859, %v2859
    %v2924 = vmul.f32 %v2860, %v2860
    %v2925 = vmul.f32 %v2861, %v2861
    %v2926 = vmul.f32 %v2862, %v2862
    %v2927 = vmul.f32 %v2863, %v2863
    %v2928 = vmul.f32 %v2864, %v2864
    %v2929 = vmul.f32 %v2865, %v2865
    %v2930 = vmul.f32 %v2866, %v2866
    %v2931 = vmul.f32 %v2867, %v2867
    %v2932 = vmul.f32 %v2868, %v2868
    %v2933 = vmul.f32 %v2869, %v2869
    %v2934 = vmul.f32 %v2870, %v2870
    %v2935 = vmul.f32 %v2871, %v2871
    %v2936 = vmul.f32 %v2872, %v2872
    %v2937 = vmul.f32 %v2873, %v2873
    %v2938 = vmul.f32 %v2874, %v2874
    %v2939 = vmul.f32 %v2875, %v2875
    %v2940 = vmul.f32 %v2876, %v2876
    %v2941 = vmul.f32 %v2877, %v2877
    %v2942 = vmul.f32 %v2878, %v2878
    %v2943 = vmul.f32 %v2879, %v2879
    %v2944 = vmul.f32 %v2880, %v2880
    %v2945 = vmul.f32 %v2881, %v2881
    %v2946 = vmul.f32 %v2882, %v2882
    %v2947 = vmul.f32 %v2883, %v2883
    %v2948 = vmul.f32 %v2884, %v2884
    %v2949 = vmul.f32 %v2885, %v2885
    %v2950 = vmul.f32 %v2886, %v2886
    %v2951 = vmul.f32 %v2887, %v2887
    %v2952 = vmul.f32 %v2888, %v2888
    %v2953 = vmul.f32 %v2889, %v2889
    %v2954 = vmul.f32 %v2890, %v2890
    %v2955 = vmul.f32 %v2891, %v2891
    %v2956 = vmul.f32 %v2892, %v2892
    %v2957 = vmul.f32 %v2893, %v2893
    %v2958 = vmul.f32 %v2894, %v2894
    %v2959 = vmul.f32 %v2895, %v2895
    %v2960 = vmul.f32 %v2896, %v2896
    %v2961 = vmul.f32 %v2897, %v2897
    %v2962 = vmul.f32 %v2898, %v2898
    %v2963 = vmul.f32 %v2899, %v2899
    %v2964 = vmul.f32 %v2900, %v2900
    %v2965 = vmul.f32 %v2901, %v2901
    %v2966 = vmul.f32 %v2902, %v2902
    %v2967 = vmul.f32 %v2903, %v2903
    %v2968 = vmul.f32 %v2904, %v2904
    %v2969 = vmul.f32 %v2905, %v2905
    %v2970 = vmul.f32 %v2906, %v2906
    %v2971 = vmul.f32 %v2907, %v2907
    %v2972 = vmul.f32 %v2908, %v2908
    %v2973 = vmul.f32 %v2909, %v2909
    %v2974 = vmul.f32 %v2910, %v2910
    %v2975 = vmul.f32 %v2911, %v2911
    %v2976 = vmul.f32 %v2912, %v2912
    %v2977 = vmul.f32 %v2913, %v2913
    %v2978 = vmul.f32 %v2914, %v2914
    %v2979 = vmul.f32 %v2915, %v2915
    %v2980 = vmul.f32 %v2916, %v2916
    %v2981 = vmul.f32 %v2917, %v2917
    %v2982 = vmul.f32 %v2918, %v2918
    %v2983 = vmul.f32 %v2919, %v2919
    %v2984 = vmul.f32 %v2920, %v2920
    %v2985 = vsub.f32 0.0, %v2921
    %v2986 = vsub.f32 0.0, %v2922
    %v2987 = vsub.f32 0.0, %v2923
    %v2988 = vsub.f32 0.0, %v2924
    %v2989 = vsub.f32 0.0, %v2925
    %v2990 = vsub.f32 0.0, %v2926
    %v2991 = vsub.f32 0.0, %v2927
    %v2992 = vsub.f32 0.0, %v2928
    %v2993 = vsub.f32 0.0, %v2929
    %v2994 = vsub.f32 0.0, %v2930
    %v2995 = vsub.f32 0.0, %v2931
    %v2996 = vsub.f32 0.0, %v2932
    %v2997 = vsub.f32 0.0, %v2933
    %v2998 = vsub.f32 0.0, %v2934
    %v2999 = vsub.f32 0.0, %v2935
    %v3000 = vsub.f32 0.0, %v2936
    %v3001 = vsub.f32 0.0, %v2937
    %v3002 = vsub.f32 0.0, %v2938
    %v3003 = vsub.f32 0.0, %v2939
    %v3004 = vsub.f32 0.0, %v2940
    %v3005 = vsub.f32 0.0, %v2941
    %v3006 = vsub.f32 0.0, %v2942
    %v3007 = vsub.f32 0.0, %v2943
    %v3008 = vsub.f32 0.0, %v2944
    %v3009 = vsub.f32 0.0, %v2945
    %v3010 = vsub.f32 0.0, %v2946
    %v3011 = vsub.f32 0.0, %v2947
    %v3012 = vsub.f32 0.0, %v2948
    %v3013 = vsub.f32 0.0, %v2949
    %v3014 = vsub.f32 0.0, %v2950
    %v3015 = vsub.f32 0.0, %v2951
    %v3016 = vsub.f32 0.0, %v2952
    %v3017 = vsub.f32 0.0, %v2953
    %v3018 = vsub.f32 0.0, %v2954
    %v3019 = vsub.f32 0.0, %v2955
    %v3020 = vsub.f32 0.0, %v2956
    %v3021 = vsub.f32 0.0, %v2957
    %v3022 = vsub.f32 0.0, %v2958
    %v3023 = vsub.f32 0.0, %v2959
    %v3024 = vsub.f32 0.0, %v2960
    %v3025 = vsub.f32 0.0, %v2961
    %v3026 = vsub.f32 0.0, %v2962
    %v3027 = vsub.f32 0.0, %v2963
    %v3028 = vsub.f32 0.0, %v2964
    %v3029 = vsub.f32 0.0, %v2965
    %v3030 = vsub.f32 0.0, %v2966
    %v3031 = vsub.f32 0.0, %v2967
    %v3032 = vsub.f32 0.0, %v2968
    %v3033 = vsub.f32 0.0, %v2969
    %v3034 = vsub.f32 0.0, %v2970
    %v3035 = vsub.f32 0.0, %v2971
    %v3036 = vsub.f32 0.0, %v2972
    %v3037 = vsub.f32 0.0, %v2973
    %v3038 = vsub.f32 0.0, %v2974
    %v3039 = vsub.f32 0.0, %v2975
    %v3040 = vsub.f32 0.0, %v2976
    %v3041 = vsub.f32 0.0, %v2977
    %v3042 = vsub.f32 0.0, %v2978
    %v3043 = vsub.f32 0.0, %v2979
    %v3044 = vsub.f32 0.0, %v2980
    %v3045 = vsub.f32 0.0, %v2981
    %v3046 = vsub.f32 0.0, %v2982
    %v3047 = vsub.f32 0.0, %v2983
    %v3048 = vsub.f32 0.0, %v2984
    %v3049 = vpack.c.bf16 %v2986, %v2985
    %v3050 = vpack.c.bf16 %v2988, %v2987
    %v3051 = vpack.c.bf16 %v2990, %v2989
    %v3052 = vpack.c.bf16 %v2992, %v2991
    %v3053 = vpack.c.bf16 %v2994, %v2993
    %v3054 = vpack.c.bf16 %v2996, %v2995
    %v3055 = vpack.c.bf16 %v2998, %v2997
    %v3056 = vpack.c.bf16 %v3000, %v2999
    %v3057 = vpack.c.bf16 %v3002, %v3001
    %v3058 = vpack.c.bf16 %v3004, %v3003
    %v3059 = vpack.c.bf16 %v3006, %v3005
    %v3060 = vpack.c.bf16 %v3008, %v3007
    %v3061 = vpack.c.bf16 %v3010, %v3009
    %v3062 = vpack.c.bf16 %v3012, %v3011
    %v3063 = vpack.c.bf16 %v3014, %v3013
    %v3064 = vpack.c.bf16 %v3016, %v3015
    %v3065 = vpack.c.bf16 %v3018, %v3017
    %v3066 = vpack.c.bf16 %v3020, %v3019
    %v3067 = vpack.c.bf16 %v3022, %v3021
    %v3068 = vpack.c.bf16 %v3024, %v3023
    %v3069 = vpack.c.bf16 %v3026, %v3025
    %v3070 = vpack.c.bf16 %v3028, %v3027
    %v3071 = vpack.c.bf16 %v3030, %v3029
    %v3072 = vpack.c.bf16 %v3032, %v3031
    %v3073 = vpack.c.bf16 %v3034, %v3033
    %v3074 = vpack.c.bf16 %v3036, %v3035
    %v3075 = vpack.c.bf16 %v3038, %v3037
    %v3076 = vpack.c.bf16 %v3040, %v3039
    %v3077 = vpack.c.bf16 %v3042, %v3041
    %v3078 = vpack.c.bf16 %v3044, %v3043
    %v3079 = vpack.c.bf16 %v3046, %v3045
    %v3080 = vpack.c.bf16 %v3048, %v3047
    %v3082 = vmul.bf16 %v3049, 1069105081
    %v3083 = vpow.bf16.pop %v3082
    %v3085 = vmul.bf16 %v3050, 1069105081
    %v3086 = vpow.bf16.pop %v3085
    %v3088 = vmul.bf16 %v3051, 1069105081
    %v3089 = vpow.bf16.pop %v3088
    %v3091 = vmul.bf16 %v3052, 1069105081
    %v3092 = vpow.bf16.pop %v3091
    %v3094 = vmul.bf16 %v3053, 1069105081
    %v3095 = vpow.bf16.pop %v3094
    %v3097 = vmul.bf16 %v3054, 1069105081
    %v3098 = vpow.bf16.pop %v3097
    %v3100 = vmul.bf16 %v3055, 1069105081
    %v3101 = vpow.bf16.pop %v3100
    %v3103 = vmul.bf16 %v3056, 1069105081
    %v3104 = vpow.bf16.pop %v3103
    %v3106 = vmul.bf16 %v3057, 1069105081
    %v3107 = vpow.bf16.pop %v3106
    %v3109 = vmul.bf16 %v3058, 1069105081
    %v3110 = vpow.bf16.pop %v3109
    %v3112 = vmul.bf16 %v3059, 1069105081
    %v3113 = vpow.bf16.pop %v3112
    %v3115 = vmul.bf16 %v3060, 1069105081
    %v3116 = vpow.bf16.pop %v3115
    %v3118 = vmul.bf16 %v3061, 1069105081
    %v3119 = vpow.bf16.pop %v3118
    %v3121 = vmul.bf16 %v3062, 1069105081
    %v3122 = vpow.bf16.pop %v3121
    %v3124 = vmul.bf16 %v3063, 1069105081
    %v3125 = vpow.bf16.pop %v3124
    %v3127 = vmul.bf16 %v3064, 1069105081
    %v3128 = vpow.bf16.pop %v3127
    %v3130 = vmul.bf16 %v3065, 1069105081
    %v3131 = vpow.bf16.pop %v3130
    %v3133 = vmul.bf16 %v3066, 1069105081
    %v3134 = vpow.bf16.pop %v3133
    %v3136 = vmul.bf16 %v3067, 1069105081
    %v3137 = vpow.bf16.pop %v3136
    %v3139 = vmul.bf16 %v3068, 1069105081
    %v3140 = vpow.bf16.pop %v3139
    %v3142 = vmul.bf16 %v3069, 1069105081
    %v3143 = vpow.bf16.pop %v3142
    %v3145 = vmul.bf16 %v3070, 1069105081
    %v3146 = vpow.bf16.pop %v3145
    %v3148 = vmul.bf16 %v3071, 1069105081
    %v3149 = vpow.bf16.pop %v3148
    %v3151 = vmul.bf16 %v3072, 1069105081
    %v3152 = vpow.bf16.pop %v3151
    %v3154 = vmul.bf16 %v3073, 1069105081
    %v3155 = vpow.bf16.pop %v3154
    %v3157 = vmul.bf16 %v3074, 1069105081
    %v3158 = vpow.bf16.pop %v3157
    %v3160 = vmul.bf16 %v3075, 1069105081
    %v3161 = vpow.bf16.pop %v3160
    %v3163 = vmul.bf16 %v3076, 1069105081
    %v3164 = vpow.bf16.pop %v3163
    %v3166 = vmul.bf16 %v3077, 1069105081
    %v3167 = vpow.bf16.pop %v3166
    %v3169 = vmul.bf16 %v3078, 1069105081
    %v3170 = vpow.bf16.pop %v3169
    %v3172 = vmul.bf16 %v3079, 1069105081
    %v3173 = vpow.bf16.pop %v3172
    %v3175 = vmul.bf16 %v3080, 1069105081
    %v3176 = vpow.bf16.pop %v3175
    %v3177 = vld [vmem:[%s48 + $0x30] sm:$0xff]
    %v3178 = vld [vmem:[%s48 + $0x38] sm:$0xff]
    %v3181 = vunpack.c.l.b16 %v3177
    %v3182 = vunpack.c.h.b16 %v3177
    %v3183 = vunpack.c.l.b16 %v3178
    %v3184 = vunpack.c.h.b16 %v3178
    %v3185 = vpack.c.b16 %v3181, %v3181
    %v3186 = vpack.c.b16 %v3182, %v3182
    %v3187 = vpack.c.b16 %v3183, %v3183
    %v3188 = vpack.c.b16 %v3184, %v3184
    %3193 = vmatprep.subr.bf16.mxu0 0
    %3194 = vmatpush1.bf16.msra.mxu0 %v3083
    %3195 = vmatprep.subr.bf16.mxu0 0
    %3196 = vmatpush1.bf16.msra.mxu0 %v3086
    %3197 = vmatprep.subr.bf16.mxu0 0
    %3198 = vmatpush1.bf16.msra.mxu0 %v3089
    %3199 = vmatprep.subr.bf16.mxu0 0
    %3200 = vmatpush1.bf16.msra.mxu0 %v3092
    %3201 = vmatprep.subr.bf16.mxu0 0
    %3202 = vmatpush1.bf16.msra.mxu0 %v3095
    %3203 = vmatprep.subr.bf16.mxu0 0
    %3204 = vmatpush1.bf16.msra.mxu0 %v3098
    %3205 = vmatprep.subr.bf16.mxu0 0
    %3206 = vmatpush1.bf16.msra.mxu0 %v3101
    %3207 = vmatprep.subr.bf16.mxu0 0
    %3208 = vmatpush1.bf16.msra.mxu0 %v3104
    %3209 = vmatprep.subr.bf16.mxu0 0
    %3210 = vmatpush1.bf16.msra.mxu0 %v3107
    %3211 = vmatprep.subr.bf16.mxu0 0
    %3212 = vmatpush1.bf16.msra.mxu0 %v3110
    %3213 = vmatprep.subr.bf16.mxu0 0
    %3214 = vmatpush1.bf16.msra.mxu0 %v3113
    %3215 = vmatprep.subr.bf16.mxu0 0
    %3216 = vmatpush1.bf16.msra.mxu0 %v3116
    %3217 = vmatprep.subr.bf16.mxu0 0
    %3218 = vmatpush1.bf16.msra.mxu0 %v3119
    %3219 = vmatprep.subr.bf16.mxu0 0
    %3220 = vmatpush1.bf16.msra.mxu0 %v3122
    %3221 = vmatprep.subr.bf16.mxu0 0
    %3222 = vmatpush1.bf16.msra.mxu0 %v3125
    %3223 = vmatprep.subr.bf16.mxu0 0
    %3224 = vmatpush1.bf16.msra.mxu0 %v3128
    %3225 = vmatprep.mubr.bf16.mxu0 %v3186
    %3226 = vmatmul.mubr.bf16.gmra.mrb[0].mxu0 %v3185
    %v3227 = vpop.f32.mrb[0].mxu0
    %v3228 = vadd.f32 0.0, %v3227
    %v3229 = vpop.f32.mrb[0].mxu0
    %v3230 = vpop.f32.mrb[0].mxu0
    %v3231 = vpop.f32.mrb[0].mxu0
    %3232 = vdwg.mxu0
    %3233 = vmatprep.subr.bf16.mxu0 0
    %3234 = vmatpush1.bf16.msra.mxu0 %v3131
    %3235 = vmatprep.subr.bf16.mxu0 0
    %3236 = vmatpush1.bf16.msra.mxu0 %v3134
    %3237 = vmatprep.subr.bf16.mxu0 0
    %3238 = vmatpush1.bf16.msra.mxu0 %v3137
    %3239 = vmatprep.subr.bf16.mxu0 0
    %3240 = vmatpush1.bf16.msra.mxu0 %v3140
    %3241 = vmatprep.subr.bf16.mxu0 0
    %3242 = vmatpush1.bf16.msra.mxu0 %v3143
    %3243 = vmatprep.subr.bf16.mxu0 0
    %3244 = vmatpush1.bf16.msra.mxu0 %v3146
    %3245 = vmatprep.subr.bf16.mxu0 0
    %3246 = vmatpush1.bf16.msra.mxu0 %v3149
    %3247 = vmatprep.subr.bf16.mxu0 0
    %3248 = vmatpush1.bf16.msra.mxu0 %v3152
    %3249 = vmatprep.subr.bf16.mxu0 0
    %3250 = vmatpush1.bf16.msra.mxu0 %v3155
    %3251 = vmatprep.subr.bf16.mxu0 0
    %3252 = vmatpush1.bf16.msra.mxu0 %v3158
    %3253 = vmatprep.subr.bf16.mxu0 0
    %3254 = vmatpush1.bf16.msra.mxu0 %v3161
    %3255 = vmatprep.subr.bf16.mxu0 0
    %3256 = vmatpush1.bf16.msra.mxu0 %v3164
    %3257 = vmatprep.subr.bf16.mxu0 0
    %3258 = vmatpush1.bf16.msra.mxu0 %v3167
    %3259 = vmatprep.subr.bf16.mxu0 0
    %3260 = vmatpush1.bf16.msra.mxu0 %v3170
    %3261 = vmatprep.subr.bf16.mxu0 0
    %3262 = vmatpush1.bf16.msra.mxu0 %v3173
    %3263 = vmatprep.subr.bf16.mxu0 0
    %3264 = vmatpush1.bf16.msra.mxu0 %v3176
    %3265 = vmatprep.mubr.bf16.mxu0 %v3188
    %3266 = vmatmul.mubr.bf16.gmra.mrb[0].mxu0 %v3187
    %v3267 = vpop.f32.mrb[0].mxu0
    %v3268 = vadd.f32 %v3228, %v3267
    %v3269 = vpop.f32.mrb[0].mxu0
    %v3270 = vpop.f32.mrb[0].mxu0
    %v3271 = vpop.f32.mrb[0].mxu0
    %3272 = vdwg.mxu0
    %v3273 = vadd.f32 %v2472, %v3268
    %v3274 = vld [vmem:[%s56 + $0x800] sm:$0xff]
    %v3275 = vld [vmem:[%s56 + $0x808] sm:$0xff]
    %v3276 = vld [vmem:[%s56 + $0x810] sm:$0xff]
    %v3277 = vld [vmem:[%s56 + $0x818] sm:$0xff]
    %v3278 = vld [vmem:[%s56 + $0x820] sm:$0xff]
    %v3279 = vld [vmem:[%s56 + $0x828] sm:$0xff]
    %v3280 = vld [vmem:[%s56 + $0x830] sm:$0xff]
    %v3281 = vld [vmem:[%s56 + $0x838] sm:$0xff]
    %v3282 = vld [vmem:[%s56 + $0x840] sm:$0xff]
    %v3283 = vld [vmem:[%s56 + $0x848] sm:$0xff]
    %v3284 = vld [vmem:[%s56 + $0x850] sm:$0xff]
    %v3285 = vld [vmem:[%s56 + $0x858] sm:$0xff]
    %v3286 = vld [vmem:[%s56 + $0x860] sm:$0xff]
    %v3287 = vld [vmem:[%s56 + $0x868] sm:$0xff]
    %v3288 = vld [vmem:[%s56 + $0x870] sm:$0xff]
    %v3289 = vld [vmem:[%s56 + $0x878] sm:$0xff]
    %v3290 = vld [vmem:[%s56 + $0x880] sm:$0xff]
    %v3291 = vld [vmem:[%s56 + $0x888] sm:$0xff]
    %v3292 = vld [vmem:[%s56 + $0x890] sm:$0xff]
    %v3293 = vld [vmem:[%s56 + $0x898] sm:$0xff]
    %v3294 = vld [vmem:[%s56 + $0x8a0] sm:$0xff]
    %v3295 = vld [vmem:[%s56 + $0x8a8] sm:$0xff]
    %v3296 = vld [vmem:[%s56 + $0x8b0] sm:$0xff]
    %v3297 = vld [vmem:[%s56 + $0x8b8] sm:$0xff]
    %v3298 = vld [vmem:[%s56 + $0x8c0] sm:$0xff]
    %v3299 = vld [vmem:[%s56 + $0x8c8] sm:$0xff]
    %v3300 = vld [vmem:[%s56 + $0x8d0] sm:$0xff]
    %v3301 = vld [vmem:[%s56 + $0x8d8] sm:$0xff]
    %v3302 = vld [vmem:[%s56 + $0x8e0] sm:$0xff]
    %v3303 = vld [vmem:[%s56 + $0x8e8] sm:$0xff]
    %v3304 = vld [vmem:[%s56 + $0x8f0] sm:$0xff]
    %v3305 = vld [vmem:[%s56 + $0x8f8] sm:$0xff]
    %v3306 = vld [vmem:[%s56 + $0x900] sm:$0xff]
    %v3307 = vld [vmem:[%s56 + $0x908] sm:$0xff]
    %v3308 = vld [vmem:[%s56 + $0x910] sm:$0xff]
    %v3309 = vld [vmem:[%s56 + $0x918] sm:$0xff]
    %v3310 = vld [vmem:[%s56 + $0x920] sm:$0xff]
    %v3311 = vld [vmem:[%s56 + $0x928] sm:$0xff]
    %v3312 = vld [vmem:[%s56 + $0x930] sm:$0xff]
    %v3313 = vld [vmem:[%s56 + $0x938] sm:$0xff]
    %v3314 = vld [vmem:[%s56 + $0x940] sm:$0xff]
    %v3315 = vld [vmem:[%s56 + $0x948] sm:$0xff]
    %v3316 = vld [vmem:[%s56 + $0x950] sm:$0xff]
    %v3317 = vld [vmem:[%s56 + $0x958] sm:$0xff]
    %v3318 = vld [vmem:[%s56 + $0x960] sm:$0xff]
    %v3319 = vld [vmem:[%s56 + $0x968] sm:$0xff]
    %v3320 = vld [vmem:[%s56 + $0x970] sm:$0xff]
    %v3321 = vld [vmem:[%s56 + $0x978] sm:$0xff]
    %v3322 = vld [vmem:[%s56 + $0x980] sm:$0xff]
    %v3323 = vld [vmem:[%s56 + $0x988] sm:$0xff]
    %v3324 = vld [vmem:[%s56 + $0x990] sm:$0xff]
    %v3325 = vld [vmem:[%s56 + $0x998] sm:$0xff]
    %v3326 = vld [vmem:[%s56 + $0x9a0] sm:$0xff]
    %v3327 = vld [vmem:[%s56 + $0x9a8] sm:$0xff]
    %v3328 = vld [vmem:[%s56 + $0x9b0] sm:$0xff]
    %v3329 = vld [vmem:[%s56 + $0x9b8] sm:$0xff]
    %v3330 = vld [vmem:[%s56 + $0x9c0] sm:$0xff]
    %v3331 = vld [vmem:[%s56 + $0x9c8] sm:$0xff]
    %v3332 = vld [vmem:[%s56 + $0x9d0] sm:$0xff]
    %v3333 = vld [vmem:[%s56 + $0x9d8] sm:$0xff]
    %v3334 = vld [vmem:[%s56 + $0x9e0] sm:$0xff]
    %v3335 = vld [vmem:[%s56 + $0x9e8] sm:$0xff]
    %v3336 = vld [vmem:[%s56 + $0x9f0] sm:$0xff]
    %v3337 = vld [vmem:[%s56 + $0x9f8] sm:$0xff]
    %3339 = vset.pattern.permute.xlu0 0
    %3340 = vperm.xlu0 %3339, %v3274
    %v3341 = vpop.permute.xlu0 %3340
    %3344 = vset.pattern.permute.xlu0 0
    %3345 = vperm.xlu0 %3344, %v3275
    %v3346 = vpop.permute.xlu0 %3345
    %3349 = vset.pattern.permute.xlu0 0
    %3350 = vperm.xlu0 %3349, %v3276
    %v3351 = vpop.permute.xlu0 %3350
    %3354 = vset.pattern.permute.xlu0 0
    %3355 = vperm.xlu0 %3354, %v3277
    %v3356 = vpop.permute.xlu0 %3355
    %3359 = vset.pattern.permute.xlu0 0
    %3360 = vperm.xlu0 %3359, %v3278
    %v3361 = vpop.permute.xlu0 %3360
    %3364 = vset.pattern.permute.xlu0 0
    %3365 = vperm.xlu0 %3364, %v3279
    %v3366 = vpop.permute.xlu0 %3365
    %3369 = vset.pattern.permute.xlu0 0
    %3370 = vperm.xlu0 %3369, %v3280
    %v3371 = vpop.permute.xlu0 %3370
    %3374 = vset.pattern.permute.xlu0 0
    %3375 = vperm.xlu0 %3374, %v3281
    %v3376 = vpop.permute.xlu0 %3375
    %3379 = vset.pattern.permute.xlu0 0
    %3380 = vperm.xlu0 %3379, %v3282
    %v3381 = vpop.permute.xlu0 %3380
    %3384 = vset.pattern.permute.xlu0 0
    %3385 = vperm.xlu0 %3384, %v3283
    %v3386 = vpop.permute.xlu0 %3385
    %3389 = vset.pattern.permute.xlu0 0
    %3390 = vperm.xlu0 %3389, %v3284
    %v3391 = vpop.permute.xlu0 %3390
    %3394 = vset.pattern.permute.xlu0 0
    %3395 = vperm.xlu0 %3394, %v3285
    %v3396 = vpop.permute.xlu0 %3395
    %3399 = vset.pattern.permute.xlu0 0
    %3400 = vperm.xlu0 %3399, %v3286
    %v3401 = vpop.permute.xlu0 %3400
    %3404 = vset.pattern.permute.xlu0 0
    %3405 = vperm.xlu0 %3404, %v3287
    %v3406 = vpop.permute.xlu0 %3405
    %3409 = vset.pattern.permute.xlu0 0
    %3410 = vperm.xlu0 %3409, %v3288
    %v3411 = vpop.permute.xlu0 %3410
    %3414 = vset.pattern.permute.xlu0 0
    %3415 = vperm.xlu0 %3414, %v3289
    %v3416 = vpop.permute.xlu0 %3415
    %3419 = vset.pattern.permute.xlu0 0
    %3420 = vperm.xlu0 %3419, %v3290
    %v3421 = vpop.permute.xlu0 %3420
    %3424 = vset.pattern.permute.xlu0 0
    %3425 = vperm.xlu0 %3424, %v3291
    %v3426 = vpop.permute.xlu0 %3425
    %3429 = vset.pattern.permute.xlu0 0
    %3430 = vperm.xlu0 %3429, %v3292
    %v3431 = vpop.permute.xlu0 %3430
    %3434 = vset.pattern.permute.xlu0 0
    %3435 = vperm.xlu0 %3434, %v3293
    %v3436 = vpop.permute.xlu0 %3435
    %3439 = vset.pattern.permute.xlu0 0
    %3440 = vperm.xlu0 %3439, %v3294
    %v3441 = vpop.permute.xlu0 %3440
    %3444 = vset.pattern.permute.xlu0 0
    %3445 = vperm.xlu0 %3444, %v3295
    %v3446 = vpop.permute.xlu0 %3445
    %3449 = vset.pattern.permute.xlu0 0
    %3450 = vperm.xlu0 %3449, %v3296
    %v3451 = vpop.permute.xlu0 %3450
    %3454 = vset.pattern.permute.xlu0 0
    %3455 = vperm.xlu0 %3454, %v3297
    %v3456 = vpop.permute.xlu0 %3455
    %3459 = vset.pattern.permute.xlu0 0
    %3460 = vperm.xlu0 %3459, %v3298
    %v3461 = vpop.permute.xlu0 %3460
    %3464 = vset.pattern.permute.xlu0 0
    %3465 = vperm.xlu0 %3464, %v3299
    %v3466 = vpop.permute.xlu0 %3465
    %3469 = vset.pattern.permute.xlu0 0
    %3470 = vperm.xlu0 %3469, %v3300
    %v3471 = vpop.permute.xlu0 %3470
    %3474 = vset.pattern.permute.xlu0 0
    %3475 = vperm.xlu0 %3474, %v3301
    %v3476 = vpop.permute.xlu0 %3475
    %3479 = vset.pattern.permute.xlu0 0
    %3480 = vperm.xlu0 %3479, %v3302
    %v3481 = vpop.permute.xlu0 %3480
    %3484 = vset.pattern.permute.xlu0 0
    %3485 = vperm.xlu0 %3484, %v3303
    %v3486 = vpop.permute.xlu0 %3485
    %3489 = vset.pattern.permute.xlu0 0
    %3490 = vperm.xlu0 %3489, %v3304
    %v3491 = vpop.permute.xlu0 %3490
    %3494 = vset.pattern.permute.xlu0 0
    %3495 = vperm.xlu0 %3494, %v3305
    %v3496 = vpop.permute.xlu0 %3495
    %3499 = vset.pattern.permute.xlu0 0
    %3500 = vperm.xlu0 %3499, %v3306
    %v3501 = vpop.permute.xlu0 %3500
    %3504 = vset.pattern.permute.xlu0 0
    %3505 = vperm.xlu0 %3504, %v3307
    %v3506 = vpop.permute.xlu0 %3505
    %3509 = vset.pattern.permute.xlu0 0
    %3510 = vperm.xlu0 %3509, %v3308
    %v3511 = vpop.permute.xlu0 %3510
    %3514 = vset.pattern.permute.xlu0 0
    %3515 = vperm.xlu0 %3514, %v3309
    %v3516 = vpop.permute.xlu0 %3515
    %3519 = vset.pattern.permute.xlu0 0
    %3520 = vperm.xlu0 %3519, %v3310
    %v3521 = vpop.permute.xlu0 %3520
    %3524 = vset.pattern.permute.xlu0 0
    %3525 = vperm.xlu0 %3524, %v3311
    %v3526 = vpop.permute.xlu0 %3525
    %3529 = vset.pattern.permute.xlu0 0
    %3530 = vperm.xlu0 %3529, %v3312
    %v3531 = vpop.permute.xlu0 %3530
    %3534 = vset.pattern.permute.xlu0 0
    %3535 = vperm.xlu0 %3534, %v3313
    %v3536 = vpop.permute.xlu0 %3535
    %3539 = vset.pattern.permute.xlu0 0
    %3540 = vperm.xlu0 %3539, %v3314
    %v3541 = vpop.permute.xlu0 %3540
    %3544 = vset.pattern.permute.xlu0 0
    %3545 = vperm.xlu0 %3544, %v3315
    %v3546 = vpop.permute.xlu0 %3545
    %3549 = vset.pattern.permute.xlu0 0
    %3550 = vperm.xlu0 %3549, %v3316
    %v3551 = vpop.permute.xlu0 %3550
    %3554 = vset.pattern.permute.xlu0 0
    %3555 = vperm.xlu0 %3554, %v3317
    %v3556 = vpop.permute.xlu0 %3555
    %3559 = vset.pattern.permute.xlu0 0
    %3560 = vperm.xlu0 %3559, %v3318
    %v3561 = vpop.permute.xlu0 %3560
    %3564 = vset.pattern.permute.xlu0 0
    %3565 = vperm.xlu0 %3564, %v3319
    %v3566 = vpop.permute.xlu0 %3565
    %3569 = vset.pattern.permute.xlu0 0
    %3570 = vperm.xlu0 %3569, %v3320
    %v3571 = vpop.permute.xlu0 %3570
    %3574 = vset.pattern.permute.xlu0 0
    %3575 = vperm.xlu0 %3574, %v3321
    %v3576 = vpop.permute.xlu0 %3575
    %3579 = vset.pattern.permute.xlu0 0
    %3580 = vperm.xlu0 %3579, %v3322
    %v3581 = vpop.permute.xlu0 %3580
    %3584 = vset.pattern.permute.xlu0 0
    %3585 = vperm.xlu0 %3584, %v3323
    %v3586 = vpop.permute.xlu0 %3585
    %3589 = vset.pattern.permute.xlu0 0
    %3590 = vperm.xlu0 %3589, %v3324
    %v3591 = vpop.permute.xlu0 %3590
    %3594 = vset.pattern.permute.xlu0 0
    %3595 = vperm.xlu0 %3594, %v3325
    %v3596 = vpop.permute.xlu0 %3595
    %3599 = vset.pattern.permute.xlu0 0
    %3600 = vperm.xlu0 %3599, %v3326
    %v3601 = vpop.permute.xlu0 %3600
    %3604 = vset.pattern.permute.xlu0 0
    %3605 = vperm.xlu0 %3604, %v3327
    %v3606 = vpop.permute.xlu0 %3605
    %3609 = vset.pattern.permute.xlu0 0
    %3610 = vperm.xlu0 %3609, %v3328
    %v3611 = vpop.permute.xlu0 %3610
    %3614 = vset.pattern.permute.xlu0 0
    %3615 = vperm.xlu0 %3614, %v3329
    %v3616 = vpop.permute.xlu0 %3615
    %3619 = vset.pattern.permute.xlu0 0
    %3620 = vperm.xlu0 %3619, %v3330
    %v3621 = vpop.permute.xlu0 %3620
    %3624 = vset.pattern.permute.xlu0 0
    %3625 = vperm.xlu0 %3624, %v3331
    %v3626 = vpop.permute.xlu0 %3625
    %3629 = vset.pattern.permute.xlu0 0
    %3630 = vperm.xlu0 %3629, %v3332
    %v3631 = vpop.permute.xlu0 %3630
    %3634 = vset.pattern.permute.xlu0 0
    %3635 = vperm.xlu0 %3634, %v3333
    %v3636 = vpop.permute.xlu0 %3635
    %3639 = vset.pattern.permute.xlu0 0
    %3640 = vperm.xlu0 %3639, %v3334
    %v3641 = vpop.permute.xlu0 %3640
    %3644 = vset.pattern.permute.xlu0 0
    %3645 = vperm.xlu0 %3644, %v3335
    %v3646 = vpop.permute.xlu0 %3645
    %3649 = vset.pattern.permute.xlu0 0
    %3650 = vperm.xlu0 %3649, %v3336
    %v3651 = vpop.permute.xlu0 %3650
    %3654 = vset.pattern.permute.xlu0 0
    %3655 = vperm.xlu0 %3654, %v3337
    %v3656 = vpop.permute.xlu0 %3655
    %v3658 = vsub.f32 %v3341, %v70
    %v3659 = vsub.f32 %v3346, %v70
    %v3660 = vsub.f32 %v3351, %v70
    %v3661 = vsub.f32 %v3356, %v70
    %v3662 = vsub.f32 %v3361, %v70
    %v3663 = vsub.f32 %v3366, %v70
    %v3664 = vsub.f32 %v3371, %v70
    %v3665 = vsub.f32 %v3376, %v70
    %v3666 = vsub.f32 %v3381, %v70
    %v3667 = vsub.f32 %v3386, %v70
    %v3668 = vsub.f32 %v3391, %v70
    %v3669 = vsub.f32 %v3396, %v70
    %v3670 = vsub.f32 %v3401, %v70
    %v3671 = vsub.f32 %v3406, %v70
    %v3672 = vsub.f32 %v3411, %v70
    %v3673 = vsub.f32 %v3416, %v70
    %v3674 = vsub.f32 %v3421, %v70
    %v3675 = vsub.f32 %v3426, %v70
    %v3676 = vsub.f32 %v3431, %v70
    %v3677 = vsub.f32 %v3436, %v70
    %v3678 = vsub.f32 %v3441, %v70
    %v3679 = vsub.f32 %v3446, %v70
    %v3680 = vsub.f32 %v3451, %v70
    %v3681 = vsub.f32 %v3456, %v70
    %v3682 = vsub.f32 %v3461, %v70
    %v3683 = vsub.f32 %v3466, %v70
    %v3684 = vsub.f32 %v3471, %v70
    %v3685 = vsub.f32 %v3476, %v70
    %v3686 = vsub.f32 %v3481, %v70
    %v3687 = vsub.f32 %v3486, %v70
    %v3688 = vsub.f32 %v3491, %v70
    %v3689 = vsub.f32 %v3496, %v70
    %v3690 = vsub.f32 %v3501, %v70
    %v3691 = vsub.f32 %v3506, %v70
    %v3692 = vsub.f32 %v3511, %v70
    %v3693 = vsub.f32 %v3516, %v70
    %v3694 = vsub.f32 %v3521, %v70
    %v3695 = vsub.f32 %v3526, %v70
    %v3696 = vsub.f32 %v3531, %v70
    %v3697 = vsub.f32 %v3536, %v70
    %v3698 = vsub.f32 %v3541, %v70
    %v3699 = vsub.f32 %v3546, %v70
    %v3700 = vsub.f32 %v3551, %v70
    %v3701 = vsub.f32 %v3556, %v70
    %v3702 = vsub.f32 %v3561, %v70
    %v3703 = vsub.f32 %v3566, %v70
    %v3704 = vsub.f32 %v3571, %v70
    %v3705 = vsub.f32 %v3576, %v70
    %v3706 = vsub.f32 %v3581, %v70
    %v3707 = vsub.f32 %v3586, %v70
    %v3708 = vsub.f32 %v3591, %v70
    %v3709 = vsub.f32 %v3596, %v70
    %v3710 = vsub.f32 %v3601, %v70
    %v3711 = vsub.f32 %v3606, %v70
    %v3712 = vsub.f32 %v3611, %v70
    %v3713 = vsub.f32 %v3616, %v70
    %v3714 = vsub.f32 %v3621, %v70
    %v3715 = vsub.f32 %v3626, %v70
    %v3716 = vsub.f32 %v3631, %v70
    %v3717 = vsub.f32 %v3636, %v70
    %v3718 = vsub.f32 %v3641, %v70
    %v3719 = vsub.f32 %v3646, %v70
    %v3720 = vsub.f32 %v3651, %v70
    %v3721 = vsub.f32 %v3656, %v70
    %v3722 = vmul.f32 %v3658, %v3658
    %v3723 = vmul.f32 %v3659, %v3659
    %v3724 = vmul.f32 %v3660, %v3660
    %v3725 = vmul.f32 %v3661, %v3661
    %v3726 = vmul.f32 %v3662, %v3662
    %v3727 = vmul.f32 %v3663, %v3663
    %v3728 = vmul.f32 %v3664, %v3664
    %v3729 = vmul.f32 %v3665, %v3665
    %v3730 = vmul.f32 %v3666, %v3666
    %v3731 = vmul.f32 %v3667, %v3667
    %v3732 = vmul.f32 %v3668, %v3668
    %v3733 = vmul.f32 %v3669, %v3669
    %v3734 = vmul.f32 %v3670, %v3670
    %v3735 = vmul.f32 %v3671, %v3671
    %v3736 = vmul.f32 %v3672, %v3672
    %v3737 = vmul.f32 %v3673, %v3673
    %v3738 = vmul.f32 %v3674, %v3674
    %v3739 = vmul.f32 %v3675, %v3675
    %v3740 = vmul.f32 %v3676, %v3676
    %v3741 = vmul.f32 %v3677, %v3677
    %v3742 = vmul.f32 %v3678, %v3678
    %v3743 = vmul.f32 %v3679, %v3679
    %v3744 = vmul.f32 %v3680, %v3680
    %v3745 = vmul.f32 %v3681, %v3681
    %v3746 = vmul.f32 %v3682, %v3682
    %v3747 = vmul.f32 %v3683, %v3683
    %v3748 = vmul.f32 %v3684, %v3684
    %v3749 = vmul.f32 %v3685, %v3685
    %v3750 = vmul.f32 %v3686, %v3686
    %v3751 = vmul.f32 %v3687, %v3687
    %v3752 = vmul.f32 %v3688, %v3688
    %v3753 = vmul.f32 %v3689, %v3689
    %v3754 = vmul.f32 %v3690, %v3690
    %v3755 = vmul.f32 %v3691, %v3691
    %v3756 = vmul.f32 %v3692, %v3692
    %v3757 = vmul.f32 %v3693, %v3693
    %v3758 = vmul.f32 %v3694, %v3694
    %v3759 = vmul.f32 %v3695, %v3695
    %v3760 = vmul.f32 %v3696, %v3696
    %v3761 = vmul.f32 %v3697, %v3697
    %v3762 = vmul.f32 %v3698, %v3698
    %v3763 = vmul.f32 %v3699, %v3699
    %v3764 = vmul.f32 %v3700, %v3700
    %v3765 = vmul.f32 %v3701, %v3701
    %v3766 = vmul.f32 %v3702, %v3702
    %v3767 = vmul.f32 %v3703, %v3703
    %v3768 = vmul.f32 %v3704, %v3704
    %v3769 = vmul.f32 %v3705, %v3705
    %v3770 = vmul.f32 %v3706, %v3706
    %v3771 = vmul.f32 %v3707, %v3707
    %v3772 = vmul.f32 %v3708, %v3708
    %v3773 = vmul.f32 %v3709, %v3709
    %v3774 = vmul.f32 %v3710, %v3710
    %v3775 = vmul.f32 %v3711, %v3711
    %v3776 = vmul.f32 %v3712, %v3712
    %v3777 = vmul.f32 %v3713, %v3713
    %v3778 = vmul.f32 %v3714, %v3714
    %v3779 = vmul.f32 %v3715, %v3715
    %v3780 = vmul.f32 %v3716, %v3716
    %v3781 = vmul.f32 %v3717, %v3717
    %v3782 = vmul.f32 %v3718, %v3718
    %v3783 = vmul.f32 %v3719, %v3719
    %v3784 = vmul.f32 %v3720, %v3720
    %v3785 = vmul.f32 %v3721, %v3721
    %v3786 = vsub.f32 0.0, %v3722
    %v3787 = vsub.f32 0.0, %v3723
    %v3788 = vsub.f32 0.0, %v3724
    %v3789 = vsub.f32 0.0, %v3725
    %v3790 = vsub.f32 0.0, %v3726
    %v3791 = vsub.f32 0.0, %v3727
    %v3792 = vsub.f32 0.0, %v3728
    %v3793 = vsub.f32 0.0, %v3729
    %v3794 = vsub.f32 0.0, %v3730
    %v3795 = vsub.f32 0.0, %v3731
    %v3796 = vsub.f32 0.0, %v3732
    %v3797 = vsub.f32 0.0, %v3733
    %v3798 = vsub.f32 0.0, %v3734
    %v3799 = vsub.f32 0.0, %v3735
    %v3800 = vsub.f32 0.0, %v3736
    %v3801 = vsub.f32 0.0, %v3737
    %v3802 = vsub.f32 0.0, %v3738
    %v3803 = vsub.f32 0.0, %v3739
    %v3804 = vsub.f32 0.0, %v3740
    %v3805 = vsub.f32 0.0, %v3741
    %v3806 = vsub.f32 0.0, %v3742
    %v3807 = vsub.f32 0.0, %v3743
    %v3808 = vsub.f32 0.0, %v3744
    %v3809 = vsub.f32 0.0, %v3745
    %v3810 = vsub.f32 0.0, %v3746
    %v3811 = vsub.f32 0.0, %v3747
    %v3812 = vsub.f32 0.0, %v3748
    %v3813 = vsub.f32 0.0, %v3749
    %v3814 = vsub.f32 0.0, %v3750
    %v3815 = vsub.f32 0.0, %v3751
    %v3816 = vsub.f32 0.0, %v3752
    %v3817 = vsub.f32 0.0, %v3753
    %v3818 = vsub.f32 0.0, %v3754
    %v3819 = vsub.f32 0.0, %v3755
    %v3820 = vsub.f32 0.0, %v3756
    %v3821 = vsub.f32 0.0, %v3757
    %v3822 = vsub.f32 0.0, %v3758
    %v3823 = vsub.f32 0.0, %v3759
    %v3824 = vsub.f32 0.0, %v3760
    %v3825 = vsub.f32 0.0, %v3761
    %v3826 = vsub.f32 0.0, %v3762
    %v3827 = vsub.f32 0.0, %v3763
    %v3828 = vsub.f32 0.0, %v3764
    %v3829 = vsub.f32 0.0, %v3765
    %v3830 = vsub.f32 0.0, %v3766
    %v3831 = vsub.f32 0.0, %v3767
    %v3832 = vsub.f32 0.0, %v3768
    %v3833 = vsub.f32 0.0, %v3769
    %v3834 = vsub.f32 0.0, %v3770
    %v3835 = vsub.f32 0.0, %v3771
    %v3836 = vsub.f32 0.0, %v3772
    %v3837 = vsub.f32 0.0, %v3773
    %v3838 = vsub.f32 0.0, %v3774
    %v3839 = vsub.f32 0.0, %v3775
    %v3840 = vsub.f32 0.0, %v3776
    %v3841 = vsub.f32 0.0, %v3777
    %v3842 = vsub.f32 0.0, %v3778
    %v3843 = vsub.f32 0.0, %v3779
    %v3844 = vsub.f32 0.0, %v3780
    %v3845 = vsub.f32 0.0, %v3781
    %v3846 = vsub.f32 0.0, %v3782
    %v3847 = vsub.f32 0.0, %v3783
    %v3848 = vsub.f32 0.0, %v3784
    %v3849 = vsub.f32 0.0, %v3785
    %v3850 = vpack.c.bf16 %v3787, %v3786
    %v3851 = vpack.c.bf16 %v3789, %v3788
    %v3852 = vpack.c.bf16 %v3791, %v3790
    %v3853 = vpack.c.bf16 %v3793, %v3792
    %v3854 = vpack.c.bf16 %v3795, %v3794
    %v3855 = vpack.c.bf16 %v3797, %v3796
    %v3856 = vpack.c.bf16 %v3799, %v3798
    %v3857 = vpack.c.bf16 %v3801, %v3800
    %v3858 = vpack.c.bf16 %v3803, %v3802
    %v3859 = vpack.c.bf16 %v3805, %v3804
    %v3860 = vpack.c.bf16 %v3807, %v3806
    %v3861 = vpack.c.bf16 %v3809, %v3808
    %v3862 = vpack.c.bf16 %v3811, %v3810
    %v3863 = vpack.c.bf16 %v3813, %v3812
    %v3864 = vpack.c.bf16 %v3815, %v3814
    %v3865 = vpack.c.bf16 %v3817, %v3816
    %v3866 = vpack.c.bf16 %v3819, %v3818
    %v3867 = vpack.c.bf16 %v3821, %v3820
    %v3868 = vpack.c.bf16 %v3823, %v3822
    %v3869 = vpack.c.bf16 %v3825, %v3824
    %v3870 = vpack.c.bf16 %v3827, %v3826
    %v3871 = vpack.c.bf16 %v3829, %v3828
    %v3872 = vpack.c.bf16 %v3831, %v3830
    %v3873 = vpack.c.bf16 %v3833, %v3832
    %v3874 = vpack.c.bf16 %v3835, %v3834
    %v3875 = vpack.c.bf16 %v3837, %v3836
    %v3876 = vpack.c.bf16 %v3839, %v3838
    %v3877 = vpack.c.bf16 %v3841, %v3840
    %v3878 = vpack.c.bf16 %v3843, %v3842
    %v3879 = vpack.c.bf16 %v3845, %v3844
    %v3880 = vpack.c.bf16 %v3847, %v3846
    %v3881 = vpack.c.bf16 %v3849, %v3848
    %v3883 = vmul.bf16 %v3850, 1069105081
    %v3884 = vpow.bf16.pop %v3883
    %v3886 = vmul.bf16 %v3851, 1069105081
    %v3887 = vpow.bf16.pop %v3886
    %v3889 = vmul.bf16 %v3852, 1069105081
    %v3890 = vpow.bf16.pop %v3889
    %v3892 = vmul.bf16 %v3853, 1069105081
    %v3893 = vpow.bf16.pop %v3892
    %v3895 = vmul.bf16 %v3854, 1069105081
    %v3896 = vpow.bf16.pop %v3895
    %v3898 = vmul.bf16 %v3855, 1069105081
    %v3899 = vpow.bf16.pop %v3898
    %v3901 = vmul.bf16 %v3856, 1069105081
    %v3902 = vpow.bf16.pop %v3901
    %v3904 = vmul.bf16 %v3857, 1069105081
    %v3905 = vpow.bf16.pop %v3904
    %v3907 = vmul.bf16 %v3858, 1069105081
    %v3908 = vpow.bf16.pop %v3907
    %v3910 = vmul.bf16 %v3859, 1069105081
    %v3911 = vpow.bf16.pop %v3910
    %v3913 = vmul.bf16 %v3860, 1069105081
    %v3914 = vpow.bf16.pop %v3913
    %v3916 = vmul.bf16 %v3861, 1069105081
    %v3917 = vpow.bf16.pop %v3916
    %v3919 = vmul.bf16 %v3862, 1069105081
    %v3920 = vpow.bf16.pop %v3919
    %v3922 = vmul.bf16 %v3863, 1069105081
    %v3923 = vpow.bf16.pop %v3922
    %v3925 = vmul.bf16 %v3864, 1069105081
    %v3926 = vpow.bf16.pop %v3925
    %v3928 = vmul.bf16 %v3865, 1069105081
    %v3929 = vpow.bf16.pop %v3928
    %v3931 = vmul.bf16 %v3866, 1069105081
    %v3932 = vpow.bf16.pop %v3931
    %v3934 = vmul.bf16 %v3867, 1069105081
    %v3935 = vpow.bf16.pop %v3934
    %v3937 = vmul.bf16 %v3868, 1069105081
    %v3938 = vpow.bf16.pop %v3937
    %v3940 = vmul.bf16 %v3869, 1069105081
    %v3941 = vpow.bf16.pop %v3940
    %v3943 = vmul.bf16 %v3870, 1069105081
    %v3944 = vpow.bf16.pop %v3943
    %v3946 = vmul.bf16 %v3871, 1069105081
    %v3947 = vpow.bf16.pop %v3946
    %v3949 = vmul.bf16 %v3872, 1069105081
    %v3950 = vpow.bf16.pop %v3949
    %v3952 = vmul.bf16 %v3873, 1069105081
    %v3953 = vpow.bf16.pop %v3952
    %v3955 = vmul.bf16 %v3874, 1069105081
    %v3956 = vpow.bf16.pop %v3955
    %v3958 = vmul.bf16 %v3875, 1069105081
    %v3959 = vpow.bf16.pop %v3958
    %v3961 = vmul.bf16 %v3876, 1069105081
    %v3962 = vpow.bf16.pop %v3961
    %v3964 = vmul.bf16 %v3877, 1069105081
    %v3965 = vpow.bf16.pop %v3964
    %v3967 = vmul.bf16 %v3878, 1069105081
    %v3968 = vpow.bf16.pop %v3967
    %v3970 = vmul.bf16 %v3879, 1069105081
    %v3971 = vpow.bf16.pop %v3970
    %v3973 = vmul.bf16 %v3880, 1069105081
    %v3974 = vpow.bf16.pop %v3973
    %v3976 = vmul.bf16 %v3881, 1069105081
    %v3977 = vpow.bf16.pop %v3976
    %v3978 = vld [vmem:[%s48 + $0x40] sm:$0xff]
    %v3979 = vld [vmem:[%s48 + $0x48] sm:$0xff]
    %v3982 = vunpack.c.l.b16 %v3978
    %v3983 = vunpack.c.h.b16 %v3978
    %v3984 = vunpack.c.l.b16 %v3979
    %v3985 = vunpack.c.h.b16 %v3979
    %v3986 = vpack.c.b16 %v3982, %v3982
    %v3987 = vpack.c.b16 %v3983, %v3983
    %v3988 = vpack.c.b16 %v3984, %v3984
    %v3989 = vpack.c.b16 %v3985, %v3985
    %3994 = vmatprep.subr.bf16.mxu0 0
    %3995 = vmatpush1.bf16.msra.mxu0 %v3884
    %3996 = vmatprep.subr.bf16.mxu0 0
    %3997 = vmatpush1.bf16.msra.mxu0 %v3887
    %3998 = vmatprep.subr.bf16.mxu0 0
    %3999 = vmatpush1.bf16.msra.mxu0 %v3890
    %4000 = vmatprep.subr.bf16.mxu0 0
    %4001 = vmatpush1.bf16.msra.mxu0 %v3893
    %4002 = vmatprep.subr.bf16.mxu0 0
    %4003 = vmatpush1.bf16.msra.mxu0 %v3896
    %4004 = vmatprep.subr.bf16.mxu0 0
    %4005 = vmatpush1.bf16.msra.mxu0 %v3899
    %4006 = vmatprep.subr.bf16.mxu0 0
    %4007 = vmatpush1.bf16.msra.mxu0 %v3902
    %4008 = vmatprep.subr.bf16.mxu0 0
    %4009 = vmatpush1.bf16.msra.mxu0 %v3905
    %4010 = vmatprep.subr.bf16.mxu0 0
    %4011 = vmatpush1.bf16.msra.mxu0 %v3908
    %4012 = vmatprep.subr.bf16.mxu0 0
    %4013 = vmatpush1.bf16.msra.mxu0 %v3911
    %4014 = vmatprep.subr.bf16.mxu0 0
    %4015 = vmatpush1.bf16.msra.mxu0 %v3914
    %4016 = vmatprep.subr.bf16.mxu0 0
    %4017 = vmatpush1.bf16.msra.mxu0 %v3917
    %4018 = vmatprep.subr.bf16.mxu0 0
    %4019 = vmatpush1.bf16.msra.mxu0 %v3920
    %4020 = vmatprep.subr.bf16.mxu0 0
    %4021 = vmatpush1.bf16.msra.mxu0 %v3923
    %4022 = vmatprep.subr.bf16.mxu0 0
    %4023 = vmatpush1.bf16.msra.mxu0 %v3926
    %4024 = vmatprep.subr.bf16.mxu0 0
    %4025 = vmatpush1.bf16.msra.mxu0 %v3929
    %4026 = vmatprep.mubr.bf16.mxu0 %v3987
    %4027 = vmatmul.mubr.bf16.gmra.mrb[0].mxu0 %v3986
    %v4028 = vpop.f32.mrb[0].mxu0
    %v4029 = vadd.f32 0.0, %v4028
    %v4030 = vpop.f32.mrb[0].mxu0
    %v4031 = vpop.f32.mrb[0].mxu0
    %v4032 = vpop.f32.mrb[0].mxu0
    %4033 = vdwg.mxu0
    %4034 = vmatprep.subr.bf16.mxu0 0
    %4035 = vmatpush1.bf16.msra.mxu0 %v3932
    %4036 = vmatprep.subr.bf16.mxu0 0
    %4037 = vmatpush1.bf16.msra.mxu0 %v3935
    %4038 = vmatprep.subr.bf16.mxu0 0
    %4039 = vmatpush1.bf16.msra.mxu0 %v3938
    %4040 = vmatprep.subr.bf16.mxu0 0
    %4041 = vmatpush1.bf16.msra.mxu0 %v3941
    %4042 = vmatprep.subr.bf16.mxu0 0
    %4043 = vmatpush1.bf16.msra.mxu0 %v3944
    %4044 = vmatprep.subr.bf16.mxu0 0
    %4045 = vmatpush1.bf16.msra.mxu0 %v3947
    %4046 = vmatprep.subr.bf16.mxu0 0
    %4047 = vmatpush1.bf16.msra.mxu0 %v3950
    %4048 = vmatprep.subr.bf16.mxu0 0
    %4049 = vmatpush1.bf16.msra.mxu0 %v3953
    %4050 = vmatprep.subr.bf16.mxu0 0
    %4051 = vmatpush1.bf16.msra.mxu0 %v3956
    %4052 = vmatprep.subr.bf16.mxu0 0
    %4053 = vmatpush1.bf16.msra.mxu0 %v3959
    %4054 = vmatprep.subr.bf16.mxu0 0
    %4055 = vmatpush1.bf16.msra.mxu0 %v3962
    %4056 = vmatprep.subr.bf16.mxu0 0
    %4057 = vmatpush1.bf16.msra.mxu0 %v3965
    %4058 = vmatprep.subr.bf16.mxu0 0
    %4059 = vmatpush1.bf16.msra.mxu0 %v3968
    %4060 = vmatprep.subr.bf16.mxu0 0
    %4061 = vmatpush1.bf16.msra.mxu0 %v3971
    %4062 = vmatprep.subr.bf16.mxu0 0
    %4063 = vmatpush1.bf16.msra.mxu0 %v3974
    %4064 = vmatprep.subr.bf16.mxu0 0
    %4065 = vmatpush1.bf16.msra.mxu0 %v3977
    %4066 = vmatprep.mubr.bf16.mxu0 %v3989
    %4067 = vmatmul.mubr.bf16.gmra.mrb[0].mxu0 %v3988
    %v4068 = vpop.f32.mrb[0].mxu0
    %v4069 = vadd.f32 %v4029, %v4068
    %v4070 = vpop.f32.mrb[0].mxu0
    %v4071 = vpop.f32.mrb[0].mxu0
    %v4072 = vpop.f32.mrb[0].mxu0
    %4073 = vdwg.mxu0
    %v4074 = vadd.f32 %v3273, %v4069
    %v4075 = vld [vmem:[%s56 + $0xa00] sm:$0xff]
    %v4076 = vld [vmem:[%s56 + $0xa08] sm:$0xff]
    %v4077 = vld [vmem:[%s56 + $0xa10] sm:$0xff]
    %v4078 = vld [vmem:[%s56 + $0xa18] sm:$0xff]
    %v4079 = vld [vmem:[%s56 + $0xa20] sm:$0xff]
    %v4080 = vld [vmem:[%s56 + $0xa28] sm:$0xff]
    %v4081 = vld [vmem:[%s56 + $0xa30] sm:$0xff]
    %v4082 = vld [vmem:[%s56 + $0xa38] sm:$0xff]
    %v4083 = vld [vmem:[%s56 + $0xa40] sm:$0xff]
    %v4084 = vld [vmem:[%s56 + $0xa48] sm:$0xff]
    %v4085 = vld [vmem:[%s56 + $0xa50] sm:$0xff]
    %v4086 = vld [vmem:[%s56 + $0xa58] sm:$0xff]
    %v4087 = vld [vmem:[%s56 + $0xa60] sm:$0xff]
    %v4088 = vld [vmem:[%s56 + $0xa68] sm:$0xff]
    %v4089 = vld [vmem:[%s56 + $0xa70] sm:$0xff]
    %v4090 = vld [vmem:[%s56 + $0xa78] sm:$0xff]
    %v4091 = vld [vmem:[%s56 + $0xa80] sm:$0xff]
    %v4092 = vld [vmem:[%s56 + $0xa88] sm:$0xff]
    %v4093 = vld [vmem:[%s56 + $0xa90] sm:$0xff]
    %v4094 = vld [vmem:[%s56 + $0xa98] sm:$0xff]
    %v4095 = vld [vmem:[%s56 + $0xaa0] sm:$0xff]
    %v4096 = vld [vmem:[%s56 + $0xaa8] sm:$0xff]
    %v4097 = vld [vmem:[%s56 + $0xab0] sm:$0xff]
    %v4098 = vld [vmem:[%s56 + $0xab8] sm:$0xff]
    %v4099 = vld [vmem:[%s56 + $0xac0] sm:$0xff]
    %v4100 = vld [vmem:[%s56 + $0xac8] sm:$0xff]
    %v4101 = vld [vmem:[%s56 + $0xad0] sm:$0xff]
    %v4102 = vld [vmem:[%s56 + $0xad8] sm:$0xff]
    %v4103 = vld [vmem:[%s56 + $0xae0] sm:$0xff]
    %v4104 = vld [vmem:[%s56 + $0xae8] sm:$0xff]
    %v4105 = vld [vmem:[%s56 + $0xaf0] sm:$0xff]
    %v4106 = vld [vmem:[%s56 + $0xaf8] sm:$0xff]
    %v4107 = vld [vmem:[%s56 + $0xb00] sm:$0xff]
    %v4108 = vld [vmem:[%s56 + $0xb08] sm:$0xff]
    %v4109 = vld [vmem:[%s56 + $0xb10] sm:$0xff]
    %v4110 = vld [vmem:[%s56 + $0xb18] sm:$0xff]
    %v4111 = vld [vmem:[%s56 + $0xb20] sm:$0xff]
    %v4112 = vld [vmem:[%s56 + $0xb28] sm:$0xff]
    %v4113 = vld [vmem:[%s56 + $0xb30] sm:$0xff]
    %v4114 = vld [vmem:[%s56 + $0xb38] sm:$0xff]
    %v4115 = vld [vmem:[%s56 + $0xb40] sm:$0xff]
    %v4116 = vld [vmem:[%s56 + $0xb48] sm:$0xff]
    %v4117 = vld [vmem:[%s56 + $0xb50] sm:$0xff]
    %v4118 = vld [vmem:[%s56 + $0xb58] sm:$0xff]
    %v4119 = vld [vmem:[%s56 + $0xb60] sm:$0xff]
    %v4120 = vld [vmem:[%s56 + $0xb68] sm:$0xff]
    %v4121 = vld [vmem:[%s56 + $0xb70] sm:$0xff]
    %v4122 = vld [vmem:[%s56 + $0xb78] sm:$0xff]
    %v4123 = vld [vmem:[%s56 + $0xb80] sm:$0xff]
    %v4124 = vld [vmem:[%s56 + $0xb88] sm:$0xff]
    %v4125 = vld [vmem:[%s56 + $0xb90] sm:$0xff]
    %v4126 = vld [vmem:[%s56 + $0xb98] sm:$0xff]
    %v4127 = vld [vmem:[%s56 + $0xba0] sm:$0xff]
    %v4128 = vld [vmem:[%s56 + $0xba8] sm:$0xff]
    %v4129 = vld [vmem:[%s56 + $0xbb0] sm:$0xff]
    %v4130 = vld [vmem:[%s56 + $0xbb8] sm:$0xff]
    %v4131 = vld [vmem:[%s56 + $0xbc0] sm:$0xff]
    %v4132 = vld [vmem:[%s56 + $0xbc8] sm:$0xff]
    %v4133 = vld [vmem:[%s56 + $0xbd0] sm:$0xff]
    %v4134 = vld [vmem:[%s56 + $0xbd8] sm:$0xff]
    %v4135 = vld [vmem:[%s56 + $0xbe0] sm:$0xff]
    %v4136 = vld [vmem:[%s56 + $0xbe8] sm:$0xff]
    %v4137 = vld [vmem:[%s56 + $0xbf0] sm:$0xff]
    %v4138 = vld [vmem:[%s56 + $0xbf8] sm:$0xff]
    %4140 = vset.pattern.permute.xlu0 0
    %4141 = vperm.xlu0 %4140, %v4075
    %v4142 = vpop.permute.xlu0 %4141
    %4145 = vset.pattern.permute.xlu0 0
    %4146 = vperm.xlu0 %4145, %v4076
    %v4147 = vpop.permute.xlu0 %4146
    %4150 = vset.pattern.permute.xlu0 0
    %4151 = vperm.xlu0 %4150, %v4077
    %v4152 = vpop.permute.xlu0 %4151
    %4155 = vset.pattern.permute.xlu0 0
    %4156 = vperm.xlu0 %4155, %v4078
    %v4157 = vpop.permute.xlu0 %4156
    %4160 = vset.pattern.permute.xlu0 0
    %4161 = vperm.xlu0 %4160, %v4079
    %v4162 = vpop.permute.xlu0 %4161
    %4165 = vset.pattern.permute.xlu0 0
    %4166 = vperm.xlu0 %4165, %v4080
    %v4167 = vpop.permute.xlu0 %4166
    %4170 = vset.pattern.permute.xlu0 0
    %4171 = vperm.xlu0 %4170, %v4081
    %v4172 = vpop.permute.xlu0 %4171
    %4175 = vset.pattern.permute.xlu0 0
    %4176 = vperm.xlu0 %4175, %v4082
    %v4177 = vpop.permute.xlu0 %4176
    %4180 = vset.pattern.permute.xlu0 0
    %4181 = vperm.xlu0 %4180, %v4083
    %v4182 = vpop.permute.xlu0 %4181
    %4185 = vset.pattern.permute.xlu0 0
    %4186 = vperm.xlu0 %4185, %v4084
    %v4187 = vpop.permute.xlu0 %4186
    %4190 = vset.pattern.permute.xlu0 0
    %4191 = vperm.xlu0 %4190, %v4085
    %v4192 = vpop.permute.xlu0 %4191
    %4195 = vset.pattern.permute.xlu0 0
    %4196 = vperm.xlu0 %4195, %v4086
    %v4197 = vpop.permute.xlu0 %4196
    %4200 = vset.pattern.permute.xlu0 0
    %4201 = vperm.xlu0 %4200, %v4087
    %v4202 = vpop.permute.xlu0 %4201
    %4205 = vset.pattern.permute.xlu0 0
    %4206 = vperm.xlu0 %4205, %v4088
    %v4207 = vpop.permute.xlu0 %4206
    %4210 = vset.pattern.permute.xlu0 0
    %4211 = vperm.xlu0 %4210, %v4089
    %v4212 = vpop.permute.xlu0 %4211
    %4215 = vset.pattern.permute.xlu0 0
    %4216 = vperm.xlu0 %4215, %v4090
    %v4217 = vpop.permute.xlu0 %4216
    %4220 = vset.pattern.permute.xlu0 0
    %4221 = vperm.xlu0 %4220, %v4091
    %v4222 = vpop.permute.xlu0 %4221
    %4225 = vset.pattern.permute.xlu0 0
    %4226 = vperm.xlu0 %4225, %v4092
    %v4227 = vpop.permute.xlu0 %4226
    %4230 = vset.pattern.permute.xlu0 0
    %4231 = vperm.xlu0 %4230, %v4093
    %v4232 = vpop.permute.xlu0 %4231
    %4235 = vset.pattern.permute.xlu0 0
    %4236 = vperm.xlu0 %4235, %v4094
    %v4237 = vpop.permute.xlu0 %4236
    %4240 = vset.pattern.permute.xlu0 0
    %4241 = vperm.xlu0 %4240, %v4095
    %v4242 = vpop.permute.xlu0 %4241
    %4245 = vset.pattern.permute.xlu0 0
    %4246 = vperm.xlu0 %4245, %v4096
    %v4247 = vpop.permute.xlu0 %4246
    %4250 = vset.pattern.permute.xlu0 0
    %4251 = vperm.xlu0 %4250, %v4097
    %v4252 = vpop.permute.xlu0 %4251
    %4255 = vset.pattern.permute.xlu0 0
    %4256 = vperm.xlu0 %4255, %v4098
    %v4257 = vpop.permute.xlu0 %4256
    %4260 = vset.pattern.permute.xlu0 0
    %4261 = vperm.xlu0 %4260, %v4099
    %v4262 = vpop.permute.xlu0 %4261
    %4265 = vset.pattern.permute.xlu0 0
    %4266 = vperm.xlu0 %4265, %v4100
    %v4267 = vpop.permute.xlu0 %4266
    %4270 = vset.pattern.permute.xlu0 0
    %4271 = vperm.xlu0 %4270, %v4101
    %v4272 = vpop.permute.xlu0 %4271
    %4275 = vset.pattern.permute.xlu0 0
    %4276 = vperm.xlu0 %4275, %v4102
    %v4277 = vpop.permute.xlu0 %4276
    %4280 = vset.pattern.permute.xlu0 0
    %4281 = vperm.xlu0 %4280, %v4103
    %v4282 = vpop.permute.xlu0 %4281
    %4285 = vset.pattern.permute.xlu0 0
    %4286 = vperm.xlu0 %4285, %v4104
    %v4287 = vpop.permute.xlu0 %4286
    %4290 = vset.pattern.permute.xlu0 0
    %4291 = vperm.xlu0 %4290, %v4105
    %v4292 = vpop.permute.xlu0 %4291
    %4295 = vset.pattern.permute.xlu0 0
    %4296 = vperm.xlu0 %4295, %v4106
    %v4297 = vpop.permute.xlu0 %4296
    %4300 = vset.pattern.permute.xlu0 0
    %4301 = vperm.xlu0 %4300, %v4107
    %v4302 = vpop.permute.xlu0 %4301
    %4305 = vset.pattern.permute.xlu0 0
    %4306 = vperm.xlu0 %4305, %v4108
    %v4307 = vpop.permute.xlu0 %4306
    %4310 = vset.pattern.permute.xlu0 0
    %4311 = vperm.xlu0 %4310, %v4109
    %v4312 = vpop.permute.xlu0 %4311
    %4315 = vset.pattern.permute.xlu0 0
    %4316 = vperm.xlu0 %4315, %v4110
    %v4317 = vpop.permute.xlu0 %4316
    %4320 = vset.pattern.permute.xlu0 0
    %4321 = vperm.xlu0 %4320, %v4111
    %v4322 = vpop.permute.xlu0 %4321
    %4325 = vset.pattern.permute.xlu0 0
    %4326 = vperm.xlu0 %4325, %v4112
    %v4327 = vpop.permute.xlu0 %4326
    %4330 = vset.pattern.permute.xlu0 0
    %4331 = vperm.xlu0 %4330, %v4113
    %v4332 = vpop.permute.xlu0 %4331
    %4335 = vset.pattern.permute.xlu0 0
    %4336 = vperm.xlu0 %4335, %v4114
    %v4337 = vpop.permute.xlu0 %4336
    %4340 = vset.pattern.permute.xlu0 0
    %4341 = vperm.xlu0 %4340, %v4115
    %v4342 = vpop.permute.xlu0 %4341
    %4345 = vset.pattern.permute.xlu0 0
    %4346 = vperm.xlu0 %4345, %v4116
    %v4347 = vpop.permute.xlu0 %4346
    %4350 = vset.pattern.permute.xlu0 0
    %4351 = vperm.xlu0 %4350, %v4117
    %v4352 = vpop.permute.xlu0 %4351
    %4355 = vset.pattern.permute.xlu0 0
    %4356 = vperm.xlu0 %4355, %v4118
    %v4357 = vpop.permute.xlu0 %4356
    %4360 = vset.pattern.permute.xlu0 0
    %4361 = vperm.xlu0 %4360, %v4119
    %v4362 = vpop.permute.xlu0 %4361
    %4365 = vset.pattern.permute.xlu0 0
    %4366 = vperm.xlu0 %4365, %v4120
    %v4367 = vpop.permute.xlu0 %4366
    %4370 = vset.pattern.permute.xlu0 0
    %4371 = vperm.xlu0 %4370, %v4121
    %v4372 = vpop.permute.xlu0 %4371
    %4375 = vset.pattern.permute.xlu0 0
    %4376 = vperm.xlu0 %4375, %v4122
    %v4377 = vpop.permute.xlu0 %4376
    %4380 = vset.pattern.permute.xlu0 0
    %4381 = vperm.xlu0 %4380, %v4123
    %v4382 = vpop.permute.xlu0 %4381
    %4385 = vset.pattern.permute.xlu0 0
    %4386 = vperm.xlu0 %4385, %v4124
    %v4387 = vpop.permute.xlu0 %4386
    %4390 = vset.pattern.permute.xlu0 0
    %4391 = vperm.xlu0 %4390, %v4125
    %v4392 = vpop.permute.xlu0 %4391
    %4395 = vset.pattern.permute.xlu0 0
    %4396 = vperm.xlu0 %4395, %v4126
    %v4397 = vpop.permute.xlu0 %4396
    %4400 = vset.pattern.permute.xlu0 0
    %4401 = vperm.xlu0 %4400, %v4127
    %v4402 = vpop.permute.xlu0 %4401
    %4405 = vset.pattern.permute.xlu0 0
    %4406 = vperm.xlu0 %4405, %v4128
    %v4407 = vpop.permute.xlu0 %4406
    %4410 = vset.pattern.permute.xlu0 0
    %4411 = vperm.xlu0 %4410, %v4129
    %v4412 = vpop.permute.xlu0 %4411
    %4415 = vset.pattern.permute.xlu0 0
    %4416 = vperm.xlu0 %4415, %v4130
    %v4417 = vpop.permute.xlu0 %4416
    %4420 = vset.pattern.permute.xlu0 0
    %4421 = vperm.xlu0 %4420, %v4131
    %v4422 = vpop.permute.xlu0 %4421
    %4425 = vset.pattern.permute.xlu0 0
    %4426 = vperm.xlu0 %4425, %v4132
    %v4427 = vpop.permute.xlu0 %4426
    %4430 = vset.pattern.permute.xlu0 0
    %4431 = vperm.xlu0 %4430, %v4133
    %v4432 = vpop.permute.xlu0 %4431
    %4435 = vset.pattern.permute.xlu0 0
    %4436 = vperm.xlu0 %4435, %v4134
    %v4437 = vpop.permute.xlu0 %4436
    %4440 = vset.pattern.permute.xlu0 0
    %4441 = vperm.xlu0 %4440, %v4135
    %v4442 = vpop.permute.xlu0 %4441
    %4445 = vset.pattern.permute.xlu0 0
    %4446 = vperm.xlu0 %4445, %v4136
    %v4447 = vpop.permute.xlu0 %4446
    %4450 = vset.pattern.permute.xlu0 0
    %4451 = vperm.xlu0 %4450, %v4137
    %v4452 = vpop.permute.xlu0 %4451
    %4455 = vset.pattern.permute.xlu0 0
    %4456 = vperm.xlu0 %4455, %v4138
    %v4457 = vpop.permute.xlu0 %4456
    %v4459 = vsub.f32 %v4142, %v70
    %v4460 = vsub.f32 %v4147, %v70
    %v4461 = vsub.f32 %v4152, %v70
    %v4462 = vsub.f32 %v4157, %v70
    %v4463 = vsub.f32 %v4162, %v70
    %v4464 = vsub.f32 %v4167, %v70
    %v4465 = vsub.f32 %v4172, %v70
    %v4466 = vsub.f32 %v4177, %v70
    %v4467 = vsub.f32 %v4182, %v70
    %v4468 = vsub.f32 %v4187, %v70
    %v4469 = vsub.f32 %v4192, %v70
    %v4470 = vsub.f32 %v4197, %v70
    %v4471 = vsub.f32 %v4202, %v70
    %v4472 = vsub.f32 %v4207, %v70
    %v4473 = vsub.f32 %v4212, %v70
    %v4474 = vsub.f32 %v4217, %v70
    %v4475 = vsub.f32 %v4222, %v70
    %v4476 = vsub.f32 %v4227, %v70
    %v4477 = vsub.f32 %v4232, %v70
    %v4478 = vsub.f32 %v4237, %v70
    %v4479 = vsub.f32 %v4242, %v70
    %v4480 = vsub.f32 %v4247, %v70
    %v4481 = vsub.f32 %v4252, %v70
    %v4482 = vsub.f32 %v4257, %v70
    %v4483 = vsub.f32 %v4262, %v70
    %v4484 = vsub.f32 %v4267, %v70
    %v4485 = vsub.f32 %v4272, %v70
    %v4486 = vsub.f32 %v4277, %v70
    %v4487 = vsub.f32 %v4282, %v70
    %v4488 = vsub.f32 %v4287, %v70
    %v4489 = vsub.f32 %v4292, %v70
    %v4490 = vsub.f32 %v4297, %v70
    %v4491 = vsub.f32 %v4302, %v70
    %v4492 = vsub.f32 %v4307, %v70
    %v4493 = vsub.f32 %v4312, %v70
    %v4494 = vsub.f32 %v4317, %v70
    %v4495 = vsub.f32 %v4322, %v70
    %v4496 = vsub.f32 %v4327, %v70
    %v4497 = vsub.f32 %v4332, %v70
    %v4498 = vsub.f32 %v4337, %v70
    %v4499 = vsub.f32 %v4342, %v70
    %v4500 = vsub.f32 %v4347, %v70
    %v4501 = vsub.f32 %v4352, %v70
    %v4502 = vsub.f32 %v4357, %v70
    %v4503 = vsub.f32 %v4362, %v70
    %v4504 = vsub.f32 %v4367, %v70
    %v4505 = vsub.f32 %v4372, %v70
    %v4506 = vsub.f32 %v4377, %v70
    %v4507 = vsub.f32 %v4382, %v70
    %v4508 = vsub.f32 %v4387, %v70
    %v4509 = vsub.f32 %v4392, %v70
    %v4510 = vsub.f32 %v4397, %v70
    %v4511 = vsub.f32 %v4402, %v70
    %v4512 = vsub.f32 %v4407, %v70
    %v4513 = vsub.f32 %v4412, %v70
    %v4514 = vsub.f32 %v4417, %v70
    %v4515 = vsub.f32 %v4422, %v70
    %v4516 = vsub.f32 %v4427, %v70
    %v4517 = vsub.f32 %v4432, %v70
    %v4518 = vsub.f32 %v4437, %v70
    %v4519 = vsub.f32 %v4442, %v70
    %v4520 = vsub.f32 %v4447, %v70
    %v4521 = vsub.f32 %v4452, %v70
    %v4522 = vsub.f32 %v4457, %v70
    %v4523 = vmul.f32 %v4459, %v4459
    %v4524 = vmul.f32 %v4460, %v4460
    %v4525 = vmul.f32 %v4461, %v4461
    %v4526 = vmul.f32 %v4462, %v4462
    %v4527 = vmul.f32 %v4463, %v4463
    %v4528 = vmul.f32 %v4464, %v4464
    %v4529 = vmul.f32 %v4465, %v4465
    %v4530 = vmul.f32 %v4466, %v4466
    %v4531 = vmul.f32 %v4467, %v4467
    %v4532 = vmul.f32 %v4468, %v4468
    %v4533 = vmul.f32 %v4469, %v4469
    %v4534 = vmul.f32 %v4470, %v4470
    %v4535 = vmul.f32 %v4471, %v4471
    %v4536 = vmul.f32 %v4472, %v4472
    %v4537 = vmul.f32 %v4473, %v4473
    %v4538 = vmul.f32 %v4474, %v4474
    %v4539 = vmul.f32 %v4475, %v4475
    %v4540 = vmul.f32 %v4476, %v4476
    %v4541 = vmul.f32 %v4477, %v4477
    %v4542 = vmul.f32 %v4478, %v4478
    %v4543 = vmul.f32 %v4479, %v4479
    %v4544 = vmul.f32 %v4480, %v4480
    %v4545 = vmul.f32 %v4481, %v4481
    %v4546 = vmul.f32 %v4482, %v4482
    %v4547 = vmul.f32 %v4483, %v4483
    %v4548 = vmul.f32 %v4484, %v4484
    %v4549 = vmul.f32 %v4485, %v4485
    %v4550 = vmul.f32 %v4486, %v4486
    %v4551 = vmul.f32 %v4487, %v4487
    %v4552 = vmul.f32 %v4488, %v4488
    %v4553 = vmul.f32 %v4489, %v4489
    %v4554 = vmul.f32 %v4490, %v4490
    %v4555 = vmul.f32 %v4491, %v4491
    %v4556 = vmul.f32 %v4492, %v4492
    %v4557 = vmul.f32 %v4493, %v4493
    %v4558 = vmul.f32 %v4494, %v4494
    %v4559 = vmul.f32 %v4495, %v4495
    %v4560 = vmul.f32 %v4496, %v4496
    %v4561 = vmul.f32 %v4497, %v4497
    %v4562 = vmul.f32 %v4498, %v4498
    %v4563 = vmul.f32 %v4499, %v4499
    %v4564 = vmul.f32 %v4500, %v4500
    %v4565 = vmul.f32 %v4501, %v4501
    %v4566 = vmul.f32 %v4502, %v4502
    %v4567 = vmul.f32 %v4503, %v4503
    %v4568 = vmul.f32 %v4504, %v4504
    %v4569 = vmul.f32 %v4505, %v4505
    %v4570 = vmul.f32 %v4506, %v4506
    %v4571 = vmul.f32 %v4507, %v4507
    %v4572 = vmul.f32 %v4508, %v4508
    %v4573 = vmul.f32 %v4509, %v4509
    %v4574 = vmul.f32 %v4510, %v4510
    %v4575 = vmul.f32 %v4511, %v4511
    %v4576 = vmul.f32 %v4512, %v4512
    %v4577 = vmul.f32 %v4513, %v4513
    %v4578 = vmul.f32 %v4514, %v4514
    %v4579 = vmul.f32 %v4515, %v4515
    %v4580 = vmul.f32 %v4516, %v4516
    %v4581 = vmul.f32 %v4517, %v4517
    %v4582 = vmul.f32 %v4518, %v4518
    %v4583 = vmul.f32 %v4519, %v4519
    %v4584 = vmul.f32 %v4520, %v4520
    %v4585 = vmul.f32 %v4521, %v4521
    %v4586 = vmul.f32 %v4522, %v4522
    %v4587 = vsub.f32 0.0, %v4523
    %v4588 = vsub.f32 0.0, %v4524
    %v4589 = vsub.f32 0.0, %v4525
    %v4590 = vsub.f32 0.0, %v4526
    %v4591 = vsub.f32 0.0, %v4527
    %v4592 = vsub.f32 0.0, %v4528
    %v4593 = vsub.f32 0.0, %v4529
    %v4594 = vsub.f32 0.0, %v4530
    %v4595 = vsub.f32 0.0, %v4531
    %v4596 = vsub.f32 0.0, %v4532
    %v4597 = vsub.f32 0.0, %v4533
    %v4598 = vsub.f32 0.0, %v4534
    %v4599 = vsub.f32 0.0, %v4535
    %v4600 = vsub.f32 0.0, %v4536
    %v4601 = vsub.f32 0.0, %v4537
    %v4602 = vsub.f32 0.0, %v4538
    %v4603 = vsub.f32 0.0, %v4539
    %v4604 = vsub.f32 0.0, %v4540
    %v4605 = vsub.f32 0.0, %v4541
    %v4606 = vsub.f32 0.0, %v4542
    %v4607 = vsub.f32 0.0, %v4543
    %v4608 = vsub.f32 0.0, %v4544
    %v4609 = vsub.f32 0.0, %v4545
    %v4610 = vsub.f32 0.0, %v4546
    %v4611 = vsub.f32 0.0, %v4547
    %v4612 = vsub.f32 0.0, %v4548
    %v4613 = vsub.f32 0.0, %v4549
    %v4614 = vsub.f32 0.0, %v4550
    %v4615 = vsub.f32 0.0, %v4551
    %v4616 = vsub.f32 0.0, %v4552
    %v4617 = vsub.f32 0.0, %v4553
    %v4618 = vsub.f32 0.0, %v4554
    %v4619 = vsub.f32 0.0, %v4555
    %v4620 = vsub.f32 0.0, %v4556
    %v4621 = vsub.f32 0.0, %v4557
    %v4622 = vsub.f32 0.0, %v4558
    %v4623 = vsub.f32 0.0, %v4559
    %v4624 = vsub.f32 0.0, %v4560
    %v4625 = vsub.f32 0.0, %v4561
    %v4626 = vsub.f32 0.0, %v4562
    %v4627 = vsub.f32 0.0, %v4563
    %v4628 = vsub.f32 0.0, %v4564
    %v4629 = vsub.f32 0.0, %v4565
    %v4630 = vsub.f32 0.0, %v4566
    %v4631 = vsub.f32 0.0, %v4567
    %v4632 = vsub.f32 0.0, %v4568
    %v4633 = vsub.f32 0.0, %v4569
    %v4634 = vsub.f32 0.0, %v4570
    %v4635 = vsub.f32 0.0, %v4571
    %v4636 = vsub.f32 0.0, %v4572
    %v4637 = vsub.f32 0.0, %v4573
    %v4638 = vsub.f32 0.0, %v4574
    %v4639 = vsub.f32 0.0, %v4575
    %v4640 = vsub.f32 0.0, %v4576
    %v4641 = vsub.f32 0.0, %v4577
    %v4642 = vsub.f32 0.0, %v4578
    %v4643 = vsub.f32 0.0, %v4579
    %v4644 = vsub.f32 0.0, %v4580
    %v4645 = vsub.f32 0.0, %v4581
    %v4646 = vsub.f32 0.0, %v4582
    %v4647 = vsub.f32 0.0, %v4583
    %v4648 = vsub.f32 0.0, %v4584
    %v4649 = vsub.f32 0.0, %v4585
    %v4650 = vsub.f32 0.0, %v4586
    %v4651 = vpack.c.bf16 %v4588, %v4587
    %v4652 = vpack.c.bf16 %v4590, %v4589
    %v4653 = vpack.c.bf16 %v4592, %v4591
    %v4654 = vpack.c.bf16 %v4594, %v4593
    %v4655 = vpack.c.bf16 %v4596, %v4595
    %v4656 = vpack.c.bf16 %v4598, %v4597
    %v4657 = vpack.c.bf16 %v4600, %v4599
    %v4658 = vpack.c.bf16 %v4602, %v4601
    %v4659 = vpack.c.bf16 %v4604, %v4603
    %v4660 = vpack.c.bf16 %v4606, %v4605
    %v4661 = vpack.c.bf16 %v4608, %v4607
    %v4662 = vpack.c.bf16 %v4610, %v4609
    %v4663 = vpack.c.bf16 %v4612, %v4611
    %v4664 = vpack.c.bf16 %v4614, %v4613
    %v4665 = vpack.c.bf16 %v4616, %v4615
    %v4666 = vpack.c.bf16 %v4618, %v4617
    %v4667 = vpack.c.bf16 %v4620, %v4619
    %v4668 = vpack.c.bf16 %v4622, %v4621
    %v4669 = vpack.c.bf16 %v4624, %v4623
    %v4670 = vpack.c.bf16 %v4626, %v4625
    %v4671 = vpack.c.bf16 %v4628, %v4627
    %v4672 = vpack.c.bf16 %v4630, %v4629
    %v4673 = vpack.c.bf16 %v4632, %v4631
    %v4674 = vpack.c.bf16 %v4634, %v4633
    %v4675 = vpack.c.bf16 %v4636, %v4635
    %v4676 = vpack.c.bf16 %v4638, %v4637
    %v4677 = vpack.c.bf16 %v4640, %v4639
    %v4678 = vpack.c.bf16 %v4642, %v4641
    %v4679 = vpack.c.bf16 %v4644, %v4643
    %v4680 = vpack.c.bf16 %v4646, %v4645
    %v4681 = vpack.c.bf16 %v4648, %v4647
    %v4682 = vpack.c.bf16 %v4650, %v4649
    %v4684 = vmul.bf16 %v4651, 1069105081
    %v4685 = vpow.bf16.pop %v4684
    %v4687 = vmul.bf16 %v4652, 1069105081
    %v4688 = vpow.bf16.pop %v4687
    %v4690 = vmul.bf16 %v4653, 1069105081
    %v4691 = vpow.bf16.pop %v4690
    %v4693 = vmul.bf16 %v4654, 1069105081
    %v4694 = vpow.bf16.pop %v4693
    %v4696 = vmul.bf16 %v4655, 1069105081
    %v4697 = vpow.bf16.pop %v4696
    %v4699 = vmul.bf16 %v4656, 1069105081
    %v4700 = vpow.bf16.pop %v4699
    %v4702 = vmul.bf16 %v4657, 1069105081
    %v4703 = vpow.bf16.pop %v4702
    %v4705 = vmul.bf16 %v4658, 1069105081
    %v4706 = vpow.bf16.pop %v4705
    %v4708 = vmul.bf16 %v4659, 1069105081
    %v4709 = vpow.bf16.pop %v4708
    %v4711 = vmul.bf16 %v4660, 1069105081
    %v4712 = vpow.bf16.pop %v4711
    %v4714 = vmul.bf16 %v4661, 1069105081
    %v4715 = vpow.bf16.pop %v4714
    %v4717 = vmul.bf16 %v4662, 1069105081
    %v4718 = vpow.bf16.pop %v4717
    %v4720 = vmul.bf16 %v4663, 1069105081
    %v4721 = vpow.bf16.pop %v4720
    %v4723 = vmul.bf16 %v4664, 1069105081
    %v4724 = vpow.bf16.pop %v4723
    %v4726 = vmul.bf16 %v4665, 1069105081
    %v4727 = vpow.bf16.pop %v4726
    %v4729 = vmul.bf16 %v4666, 1069105081
    %v4730 = vpow.bf16.pop %v4729
    %v4732 = vmul.bf16 %v4667, 1069105081
    %v4733 = vpow.bf16.pop %v4732
    %v4735 = vmul.bf16 %v4668, 1069105081
    %v4736 = vpow.bf16.pop %v4735
    %v4738 = vmul.bf16 %v4669, 1069105081
    %v4739 = vpow.bf16.pop %v4738
    %v4741 = vmul.bf16 %v4670, 1069105081
    %v4742 = vpow.bf16.pop %v4741
    %v4744 = vmul.bf16 %v4671, 1069105081
    %v4745 = vpow.bf16.pop %v4744
    %v4747 = vmul.bf16 %v4672, 1069105081
    %v4748 = vpow.bf16.pop %v4747
    %v4750 = vmul.bf16 %v4673, 1069105081
    %v4751 = vpow.bf16.pop %v4750
    %v4753 = vmul.bf16 %v4674, 1069105081
    %v4754 = vpow.bf16.pop %v4753
    %v4756 = vmul.bf16 %v4675, 1069105081
    %v4757 = vpow.bf16.pop %v4756
    %v4759 = vmul.bf16 %v4676, 1069105081
    %v4760 = vpow.bf16.pop %v4759
    %v4762 = vmul.bf16 %v4677, 1069105081
    %v4763 = vpow.bf16.pop %v4762
    %v4765 = vmul.bf16 %v4678, 1069105081
    %v4766 = vpow.bf16.pop %v4765
    %v4768 = vmul.bf16 %v4679, 1069105081
    %v4769 = vpow.bf16.pop %v4768
    %v4771 = vmul.bf16 %v4680, 1069105081
    %v4772 = vpow.bf16.pop %v4771
    %v4774 = vmul.bf16 %v4681, 1069105081
    %v4775 = vpow.bf16.pop %v4774
    %v4777 = vmul.bf16 %v4682, 1069105081
    %v4778 = vpow.bf16.pop %v4777
    %v4779 = vld [vmem:[%s48 + $0x50] sm:$0xff]
    %v4780 = vld [vmem:[%s48 + $0x58] sm:$0xff]
    %v4783 = vunpack.c.l.b16 %v4779
    %v4784 = vunpack.c.h.b16 %v4779
    %v4785 = vunpack.c.l.b16 %v4780
    %v4786 = vunpack.c.h.b16 %v4780
    %v4787 = vpack.c.b16 %v4783, %v4783
    %v4788 = vpack.c.b16 %v4784, %v4784
    %v4789 = vpack.c.b16 %v4785, %v4785
    %v4790 = vpack.c.b16 %v4786, %v4786
    %4795 = vmatprep.subr.bf16.mxu0 0
    %4796 = vmatpush1.bf16.msra.mxu0 %v4685
    %4797 = vmatprep.subr.bf16.mxu0 0
    %4798 = vmatpush1.bf16.msra.mxu0 %v4688
    %4799 = vmatprep.subr.bf16.mxu0 0
    %4800 = vmatpush1.bf16.msra.mxu0 %v4691
    %4801 = vmatprep.subr.bf16.mxu0 0
    %4802 = vmatpush1.bf16.msra.mxu0 %v4694
    %4803 = vmatprep.subr.bf16.mxu0 0
    %4804 = vmatpush1.bf16.msra.mxu0 %v4697
    %4805 = vmatprep.subr.bf16.mxu0 0
    %4806 = vmatpush1.bf16.msra.mxu0 %v4700
    %4807 = vmatprep.subr.bf16.mxu0 0
    %4808 = vmatpush1.bf16.msra.mxu0 %v4703
    %4809 = vmatprep.subr.bf16.mxu0 0
    %4810 = vmatpush1.bf16.msra.mxu0 %v4706
    %4811 = vmatprep.subr.bf16.mxu0 0
    %4812 = vmatpush1.bf16.msra.mxu0 %v4709
    %4813 = vmatprep.subr.bf16.mxu0 0
    %4814 = vmatpush1.bf16.msra.mxu0 %v4712
    %4815 = vmatprep.subr.bf16.mxu0 0
    %4816 = vmatpush1.bf16.msra.mxu0 %v4715
    %4817 = vmatprep.subr.bf16.mxu0 0
    %4818 = vmatpush1.bf16.msra.mxu0 %v4718
    %4819 = vmatprep.subr.bf16.mxu0 0
    %4820 = vmatpush1.bf16.msra.mxu0 %v4721
    %4821 = vmatprep.subr.bf16.mxu0 0
    %4822 = vmatpush1.bf16.msra.mxu0 %v4724
    %4823 = vmatprep.subr.bf16.mxu0 0
    %4824 = vmatpush1.bf16.msra.mxu0 %v4727
    %4825 = vmatprep.subr.bf16.mxu0 0
    %4826 = vmatpush1.bf16.msra.mxu0 %v4730
    %4827 = vmatprep.mubr.bf16.mxu0 %v4788
    %4828 = vmatmul.mubr.bf16.gmra.mrb[0].mxu0 %v4787
    %v4829 = vpop.f32.mrb[0].mxu0
    %v4830 = vadd.f32 0.0, %v4829
    %v4831 = vpop.f32.mrb[0].mxu0
    %v4832 = vpop.f32.mrb[0].mxu0
    %v4833 = vpop.f32.mrb[0].mxu0
    %4834 = vdwg.mxu0
    %4835 = vmatprep.subr.bf16.mxu0 0
    %4836 = vmatpush1.bf16.msra.mxu0 %v4733
    %4837 = vmatprep.subr.bf16.mxu0 0
    %4838 = vmatpush1.bf16.msra.mxu0 %v4736
    %4839 = vmatprep.subr.bf16.mxu0 0
    %4840 = vmatpush1.bf16.msra.mxu0 %v4739
    %4841 = vmatprep.subr.bf16.mxu0 0
    %4842 = vmatpush1.bf16.msra.mxu0 %v4742
    %4843 = vmatprep.subr.bf16.mxu0 0
    %4844 = vmatpush1.bf16.msra.mxu0 %v4745
    %4845 = vmatprep.subr.bf16.mxu0 0
    %4846 = vmatpush1.bf16.msra.mxu0 %v4748
    %4847 = vmatprep.subr.bf16.mxu0 0
    %4848 = vmatpush1.bf16.msra.mxu0 %v4751
    %4849 = vmatprep.subr.bf16.mxu0 0
    %4850 = vmatpush1.bf16.msra.mxu0 %v4754
    %4851 = vmatprep.subr.bf16.mxu0 0
    %4852 = vmatpush1.bf16.msra.mxu0 %v4757
    %4853 = vmatprep.subr.bf16.mxu0 0
    %4854 = vmatpush1.bf16.msra.mxu0 %v4760
    %4855 = vmatprep.subr.bf16.mxu0 0
    %4856 = vmatpush1.bf16.msra.mxu0 %v4763
    %4857 = vmatprep.subr.bf16.mxu0 0
    %4858 = vmatpush1.bf16.msra.mxu0 %v4766
    %4859 = vmatprep.subr.bf16.mxu0 0
    %4860 = vmatpush1.bf16.msra.mxu0 %v4769
    %4861 = vmatprep.subr.bf16.mxu0 0
    %4862 = vmatpush1.bf16.msra.mxu0 %v4772
    %4863 = vmatprep.subr.bf16.mxu0 0
    %4864 = vmatpush1.bf16.msra.mxu0 %v4775
    %4865 = vmatprep.subr.bf16.mxu0 0
    %4866 = vmatpush1.bf16.msra.mxu0 %v4778
    %4867 = vmatprep.mubr.bf16.mxu0 %v4790
    %4868 = vmatmul.mubr.bf16.gmra.mrb[0].mxu0 %v4789
    %v4869 = vpop.f32.mrb[0].mxu0
    %v4870 = vadd.f32 %v4830, %v4869
    %v4871 = vpop.f32.mrb[0].mxu0
    %v4872 = vpop.f32.mrb[0].mxu0
    %v4873 = vpop.f32.mrb[0].mxu0
    %4874 = vdwg.mxu0
    %v4875 = vadd.f32 %v4074, %v4870
    %v4876 = vld [vmem:[%s56 + $0xc00] sm:$0xff]
    %v4877 = vld [vmem:[%s56 + $0xc08] sm:$0xff]
    %v4878 = vld [vmem:[%s56 + $0xc10] sm:$0xff]
    %v4879 = vld [vmem:[%s56 + $0xc18] sm:$0xff]
    %v4880 = vld [vmem:[%s56 + $0xc20] sm:$0xff]
    %v4881 = vld [vmem:[%s56 + $0xc28] sm:$0xff]
    %v4882 = vld [vmem:[%s56 + $0xc30] sm:$0xff]
    %v4883 = vld [vmem:[%s56 + $0xc38] sm:$0xff]
    %v4884 = vld [vmem:[%s56 + $0xc40] sm:$0xff]
    %v4885 = vld [vmem:[%s56 + $0xc48] sm:$0xff]
    %v4886 = vld [vmem:[%s56 + $0xc50] sm:$0xff]
    %v4887 = vld [vmem:[%s56 + $0xc58] sm:$0xff]
    %v4888 = vld [vmem:[%s56 + $0xc60] sm:$0xff]
    %v4889 = vld [vmem:[%s56 + $0xc68] sm:$0xff]
    %v4890 = vld [vmem:[%s56 + $0xc70] sm:$0xff]
    %v4891 = vld [vmem:[%s56 + $0xc78] sm:$0xff]
    %v4892 = vld [vmem:[%s56 + $0xc80] sm:$0xff]
    %v4893 = vld [vmem:[%s56 + $0xc88] sm:$0xff]
    %v4894 = vld [vmem:[%s56 + $0xc90] sm:$0xff]
    %v4895 = vld [vmem:[%s56 + $0xc98] sm:$0xff]
    %v4896 = vld [vmem:[%s56 + $0xca0] sm:$0xff]
    %v4897 = vld [vmem:[%s56 + $0xca8] sm:$0xff]
    %v4898 = vld [vmem:[%s56 + $0xcb0] sm:$0xff]
    %v4899 = vld [vmem:[%s56 + $0xcb8] sm:$0xff]
    %v4900 = vld [vmem:[%s56 + $0xcc0] sm:$0xff]
    %v4901 = vld [vmem:[%s56 + $0xcc8] sm:$0xff]
    %v4902 = vld [vmem:[%s56 + $0xcd0] sm:$0xff]
    %v4903 = vld [vmem:[%s56 + $0xcd8] sm:$0xff]
    %v4904 = vld [vmem:[%s56 + $0xce0] sm:$0xff]
    %v4905 = vld [vmem:[%s56 + $0xce8] sm:$0xff]
    %v4906 = vld [vmem:[%s56 + $0xcf0] sm:$0xff]
    %v4907 = vld [vmem:[%s56 + $0xcf8] sm:$0xff]
    %v4908 = vld [vmem:[%s56 + $0xd00] sm:$0xff]
    %v4909 = vld [vmem:[%s56 + $0xd08] sm:$0xff]
    %v4910 = vld [vmem:[%s56 + $0xd10] sm:$0xff]
    %v4911 = vld [vmem:[%s56 + $0xd18] sm:$0xff]
    %v4912 = vld [vmem:[%s56 + $0xd20] sm:$0xff]
    %v4913 = vld [vmem:[%s56 + $0xd28] sm:$0xff]
    %v4914 = vld [vmem:[%s56 + $0xd30] sm:$0xff]
    %v4915 = vld [vmem:[%s56 + $0xd38] sm:$0xff]
    %v4916 = vld [vmem:[%s56 + $0xd40] sm:$0xff]
    %v4917 = vld [vmem:[%s56 + $0xd48] sm:$0xff]
    %v4918 = vld [vmem:[%s56 + $0xd50] sm:$0xff]
    %v4919 = vld [vmem:[%s56 + $0xd58] sm:$0xff]
    %v4920 = vld [vmem:[%s56 + $0xd60] sm:$0xff]
    %v4921 = vld [vmem:[%s56 + $0xd68] sm:$0xff]
    %v4922 = vld [vmem:[%s56 + $0xd70] sm:$0xff]
    %v4923 = vld [vmem:[%s56 + $0xd78] sm:$0xff]
    %v4924 = vld [vmem:[%s56 + $0xd80] sm:$0xff]
    %v4925 = vld [vmem:[%s56 + $0xd88] sm:$0xff]
    %v4926 = vld [vmem:[%s56 + $0xd90] sm:$0xff]
    %v4927 = vld [vmem:[%s56 + $0xd98] sm:$0xff]
    %v4928 = vld [vmem:[%s56 + $0xda0] sm:$0xff]
    %v4929 = vld [vmem:[%s56 + $0xda8] sm:$0xff]
    %v4930 = vld [vmem:[%s56 + $0xdb0] sm:$0xff]
    %v4931 = vld [vmem:[%s56 + $0xdb8] sm:$0xff]
    %v4932 = vld [vmem:[%s56 + $0xdc0] sm:$0xff]
    %v4933 = vld [vmem:[%s56 + $0xdc8] sm:$0xff]
    %v4934 = vld [vmem:[%s56 + $0xdd0] sm:$0xff]
    %v4935 = vld [vmem:[%s56 + $0xdd8] sm:$0xff]
    %v4936 = vld [vmem:[%s56 + $0xde0] sm:$0xff]
    %v4937 = vld [vmem:[%s56 + $0xde8] sm:$0xff]
    %v4938 = vld [vmem:[%s56 + $0xdf0] sm:$0xff]
    %v4939 = vld [vmem:[%s56 + $0xdf8] sm:$0xff]
    %4941 = vset.pattern.permute.xlu0 0
    %4942 = vperm.xlu0 %4941, %v4876
    %v4943 = vpop.permute.xlu0 %4942
    %4946 = vset.pattern.permute.xlu0 0
    %4947 = vperm.xlu0 %4946, %v4877
    %v4948 = vpop.permute.xlu0 %4947
    %4951 = vset.pattern.permute.xlu0 0
    %4952 = vperm.xlu0 %4951, %v4878
    %v4953 = vpop.permute.xlu0 %4952
    %4956 = vset.pattern.permute.xlu0 0
    %4957 = vperm.xlu0 %4956, %v4879
    %v4958 = vpop.permute.xlu0 %4957
    %4961 = vset.pattern.permute.xlu0 0
    %4962 = vperm.xlu0 %4961, %v4880
    %v4963 = vpop.permute.xlu0 %4962
    %4966 = vset.pattern.permute.xlu0 0
    %4967 = vperm.xlu0 %4966, %v4881
    %v4968 = vpop.permute.xlu0 %4967
    %4971 = vset.pattern.permute.xlu0 0
    %4972 = vperm.xlu0 %4971, %v4882
    %v4973 = vpop.permute.xlu0 %4972
    %4976 = vset.pattern.permute.xlu0 0
    %4977 = vperm.xlu0 %4976, %v4883
    %v4978 = vpop.permute.xlu0 %4977
    %4981 = vset.pattern.permute.xlu0 0
    %4982 = vperm.xlu0 %4981, %v4884
    %v4983 = vpop.permute.xlu0 %4982
    %4986 = vset.pattern.permute.xlu0 0
    %4987 = vperm.xlu0 %4986, %v4885
    %v4988 = vpop.permute.xlu0 %4987
    %4991 = vset.pattern.permute.xlu0 0
    %4992 = vperm.xlu0 %4991, %v4886
    %v4993 = vpop.permute.xlu0 %4992
    %4996 = vset.pattern.permute.xlu0 0
    %4997 = vperm.xlu0 %4996, %v4887
    %v4998 = vpop.permute.xlu0 %4997
    %5001 = vset.pattern.permute.xlu0 0
    %5002 = vperm.xlu0 %5001, %v4888
    %v5003 = vpop.permute.xlu0 %5002
    %5006 = vset.pattern.permute.xlu0 0
    %5007 = vperm.xlu0 %5006, %v4889
    %v5008 = vpop.permute.xlu0 %5007
    %5011 = vset.pattern.permute.xlu0 0
    %5012 = vperm.xlu0 %5011, %v4890
    %v5013 = vpop.permute.xlu0 %5012
    %5016 = vset.pattern.permute.xlu0 0
    %5017 = vperm.xlu0 %5016, %v4891
    %v5018 = vpop.permute.xlu0 %5017
    %5021 = vset.pattern.permute.xlu0 0
    %5022 = vperm.xlu0 %5021, %v4892
    %v5023 = vpop.permute.xlu0 %5022
    %5026 = vset.pattern.permute.xlu0 0
    %5027 = vperm.xlu0 %5026, %v4893
    %v5028 = vpop.permute.xlu0 %5027
    %5031 = vset.pattern.permute.xlu0 0
    %5032 = vperm.xlu0 %5031, %v4894
    %v5033 = vpop.permute.xlu0 %5032
    %5036 = vset.pattern.permute.xlu0 0
    %5037 = vperm.xlu0 %5036, %v4895
    %v5038 = vpop.permute.xlu0 %5037
    %5041 = vset.pattern.permute.xlu0 0
    %5042 = vperm.xlu0 %5041, %v4896
    %v5043 = vpop.permute.xlu0 %5042
    %5046 = vset.pattern.permute.xlu0 0
    %5047 = vperm.xlu0 %5046, %v4897
    %v5048 = vpop.permute.xlu0 %5047
    %5051 = vset.pattern.permute.xlu0 0
    %5052 = vperm.xlu0 %5051, %v4898
    %v5053 = vpop.permute.xlu0 %5052
    %5056 = vset.pattern.permute.xlu0 0
    %5057 = vperm.xlu0 %5056, %v4899
    %v5058 = vpop.permute.xlu0 %5057
    %5061 = vset.pattern.permute.xlu0 0
    %5062 = vperm.xlu0 %5061, %v4900
    %v5063 = vpop.permute.xlu0 %5062
    %5066 = vset.pattern.permute.xlu0 0
    %5067 = vperm.xlu0 %5066, %v4901
    %v5068 = vpop.permute.xlu0 %5067
    %5071 = vset.pattern.permute.xlu0 0
    %5072 = vperm.xlu0 %5071, %v4902
    %v5073 = vpop.permute.xlu0 %5072
    %5076 = vset.pattern.permute.xlu0 0
    %5077 = vperm.xlu0 %5076, %v4903
    %v5078 = vpop.permute.xlu0 %5077
    %5081 = vset.pattern.permute.xlu0 0
    %5082 = vperm.xlu0 %5081, %v4904
    %v5083 = vpop.permute.xlu0 %5082
    %5086 = vset.pattern.permute.xlu0 0
    %5087 = vperm.xlu0 %5086, %v4905
    %v5088 = vpop.permute.xlu0 %5087
    %5091 = vset.pattern.permute.xlu0 0
    %5092 = vperm.xlu0 %5091, %v4906
    %v5093 = vpop.permute.xlu0 %5092
    %5096 = vset.pattern.permute.xlu0 0
    %5097 = vperm.xlu0 %5096, %v4907
    %v5098 = vpop.permute.xlu0 %5097
    %5101 = vset.pattern.permute.xlu0 0
    %5102 = vperm.xlu0 %5101, %v4908
    %v5103 = vpop.permute.xlu0 %5102
    %5106 = vset.pattern.permute.xlu0 0
    %5107 = vperm.xlu0 %5106, %v4909
    %v5108 = vpop.permute.xlu0 %5107
    %5111 = vset.pattern.permute.xlu0 0
    %5112 = vperm.xlu0 %5111, %v4910
    %v5113 = vpop.permute.xlu0 %5112
    %5116 = vset.pattern.permute.xlu0 0
    %5117 = vperm.xlu0 %5116, %v4911
    %v5118 = vpop.permute.xlu0 %5117
    %5121 = vset.pattern.permute.xlu0 0
    %5122 = vperm.xlu0 %5121, %v4912
    %v5123 = vpop.permute.xlu0 %5122
    %5126 = vset.pattern.permute.xlu0 0
    %5127 = vperm.xlu0 %5126, %v4913
    %v5128 = vpop.permute.xlu0 %5127
    %5131 = vset.pattern.permute.xlu0 0
    %5132 = vperm.xlu0 %5131, %v4914
    %v5133 = vpop.permute.xlu0 %5132
    %5136 = vset.pattern.permute.xlu0 0
    %5137 = vperm.xlu0 %5136, %v4915
    %v5138 = vpop.permute.xlu0 %5137
    %5141 = vset.pattern.permute.xlu0 0
    %5142 = vperm.xlu0 %5141, %v4916
    %v5143 = vpop.permute.xlu0 %5142
    %5146 = vset.pattern.permute.xlu0 0
    %5147 = vperm.xlu0 %5146, %v4917
    %v5148 = vpop.permute.xlu0 %5147
    %5151 = vset.pattern.permute.xlu0 0
    %5152 = vperm.xlu0 %5151, %v4918
    %v5153 = vpop.permute.xlu0 %5152
    %5156 = vset.pattern.permute.xlu0 0
    %5157 = vperm.xlu0 %5156, %v4919
    %v5158 = vpop.permute.xlu0 %5157
    %5161 = vset.pattern.permute.xlu0 0
    %5162 = vperm.xlu0 %5161, %v4920
    %v5163 = vpop.permute.xlu0 %5162
    %5166 = vset.pattern.permute.xlu0 0
    %5167 = vperm.xlu0 %5166, %v4921
    %v5168 = vpop.permute.xlu0 %5167
    %5171 = vset.pattern.permute.xlu0 0
    %5172 = vperm.xlu0 %5171, %v4922
    %v5173 = vpop.permute.xlu0 %5172
    %5176 = vset.pattern.permute.xlu0 0
    %5177 = vperm.xlu0 %5176, %v4923
    %v5178 = vpop.permute.xlu0 %5177
    %5181 = vset.pattern.permute.xlu0 0
    %5182 = vperm.xlu0 %5181, %v4924
    %v5183 = vpop.permute.xlu0 %5182
    %5186 = vset.pattern.permute.xlu0 0
    %5187 = vperm.xlu0 %5186, %v4925
    %v5188 = vpop.permute.xlu0 %5187
    %5191 = vset.pattern.permute.xlu0 0
    %5192 = vperm.xlu0 %5191, %v4926
    %v5193 = vpop.permute.xlu0 %5192
    %5196 = vset.pattern.permute.xlu0 0
    %5197 = vperm.xlu0 %5196, %v4927
    %v5198 = vpop.permute.xlu0 %5197
    %5201 = vset.pattern.permute.xlu0 0
    %5202 = vperm.xlu0 %5201, %v4928
    %v5203 = vpop.permute.xlu0 %5202
    %5206 = vset.pattern.permute.xlu0 0
    %5207 = vperm.xlu0 %5206, %v4929
    %v5208 = vpop.permute.xlu0 %5207
    %5211 = vset.pattern.permute.xlu0 0
    %5212 = vperm.xlu0 %5211, %v4930
    %v5213 = vpop.permute.xlu0 %5212
    %5216 = vset.pattern.permute.xlu0 0
    %5217 = vperm.xlu0 %5216, %v4931
    %v5218 = vpop.permute.xlu0 %5217
    %5221 = vset.pattern.permute.xlu0 0
    %5222 = vperm.xlu0 %5221, %v4932
    %v5223 = vpop.permute.xlu0 %5222
    %5226 = vset.pattern.permute.xlu0 0
    %5227 = vperm.xlu0 %5226, %v4933
    %v5228 = vpop.permute.xlu0 %5227
    %5231 = vset.pattern.permute.xlu0 0
    %5232 = vperm.xlu0 %5231, %v4934
    %v5233 = vpop.permute.xlu0 %5232
    %5236 = vset.pattern.permute.xlu0 0
    %5237 = vperm.xlu0 %5236, %v4935
    %v5238 = vpop.permute.xlu0 %5237
    %5241 = vset.pattern.permute.xlu0 0
    %5242 = vperm.xlu0 %5241, %v4936
    %v5243 = vpop.permute.xlu0 %5242
    %5246 = vset.pattern.permute.xlu0 0
    %5247 = vperm.xlu0 %5246, %v4937
    %v5248 = vpop.permute.xlu0 %5247
    %5251 = vset.pattern.permute.xlu0 0
    %5252 = vperm.xlu0 %5251, %v4938
    %v5253 = vpop.permute.xlu0 %5252
    %5256 = vset.pattern.permute.xlu0 0
    %5257 = vperm.xlu0 %5256, %v4939
    %v5258 = vpop.permute.xlu0 %5257
    %v5260 = vsub.f32 %v4943, %v70
    %v5261 = vsub.f32 %v4948, %v70
    %v5262 = vsub.f32 %v4953, %v70
    %v5263 = vsub.f32 %v4958, %v70
    %v5264 = vsub.f32 %v4963, %v70
    %v5265 = vsub.f32 %v4968, %v70
    %v5266 = vsub.f32 %v4973, %v70
    %v5267 = vsub.f32 %v4978, %v70
    %v5268 = vsub.f32 %v4983, %v70
    %v5269 = vsub.f32 %v4988, %v70
    %v5270 = vsub.f32 %v4993, %v70
    %v5271 = vsub.f32 %v4998, %v70
    %v5272 = vsub.f32 %v5003, %v70
    %v5273 = vsub.f32 %v5008, %v70
    %v5274 = vsub.f32 %v5013, %v70
    %v5275 = vsub.f32 %v5018, %v70
    %v5276 = vsub.f32 %v5023, %v70
    %v5277 = vsub.f32 %v5028, %v70
    %v5278 = vsub.f32 %v5033, %v70
    %v5279 = vsub.f32 %v5038, %v70
    %v5280 = vsub.f32 %v5043, %v70
    %v5281 = vsub.f32 %v5048, %v70
    %v5282 = vsub.f32 %v5053, %v70
    %v5283 = vsub.f32 %v5058, %v70
    %v5284 = vsub.f32 %v5063, %v70
    %v5285 = vsub.f32 %v5068, %v70
    %v5286 = vsub.f32 %v5073, %v70
    %v5287 = vsub.f32 %v5078, %v70
    %v5288 = vsub.f32 %v5083, %v70
    %v5289 = vsub.f32 %v5088, %v70
    %v5290 = vsub.f32 %v5093, %v70
    %v5291 = vsub.f32 %v5098, %v70
    %v5292 = vsub.f32 %v5103, %v70
    %v5293 = vsub.f32 %v5108, %v70
    %v5294 = vsub.f32 %v5113, %v70
    %v5295 = vsub.f32 %v5118, %v70
    %v5296 = vsub.f32 %v5123, %v70
    %v5297 = vsub.f32 %v5128, %v70
    %v5298 = vsub.f32 %v5133, %v70
    %v5299 = vsub.f32 %v5138, %v70
    %v5300 = vsub.f32 %v5143, %v70
    %v5301 = vsub.f32 %v5148, %v70
    %v5302 = vsub.f32 %v5153, %v70
    %v5303 = vsub.f32 %v5158, %v70
    %v5304 = vsub.f32 %v5163, %v70
    %v5305 = vsub.f32 %v5168, %v70
    %v5306 = vsub.f32 %v5173, %v70
    %v5307 = vsub.f32 %v5178, %v70
    %v5308 = vsub.f32 %v5183, %v70
    %v5309 = vsub.f32 %v5188, %v70
    %v5310 = vsub.f32 %v5193, %v70
    %v5311 = vsub.f32 %v5198, %v70
    %v5312 = vsub.f32 %v5203, %v70
    %v5313 = vsub.f32 %v5208, %v70
    %v5314 = vsub.f32 %v5213, %v70
    %v5315 = vsub.f32 %v5218, %v70
    %v5316 = vsub.f32 %v5223, %v70
    %v5317 = vsub.f32 %v5228, %v70
    %v5318 = vsub.f32 %v5233, %v70
    %v5319 = vsub.f32 %v5238, %v70
    %v5320 = vsub.f32 %v5243, %v70
    %v5321 = vsub.f32 %v5248, %v70
    %v5322 = vsub.f32 %v5253, %v70
    %v5323 = vsub.f32 %v5258, %v70
    %v5324 = vmul.f32 %v5260, %v5260
    %v5325 = vmul.f32 %v5261, %v5261
    %v5326 = vmul.f32 %v5262, %v5262
    %v5327 = vmul.f32 %v5263, %v5263
    %v5328 = vmul.f32 %v5264, %v5264
    %v5329 = vmul.f32 %v5265, %v5265
    %v5330 = vmul.f32 %v5266, %v5266
    %v5331 = vmul.f32 %v5267, %v5267
    %v5332 = vmul.f32 %v5268, %v5268
    %v5333 = vmul.f32 %v5269, %v5269
    %v5334 = vmul.f32 %v5270, %v5270
    %v5335 = vmul.f32 %v5271, %v5271
    %v5336 = vmul.f32 %v5272, %v5272
    %v5337 = vmul.f32 %v5273, %v5273
    %v5338 = vmul.f32 %v5274, %v5274
    %v5339 = vmul.f32 %v5275, %v5275
    %v5340 = vmul.f32 %v5276, %v5276
    %v5341 = vmul.f32 %v5277, %v5277
    %v5342 = vmul.f32 %v5278, %v5278
    %v5343 = vmul.f32 %v5279, %v5279
    %v5344 = vmul.f32 %v5280, %v5280
    %v5345 = vmul.f32 %v5281, %v5281
    %v5346 = vmul.f32 %v5282, %v5282
    %v5347 = vmul.f32 %v5283, %v5283
    %v5348 = vmul.f32 %v5284, %v5284
    %v5349 = vmul.f32 %v5285, %v5285
    %v5350 = vmul.f32 %v5286, %v5286
    %v5351 = vmul.f32 %v5287, %v5287
    %v5352 = vmul.f32 %v5288, %v5288
    %v5353 = vmul.f32 %v5289, %v5289
    %v5354 = vmul.f32 %v5290, %v5290
    %v5355 = vmul.f32 %v5291, %v5291
    %v5356 = vmul.f32 %v5292, %v5292
    %v5357 = vmul.f32 %v5293, %v5293
    %v5358 = vmul.f32 %v5294, %v5294
    %v5359 = vmul.f32 %v5295, %v5295
    %v5360 = vmul.f32 %v5296, %v5296
    %v5361 = vmul.f32 %v5297, %v5297
    %v5362 = vmul.f32 %v5298, %v5298
    %v5363 = vmul.f32 %v5299, %v5299
    %v5364 = vmul.f32 %v5300, %v5300
    %v5365 = vmul.f32 %v5301, %v5301
    %v5366 = vmul.f32 %v5302, %v5302
    %v5367 = vmul.f32 %v5303, %v5303
    %v5368 = vmul.f32 %v5304, %v5304
    %v5369 = vmul.f32 %v5305, %v5305
    %v5370 = vmul.f32 %v5306, %v5306
    %v5371 = vmul.f32 %v5307, %v5307
    %v5372 = vmul.f32 %v5308, %v5308
    %v5373 = vmul.f32 %v5309, %v5309
    %v5374 = vmul.f32 %v5310, %v5310
    %v5375 = vmul.f32 %v5311, %v5311
    %v5376 = vmul.f32 %v5312, %v5312
    %v5377 = vmul.f32 %v5313, %v5313
    %v5378 = vmul.f32 %v5314, %v5314
    %v5379 = vmul.f32 %v5315, %v5315
    %v5380 = vmul.f32 %v5316, %v5316
    %v5381 = vmul.f32 %v5317, %v5317
    %v5382 = vmul.f32 %v5318, %v5318
    %v5383 = vmul.f32 %v5319, %v5319
    %v5384 = vmul.f32 %v5320, %v5320
    %v5385 = vmul.f32 %v5321, %v5321
    %v5386 = vmul.f32 %v5322, %v5322
    %v5387 = vmul.f32 %v5323, %v5323
    %v5388 = vsub.f32 0.0, %v5324
    %v5389 = vsub.f32 0.0, %v5325
    %v5390 = vsub.f32 0.0, %v5326
    %v5391 = vsub.f32 0.0, %v5327
    %v5392 = vsub.f32 0.0, %v5328
    %v5393 = vsub.f32 0.0, %v5329
    %v5394 = vsub.f32 0.0, %v5330
    %v5395 = vsub.f32 0.0, %v5331
    %v5396 = vsub.f32 0.0, %v5332
    %v5397 = vsub.f32 0.0, %v5333
    %v5398 = vsub.f32 0.0, %v5334
    %v5399 = vsub.f32 0.0, %v5335
    %v5400 = vsub.f32 0.0, %v5336
    %v5401 = vsub.f32 0.0, %v5337
    %v5402 = vsub.f32 0.0, %v5338
    %v5403 = vsub.f32 0.0, %v5339
    %v5404 = vsub.f32 0.0, %v5340
    %v5405 = vsub.f32 0.0, %v5341
    %v5406 = vsub.f32 0.0, %v5342
    %v5407 = vsub.f32 0.0, %v5343
    %v5408 = vsub.f32 0.0, %v5344
    %v5409 = vsub.f32 0.0, %v5345
    %v5410 = vsub.f32 0.0, %v5346
    %v5411 = vsub.f32 0.0, %v5347
    %v5412 = vsub.f32 0.0, %v5348
    %v5413 = vsub.f32 0.0, %v5349
    %v5414 = vsub.f32 0.0, %v5350
    %v5415 = vsub.f32 0.0, %v5351
    %v5416 = vsub.f32 0.0, %v5352
    %v5417 = vsub.f32 0.0, %v5353
    %v5418 = vsub.f32 0.0, %v5354
    %v5419 = vsub.f32 0.0, %v5355
    %v5420 = vsub.f32 0.0, %v5356
    %v5421 = vsub.f32 0.0, %v5357
    %v5422 = vsub.f32 0.0, %v5358
    %v5423 = vsub.f32 0.0, %v5359
    %v5424 = vsub.f32 0.0, %v5360
    %v5425 = vsub.f32 0.0, %v5361
    %v5426 = vsub.f32 0.0, %v5362
    %v5427 = vsub.f32 0.0, %v5363
    %v5428 = vsub.f32 0.0, %v5364
    %v5429 = vsub.f32 0.0, %v5365
    %v5430 = vsub.f32 0.0, %v5366
    %v5431 = vsub.f32 0.0, %v5367
    %v5432 = vsub.f32 0.0, %v5368
    %v5433 = vsub.f32 0.0, %v5369
    %v5434 = vsub.f32 0.0, %v5370
    %v5435 = vsub.f32 0.0, %v5371
    %v5436 = vsub.f32 0.0, %v5372
    %v5437 = vsub.f32 0.0, %v5373
    %v5438 = vsub.f32 0.0, %v5374
    %v5439 = vsub.f32 0.0, %v5375
    %v5440 = vsub.f32 0.0, %v5376
    %v5441 = vsub.f32 0.0, %v5377
    %v5442 = vsub.f32 0.0, %v5378
    %v5443 = vsub.f32 0.0, %v5379
    %v5444 = vsub.f32 0.0, %v5380
    %v5445 = vsub.f32 0.0, %v5381
    %v5446 = vsub.f32 0.0, %v5382
    %v5447 = vsub.f32 0.0, %v5383
    %v5448 = vsub.f32 0.0, %v5384
    %v5449 = vsub.f32 0.0, %v5385
    %v5450 = vsub.f32 0.0, %v5386
    %v5451 = vsub.f32 0.0, %v5387
    %v5452 = vpack.c.bf16 %v5389, %v5388
    %v5453 = vpack.c.bf16 %v5391, %v5390
    %v5454 = vpack.c.bf16 %v5393, %v5392
    %v5455 = vpack.c.bf16 %v5395, %v5394
    %v5456 = vpack.c.bf16 %v5397, %v5396
    %v5457 = vpack.c.bf16 %v5399, %v5398
    %v5458 = vpack.c.bf16 %v5401, %v5400
    %v5459 = vpack.c.bf16 %v5403, %v5402
    %v5460 = vpack.c.bf16 %v5405, %v5404
    %v5461 = vpack.c.bf16 %v5407, %v5406
    %v5462 = vpack.c.bf16 %v5409, %v5408
    %v5463 = vpack.c.bf16 %v5411, %v5410
    %v5464 = vpack.c.bf16 %v5413, %v5412
    %v5465 = vpack.c.bf16 %v5415, %v5414
    %v5466 = vpack.c.bf16 %v5417, %v5416
    %v5467 = vpack.c.bf16 %v5419, %v5418
    %v5468 = vpack.c.bf16 %v5421, %v5420
    %v5469 = vpack.c.bf16 %v5423, %v5422
    %v5470 = vpack.c.bf16 %v5425, %v5424
    %v5471 = vpack.c.bf16 %v5427, %v5426
    %v5472 = vpack.c.bf16 %v5429, %v5428
    %v5473 = vpack.c.bf16 %v5431, %v5430
    %v5474 = vpack.c.bf16 %v5433, %v5432
    %v5475 = vpack.c.bf16 %v5435, %v5434
    %v5476 = vpack.c.bf16 %v5437, %v5436
    %v5477 = vpack.c.bf16 %v5439, %v5438
    %v5478 = vpack.c.bf16 %v5441, %v5440
    %v5479 = vpack.c.bf16 %v5443, %v5442
    %v5480 = vpack.c.bf16 %v5445, %v5444
    %v5481 = vpack.c.bf16 %v5447, %v5446
    %v5482 = vpack.c.bf16 %v5449, %v5448
    %v5483 = vpack.c.bf16 %v5451, %v5450
    %v5485 = vmul.bf16 %v5452, 1069105081
    %v5486 = vpow.bf16.pop %v5485
    %v5488 = vmul.bf16 %v5453, 1069105081
    %v5489 = vpow.bf16.pop %v5488
    %v5491 = vmul.bf16 %v5454, 1069105081
    %v5492 = vpow.bf16.pop %v5491
    %v5494 = vmul.bf16 %v5455, 1069105081
    %v5495 = vpow.bf16.pop %v5494
    %v5497 = vmul.bf16 %v5456, 1069105081
    %v5498 = vpow.bf16.pop %v5497
    %v5500 = vmul.bf16 %v5457, 1069105081
    %v5501 = vpow.bf16.pop %v5500
    %v5503 = vmul.bf16 %v5458, 1069105081
    %v5504 = vpow.bf16.pop %v5503
    %v5506 = vmul.bf16 %v5459, 1069105081
    %v5507 = vpow.bf16.pop %v5506
    %v5509 = vmul.bf16 %v5460, 1069105081
    %v5510 = vpow.bf16.pop %v5509
    %v5512 = vmul.bf16 %v5461, 1069105081
    %v5513 = vpow.bf16.pop %v5512
    %v5515 = vmul.bf16 %v5462, 1069105081
    %v5516 = vpow.bf16.pop %v5515
    %v5518 = vmul.bf16 %v5463, 1069105081
    %v5519 = vpow.bf16.pop %v5518
    %v5521 = vmul.bf16 %v5464, 1069105081
    %v5522 = vpow.bf16.pop %v5521
    %v5524 = vmul.bf16 %v5465, 1069105081
    %v5525 = vpow.bf16.pop %v5524
    %v5527 = vmul.bf16 %v5466, 1069105081
    %v5528 = vpow.bf16.pop %v5527
    %v5530 = vmul.bf16 %v5467, 1069105081
    %v5531 = vpow.bf16.pop %v5530
    %v5533 = vmul.bf16 %v5468, 1069105081
    %v5534 = vpow.bf16.pop %v5533
    %v5536 = vmul.bf16 %v5469, 1069105081
    %v5537 = vpow.bf16.pop %v5536
    %v5539 = vmul.bf16 %v5470, 1069105081
    %v5540 = vpow.bf16.pop %v5539
    %v5542 = vmul.bf16 %v5471, 1069105081
    %v5543 = vpow.bf16.pop %v5542
    %v5545 = vmul.bf16 %v5472, 1069105081
    %v5546 = vpow.bf16.pop %v5545
    %v5548 = vmul.bf16 %v5473, 1069105081
    %v5549 = vpow.bf16.pop %v5548
    %v5551 = vmul.bf16 %v5474, 1069105081
    %v5552 = vpow.bf16.pop %v5551
    %v5554 = vmul.bf16 %v5475, 1069105081
    %v5555 = vpow.bf16.pop %v5554
    %v5557 = vmul.bf16 %v5476, 1069105081
    %v5558 = vpow.bf16.pop %v5557
    %v5560 = vmul.bf16 %v5477, 1069105081
    %v5561 = vpow.bf16.pop %v5560
    %v5563 = vmul.bf16 %v5478, 1069105081
    %v5564 = vpow.bf16.pop %v5563
    %v5566 = vmul.bf16 %v5479, 1069105081
    %v5567 = vpow.bf16.pop %v5566
    %v5569 = vmul.bf16 %v5480, 1069105081
    %v5570 = vpow.bf16.pop %v5569
    %v5572 = vmul.bf16 %v5481, 1069105081
    %v5573 = vpow.bf16.pop %v5572
    %v5575 = vmul.bf16 %v5482, 1069105081
    %v5576 = vpow.bf16.pop %v5575
    %v5578 = vmul.bf16 %v5483, 1069105081
    %v5579 = vpow.bf16.pop %v5578
    %v5580 = vld [vmem:[%s48 + $0x60] sm:$0xff]
    %v5581 = vld [vmem:[%s48 + $0x68] sm:$0xff]
    %v5584 = vunpack.c.l.b16 %v5580
    %v5585 = vunpack.c.h.b16 %v5580
    %v5586 = vunpack.c.l.b16 %v5581
    %v5587 = vunpack.c.h.b16 %v5581
    %v5588 = vpack.c.b16 %v5584, %v5584
    %v5589 = vpack.c.b16 %v5585, %v5585
    %v5590 = vpack.c.b16 %v5586, %v5586
    %v5591 = vpack.c.b16 %v5587, %v5587
    %5596 = vmatprep.subr.bf16.mxu0 0
    %5597 = vmatpush1.bf16.msra.mxu0 %v5486
    %5598 = vmatprep.subr.bf16.mxu0 0
    %5599 = vmatpush1.bf16.msra.mxu0 %v5489
    %5600 = vmatprep.subr.bf16.mxu0 0
    %5601 = vmatpush1.bf16.msra.mxu0 %v5492
    %5602 = vmatprep.subr.bf16.mxu0 0
    %5603 = vmatpush1.bf16.msra.mxu0 %v5495
    %5604 = vmatprep.subr.bf16.mxu0 0
    %5605 = vmatpush1.bf16.msra.mxu0 %v5498
    %5606 = vmatprep.subr.bf16.mxu0 0
    %5607 = vmatpush1.bf16.msra.mxu0 %v5501
    %5608 = vmatprep.subr.bf16.mxu0 0
    %5609 = vmatpush1.bf16.msra.mxu0 %v5504
    %5610 = vmatprep.subr.bf16.mxu0 0
    %5611 = vmatpush1.bf16.msra.mxu0 %v5507
    %5612 = vmatprep.subr.bf16.mxu0 0
    %5613 = vmatpush1.bf16.msra.mxu0 %v5510
    %5614 = vmatprep.subr.bf16.mxu0 0
    %5615 = vmatpush1.bf16.msra.mxu0 %v5513
    %5616 = vmatprep.subr.bf16.mxu0 0
    %5617 = vmatpush1.bf16.msra.mxu0 %v5516
    %5618 = vmatprep.subr.bf16.mxu0 0
    %5619 = vmatpush1.bf16.msra.mxu0 %v5519
    %5620 = vmatprep.subr.bf16.mxu0 0
    %5621 = vmatpush1.bf16.msra.mxu0 %v5522
    %5622 = vmatprep.subr.bf16.mxu0 0
    %5623 = vmatpush1.bf16.msra.mxu0 %v5525
    %5624 = vmatprep.subr.bf16.mxu0 0
    %5625 = vmatpush1.bf16.msra.mxu0 %v5528
    %5626 = vmatprep.subr.bf16.mxu0 0
    %5627 = vmatpush1.bf16.msra.mxu0 %v5531
    %5628 = vmatprep.mubr.bf16.mxu0 %v5589
    %5629 = vmatmul.mubr.bf16.gmra.mrb[0].mxu0 %v5588
    %v5630 = vpop.f32.mrb[0].mxu0
    %v5631 = vadd.f32 0.0, %v5630
    %v5632 = vpop.f32.mrb[0].mxu0
    %v5633 = vpop.f32.mrb[0].mxu0
    %v5634 = vpop.f32.mrb[0].mxu0
    %5635 = vdwg.mxu0
    %5636 = vmatprep.subr.bf16.mxu0 0
    %5637 = vmatpush1.bf16.msra.mxu0 %v5534
    %5638 = vmatprep.subr.bf16.mxu0 0
    %5639 = vmatpush1.bf16.msra.mxu0 %v5537
    %5640 = vmatprep.subr.bf16.mxu0 0
    %5641 = vmatpush1.bf16.msra.mxu0 %v5540
    %5642 = vmatprep.subr.bf16.mxu0 0
    %5643 = vmatpush1.bf16.msra.mxu0 %v5543
    %5644 = vmatprep.subr.bf16.mxu0 0
    %5645 = vmatpush1.bf16.msra.mxu0 %v5546
    %5646 = vmatprep.subr.bf16.mxu0 0
    %5647 = vmatpush1.bf16.msra.mxu0 %v5549
    %5648 = vmatprep.subr.bf16.mxu0 0
    %5649 = vmatpush1.bf16.msra.mxu0 %v5552
    %5650 = vmatprep.subr.bf16.mxu0 0
    %5651 = vmatpush1.bf16.msra.mxu0 %v5555
    %5652 = vmatprep.subr.bf16.mxu0 0
    %5653 = vmatpush1.bf16.msra.mxu0 %v5558
    %5654 = vmatprep.subr.bf16.mxu0 0
    %5655 = vmatpush1.bf16.msra.mxu0 %v5561
    %5656 = vmatprep.subr.bf16.mxu0 0
    %5657 = vmatpush1.bf16.msra.mxu0 %v5564
    %5658 = vmatprep.subr.bf16.mxu0 0
    %5659 = vmatpush1.bf16.msra.mxu0 %v5567
    %5660 = vmatprep.subr.bf16.mxu0 0
    %5661 = vmatpush1.bf16.msra.mxu0 %v5570
    %5662 = vmatprep.subr.bf16.mxu0 0
    %5663 = vmatpush1.bf16.msra.mxu0 %v5573
    %5664 = vmatprep.subr.bf16.mxu0 0
    %5665 = vmatpush1.bf16.msra.mxu0 %v5576
    %5666 = vmatprep.subr.bf16.mxu0 0
    %5667 = vmatpush1.bf16.msra.mxu0 %v5579
    %5668 = vmatprep.mubr.bf16.mxu0 %v5591
    %5669 = vmatmul.mubr.bf16.gmra.mrb[0].mxu0 %v5590
    %v5670 = vpop.f32.mrb[0].mxu0
    %v5671 = vadd.f32 %v5631, %v5670
    %v5672 = vpop.f32.mrb[0].mxu0
    %v5673 = vpop.f32.mrb[0].mxu0
    %v5674 = vpop.f32.mrb[0].mxu0
    %5675 = vdwg.mxu0
    %v5676 = vadd.f32 %v4875, %v5671
    %v5677 = vld [vmem:[%s56 + $0xe00] sm:$0xff]
    %v5678 = vld [vmem:[%s56 + $0xe08] sm:$0xff]
    %v5679 = vld [vmem:[%s56 + $0xe10] sm:$0xff]
    %v5680 = vld [vmem:[%s56 + $0xe18] sm:$0xff]
    %v5681 = vld [vmem:[%s56 + $0xe20] sm:$0xff]
    %v5682 = vld [vmem:[%s56 + $0xe28] sm:$0xff]
    %v5683 = vld [vmem:[%s56 + $0xe30] sm:$0xff]
    %v5684 = vld [vmem:[%s56 + $0xe38] sm:$0xff]
    %v5685 = vld [vmem:[%s56 + $0xe40] sm:$0xff]
    %v5686 = vld [vmem:[%s56 + $0xe48] sm:$0xff]
    %v5687 = vld [vmem:[%s56 + $0xe50] sm:$0xff]
    %v5688 = vld [vmem:[%s56 + $0xe58] sm:$0xff]
    %v5689 = vld [vmem:[%s56 + $0xe60] sm:$0xff]
    %v5690 = vld [vmem:[%s56 + $0xe68] sm:$0xff]
    %v5691 = vld [vmem:[%s56 + $0xe70] sm:$0xff]
    %v5692 = vld [vmem:[%s56 + $0xe78] sm:$0xff]
    %v5693 = vld [vmem:[%s56 + $0xe80] sm:$0xff]
    %v5694 = vld [vmem:[%s56 + $0xe88] sm:$0xff]
    %v5695 = vld [vmem:[%s56 + $0xe90] sm:$0xff]
    %v5696 = vld [vmem:[%s56 + $0xe98] sm:$0xff]
    %v5697 = vld [vmem:[%s56 + $0xea0] sm:$0xff]
    %v5698 = vld [vmem:[%s56 + $0xea8] sm:$0xff]
    %v5699 = vld [vmem:[%s56 + $0xeb0] sm:$0xff]
    %v5700 = vld [vmem:[%s56 + $0xeb8] sm:$0xff]
    %v5701 = vld [vmem:[%s56 + $0xec0] sm:$0xff]
    %v5702 = vld [vmem:[%s56 + $0xec8] sm:$0xff]
    %v5703 = vld [vmem:[%s56 + $0xed0] sm:$0xff]
    %v5704 = vld [vmem:[%s56 + $0xed8] sm:$0xff]
    %v5705 = vld [vmem:[%s56 + $0xee0] sm:$0xff]
    %v5706 = vld [vmem:[%s56 + $0xee8] sm:$0xff]
    %v5707 = vld [vmem:[%s56 + $0xef0] sm:$0xff]
    %v5708 = vld [vmem:[%s56 + $0xef8] sm:$0xff]
    %v5709 = vld [vmem:[%s56 + $0xf00] sm:$0xff]
    %v5710 = vld [vmem:[%s56 + $0xf08] sm:$0xff]
    %v5711 = vld [vmem:[%s56 + $0xf10] sm:$0xff]
    %v5712 = vld [vmem:[%s56 + $0xf18] sm:$0xff]
    %v5713 = vld [vmem:[%s56 + $0xf20] sm:$0xff]
    %v5714 = vld [vmem:[%s56 + $0xf28] sm:$0xff]
    %v5715 = vld [vmem:[%s56 + $0xf30] sm:$0xff]
    %v5716 = vld [vmem:[%s56 + $0xf38] sm:$0xff]
    %v5717 = vld [vmem:[%s56 + $0xf40] sm:$0xff]
    %v5718 = vld [vmem:[%s56 + $0xf48] sm:$0xff]
    %v5719 = vld [vmem:[%s56 + $0xf50] sm:$0xff]
    %v5720 = vld [vmem:[%s56 + $0xf58] sm:$0xff]
    %v5721 = vld [vmem:[%s56 + $0xf60] sm:$0xff]
    %v5722 = vld [vmem:[%s56 + $0xf68] sm:$0xff]
    %v5723 = vld [vmem:[%s56 + $0xf70] sm:$0xff]
    %v5724 = vld [vmem:[%s56 + $0xf78] sm:$0xff]
    %v5725 = vld [vmem:[%s56 + $0xf80] sm:$0xff]
    %v5726 = vld [vmem:[%s56 + $0xf88] sm:$0xff]
    %v5727 = vld [vmem:[%s56 + $0xf90] sm:$0xff]
    %v5728 = vld [vmem:[%s56 + $0xf98] sm:$0xff]
    %v5729 = vld [vmem:[%s56 + $0xfa0] sm:$0xff]
    %v5730 = vld [vmem:[%s56 + $0xfa8] sm:$0xff]
    %v5731 = vld [vmem:[%s56 + $0xfb0] sm:$0xff]
    %v5732 = vld [vmem:[%s56 + $0xfb8] sm:$0xff]
    %v5733 = vld [vmem:[%s56 + $0xfc0] sm:$0xff]
    %v5734 = vld [vmem:[%s56 + $0xfc8] sm:$0xff]
    %v5735 = vld [vmem:[%s56 + $0xfd0] sm:$0xff]
    %v5736 = vld [vmem:[%s56 + $0xfd8] sm:$0xff]
    %v5737 = vld [vmem:[%s56 + $0xfe0] sm:$0xff]
    %v5738 = vld [vmem:[%s56 + $0xfe8] sm:$0xff]
    %v5739 = vld [vmem:[%s56 + $0xff0] sm:$0xff]
    %v5740 = vld [vmem:[%s56 + $0xff8] sm:$0xff]
    %5742 = vset.pattern.permute.xlu0 0
    %5743 = vperm.xlu0 %5742, %v5677
    %v5744 = vpop.permute.xlu0 %5743
    %5747 = vset.pattern.permute.xlu0 0
    %5748 = vperm.xlu0 %5747, %v5678
    %v5749 = vpop.permute.xlu0 %5748
    %5752 = vset.pattern.permute.xlu0 0
    %5753 = vperm.xlu0 %5752, %v5679
    %v5754 = vpop.permute.xlu0 %5753
    %5757 = vset.pattern.permute.xlu0 0
    %5758 = vperm.xlu0 %5757, %v5680
    %v5759 = vpop.permute.xlu0 %5758
    %5762 = vset.pattern.permute.xlu0 0
    %5763 = vperm.xlu0 %5762, %v5681
    %v5764 = vpop.permute.xlu0 %5763
    %5767 = vset.pattern.permute.xlu0 0
    %5768 = vperm.xlu0 %5767, %v5682
    %v5769 = vpop.permute.xlu0 %5768
    %5772 = vset.pattern.permute.xlu0 0
    %5773 = vperm.xlu0 %5772, %v5683
    %v5774 = vpop.permute.xlu0 %5773
    %5777 = vset.pattern.permute.xlu0 0
    %5778 = vperm.xlu0 %5777, %v5684
    %v5779 = vpop.permute.xlu0 %5778
    %5782 = vset.pattern.permute.xlu0 0
    %5783 = vperm.xlu0 %5782, %v5685
    %v5784 = vpop.permute.xlu0 %5783
    %5787 = vset.pattern.permute.xlu0 0
    %5788 = vperm.xlu0 %5787, %v5686
    %v5789 = vpop.permute.xlu0 %5788
    %5792 = vset.pattern.permute.xlu0 0
    %5793 = vperm.xlu0 %5792, %v5687
    %v5794 = vpop.permute.xlu0 %5793
    %5797 = vset.pattern.permute.xlu0 0
    %5798 = vperm.xlu0 %5797, %v5688
    %v5799 = vpop.permute.xlu0 %5798
    %5802 = vset.pattern.permute.xlu0 0
    %5803 = vperm.xlu0 %5802, %v5689
    %v5804 = vpop.permute.xlu0 %5803
    %5807 = vset.pattern.permute.xlu0 0
    %5808 = vperm.xlu0 %5807, %v5690
    %v5809 = vpop.permute.xlu0 %5808
    %5812 = vset.pattern.permute.xlu0 0
    %5813 = vperm.xlu0 %5812, %v5691
    %v5814 = vpop.permute.xlu0 %5813
    %5817 = vset.pattern.permute.xlu0 0
    %5818 = vperm.xlu0 %5817, %v5692
    %v5819 = vpop.permute.xlu0 %5818
    %5822 = vset.pattern.permute.xlu0 0
    %5823 = vperm.xlu0 %5822, %v5693
    %v5824 = vpop.permute.xlu0 %5823
    %5827 = vset.pattern.permute.xlu0 0
    %5828 = vperm.xlu0 %5827, %v5694
    %v5829 = vpop.permute.xlu0 %5828
    %5832 = vset.pattern.permute.xlu0 0
    %5833 = vperm.xlu0 %5832, %v5695
    %v5834 = vpop.permute.xlu0 %5833
    %5837 = vset.pattern.permute.xlu0 0
    %5838 = vperm.xlu0 %5837, %v5696
    %v5839 = vpop.permute.xlu0 %5838
    %5842 = vset.pattern.permute.xlu0 0
    %5843 = vperm.xlu0 %5842, %v5697
    %v5844 = vpop.permute.xlu0 %5843
    %5847 = vset.pattern.permute.xlu0 0
    %5848 = vperm.xlu0 %5847, %v5698
    %v5849 = vpop.permute.xlu0 %5848
    %5852 = vset.pattern.permute.xlu0 0
    %5853 = vperm.xlu0 %5852, %v5699
    %v5854 = vpop.permute.xlu0 %5853
    %5857 = vset.pattern.permute.xlu0 0
    %5858 = vperm.xlu0 %5857, %v5700
    %v5859 = vpop.permute.xlu0 %5858
    %5862 = vset.pattern.permute.xlu0 0
    %5863 = vperm.xlu0 %5862, %v5701
    %v5864 = vpop.permute.xlu0 %5863
    %5867 = vset.pattern.permute.xlu0 0
    %5868 = vperm.xlu0 %5867, %v5702
    %v5869 = vpop.permute.xlu0 %5868
    %5872 = vset.pattern.permute.xlu0 0
    %5873 = vperm.xlu0 %5872, %v5703
    %v5874 = vpop.permute.xlu0 %5873
    %5877 = vset.pattern.permute.xlu0 0
    %5878 = vperm.xlu0 %5877, %v5704
    %v5879 = vpop.permute.xlu0 %5878
    %5882 = vset.pattern.permute.xlu0 0
    %5883 = vperm.xlu0 %5882, %v5705
    %v5884 = vpop.permute.xlu0 %5883
    %5887 = vset.pattern.permute.xlu0 0
    %5888 = vperm.xlu0 %5887, %v5706
    %v5889 = vpop.permute.xlu0 %5888
    %5892 = vset.pattern.permute.xlu0 0
    %5893 = vperm.xlu0 %5892, %v5707
    %v5894 = vpop.permute.xlu0 %5893
    %5897 = vset.pattern.permute.xlu0 0
    %5898 = vperm.xlu0 %5897, %v5708
    %v5899 = vpop.permute.xlu0 %5898
    %5902 = vset.pattern.permute.xlu0 0
    %5903 = vperm.xlu0 %5902, %v5709
    %v5904 = vpop.permute.xlu0 %5903
    %5907 = vset.pattern.permute.xlu0 0
    %5908 = vperm.xlu0 %5907, %v5710
    %v5909 = vpop.permute.xlu0 %5908
    %5912 = vset.pattern.permute.xlu0 0
    %5913 = vperm.xlu0 %5912, %v5711
    %v5914 = vpop.permute.xlu0 %5913
    %5917 = vset.pattern.permute.xlu0 0
    %5918 = vperm.xlu0 %5917, %v5712
    %v5919 = vpop.permute.xlu0 %5918
    %5922 = vset.pattern.permute.xlu0 0
    %5923 = vperm.xlu0 %5922, %v5713
    %v5924 = vpop.permute.xlu0 %5923
    %5927 = vset.pattern.permute.xlu0 0
    %5928 = vperm.xlu0 %5927, %v5714
    %v5929 = vpop.permute.xlu0 %5928
    %5932 = vset.pattern.permute.xlu0 0
    %5933 = vperm.xlu0 %5932, %v5715
    %v5934 = vpop.permute.xlu0 %5933
    %5937 = vset.pattern.permute.xlu0 0
    %5938 = vperm.xlu0 %5937, %v5716
    %v5939 = vpop.permute.xlu0 %5938
    %5942 = vset.pattern.permute.xlu0 0
    %5943 = vperm.xlu0 %5942, %v5717
    %v5944 = vpop.permute.xlu0 %5943
    %5947 = vset.pattern.permute.xlu0 0
    %5948 = vperm.xlu0 %5947, %v5718
    %v5949 = vpop.permute.xlu0 %5948
    %5952 = vset.pattern.permute.xlu0 0
    %5953 = vperm.xlu0 %5952, %v5719
    %v5954 = vpop.permute.xlu0 %5953
    %5957 = vset.pattern.permute.xlu0 0
    %5958 = vperm.xlu0 %5957, %v5720
    %v5959 = vpop.permute.xlu0 %5958
    %5962 = vset.pattern.permute.xlu0 0
    %5963 = vperm.xlu0 %5962, %v5721
    %v5964 = vpop.permute.xlu0 %5963
    %5967 = vset.pattern.permute.xlu0 0
    %5968 = vperm.xlu0 %5967, %v5722
    %v5969 = vpop.permute.xlu0 %5968
    %5972 = vset.pattern.permute.xlu0 0
    %5973 = vperm.xlu0 %5972, %v5723
    %v5974 = vpop.permute.xlu0 %5973
    %5977 = vset.pattern.permute.xlu0 0
    %5978 = vperm.xlu0 %5977, %v5724
    %v5979 = vpop.permute.xlu0 %5978
    %5982 = vset.pattern.permute.xlu0 0
    %5983 = vperm.xlu0 %5982, %v5725
    %v5984 = vpop.permute.xlu0 %5983
    %5987 = vset.pattern.permute.xlu0 0
    %5988 = vperm.xlu0 %5987, %v5726
    %v5989 = vpop.permute.xlu0 %5988
    %5992 = vset.pattern.permute.xlu0 0
    %5993 = vperm.xlu0 %5992, %v5727
    %v5994 = vpop.permute.xlu0 %5993
    %5997 = vset.pattern.permute.xlu0 0
    %5998 = vperm.xlu0 %5997, %v5728
    %v5999 = vpop.permute.xlu0 %5998
    %6002 = vset.pattern.permute.xlu0 0
    %6003 = vperm.xlu0 %6002, %v5729
    %v6004 = vpop.permute.xlu0 %6003
    %6007 = vset.pattern.permute.xlu0 0
    %6008 = vperm.xlu0 %6007, %v5730
    %v6009 = vpop.permute.xlu0 %6008
    %6012 = vset.pattern.permute.xlu0 0
    %6013 = vperm.xlu0 %6012, %v5731
    %v6014 = vpop.permute.xlu0 %6013
    %6017 = vset.pattern.permute.xlu0 0
    %6018 = vperm.xlu0 %6017, %v5732
    %v6019 = vpop.permute.xlu0 %6018
    %6022 = vset.pattern.permute.xlu0 0
    %6023 = vperm.xlu0 %6022, %v5733
    %v6024 = vpop.permute.xlu0 %6023
    %6027 = vset.pattern.permute.xlu0 0
    %6028 = vperm.xlu0 %6027, %v5734
    %v6029 = vpop.permute.xlu0 %6028
    %6032 = vset.pattern.permute.xlu0 0
    %6033 = vperm.xlu0 %6032, %v5735
    %v6034 = vpop.permute.xlu0 %6033
    %6037 = vset.pattern.permute.xlu0 0
    %6038 = vperm.xlu0 %6037, %v5736
    %v6039 = vpop.permute.xlu0 %6038
    %6042 = vset.pattern.permute.xlu0 0
    %6043 = vperm.xlu0 %6042, %v5737
    %v6044 = vpop.permute.xlu0 %6043
    %6047 = vset.pattern.permute.xlu0 0
    %6048 = vperm.xlu0 %6047, %v5738
    %v6049 = vpop.permute.xlu0 %6048
    %6052 = vset.pattern.permute.xlu0 0
    %6053 = vperm.xlu0 %6052, %v5739
    %v6054 = vpop.permute.xlu0 %6053
    %6057 = vset.pattern.permute.xlu0 0
    %6058 = vperm.xlu0 %6057, %v5740
    %v6059 = vpop.permute.xlu0 %6058
    %v6061 = vsub.f32 %v5744, %v70
    %v6062 = vsub.f32 %v5749, %v70
    %v6063 = vsub.f32 %v5754, %v70
    %v6064 = vsub.f32 %v5759, %v70
    %v6065 = vsub.f32 %v5764, %v70
    %v6066 = vsub.f32 %v5769, %v70
    %v6067 = vsub.f32 %v5774, %v70
    %v6068 = vsub.f32 %v5779, %v70
    %v6069 = vsub.f32 %v5784, %v70
    %v6070 = vsub.f32 %v5789, %v70
    %v6071 = vsub.f32 %v5794, %v70
    %v6072 = vsub.f32 %v5799, %v70
    %v6073 = vsub.f32 %v5804, %v70
    %v6074 = vsub.f32 %v5809, %v70
    %v6075 = vsub.f32 %v5814, %v70
    %v6076 = vsub.f32 %v5819, %v70
    %v6077 = vsub.f32 %v5824, %v70
    %v6078 = vsub.f32 %v5829, %v70
    %v6079 = vsub.f32 %v5834, %v70
    %v6080 = vsub.f32 %v5839, %v70
    %v6081 = vsub.f32 %v5844, %v70
    %v6082 = vsub.f32 %v5849, %v70
    %v6083 = vsub.f32 %v5854, %v70
    %v6084 = vsub.f32 %v5859, %v70
    %v6085 = vsub.f32 %v5864, %v70
    %v6086 = vsub.f32 %v5869, %v70
    %v6087 = vsub.f32 %v5874, %v70
    %v6088 = vsub.f32 %v5879, %v70
    %v6089 = vsub.f32 %v5884, %v70
    %v6090 = vsub.f32 %v5889, %v70
    %v6091 = vsub.f32 %v5894, %v70
    %v6092 = vsub.f32 %v5899, %v70
    %v6093 = vsub.f32 %v5904, %v70
    %v6094 = vsub.f32 %v5909, %v70
    %v6095 = vsub.f32 %v5914, %v70
    %v6096 = vsub.f32 %v5919, %v70
    %v6097 = vsub.f32 %v5924, %v70
    %v6098 = vsub.f32 %v5929, %v70
    %v6099 = vsub.f32 %v5934, %v70
    %v6100 = vsub.f32 %v5939, %v70
    %v6101 = vsub.f32 %v5944, %v70
    %v6102 = vsub.f32 %v5949, %v70
    %v6103 = vsub.f32 %v5954, %v70
    %v6104 = vsub.f32 %v5959, %v70
    %v6105 = vsub.f32 %v5964, %v70
    %v6106 = vsub.f32 %v5969, %v70
    %v6107 = vsub.f32 %v5974, %v70
    %v6108 = vsub.f32 %v5979, %v70
    %v6109 = vsub.f32 %v5984, %v70
    %v6110 = vsub.f32 %v5989, %v70
    %v6111 = vsub.f32 %v5994, %v70
    %v6112 = vsub.f32 %v5999, %v70
    %v6113 = vsub.f32 %v6004, %v70
    %v6114 = vsub.f32 %v6009, %v70
    %v6115 = vsub.f32 %v6014, %v70
    %v6116 = vsub.f32 %v6019, %v70
    %v6117 = vsub.f32 %v6024, %v70
    %v6118 = vsub.f32 %v6029, %v70
    %v6119 = vsub.f32 %v6034, %v70
    %v6120 = vsub.f32 %v6039, %v70
    %v6121 = vsub.f32 %v6044, %v70
    %v6122 = vsub.f32 %v6049, %v70
    %v6123 = vsub.f32 %v6054, %v70
    %v6124 = vsub.f32 %v6059, %v70
    %v6125 = vmul.f32 %v6061, %v6061
    %v6126 = vmul.f32 %v6062, %v6062
    %v6127 = vmul.f32 %v6063, %v6063
    %v6128 = vmul.f32 %v6064, %v6064
    %v6129 = vmul.f32 %v6065, %v6065
    %v6130 = vmul.f32 %v6066, %v6066
    %v6131 = vmul.f32 %v6067, %v6067
    %v6132 = vmul.f32 %v6068, %v6068
    %v6133 = vmul.f32 %v6069, %v6069
    %v6134 = vmul.f32 %v6070, %v6070
    %v6135 = vmul.f32 %v6071, %v6071
    %v6136 = vmul.f32 %v6072, %v6072
    %v6137 = vmul.f32 %v6073, %v6073
    %v6138 = vmul.f32 %v6074, %v6074
    %v6139 = vmul.f32 %v6075, %v6075
    %v6140 = vmul.f32 %v6076, %v6076
    %v6141 = vmul.f32 %v6077, %v6077
    %v6142 = vmul.f32 %v6078, %v6078
    %v6143 = vmul.f32 %v6079, %v6079
    %v6144 = vmul.f32 %v6080, %v6080
    %v6145 = vmul.f32 %v6081, %v6081
    %v6146 = vmul.f32 %v6082, %v6082
    %v6147 = vmul.f32 %v6083, %v6083
    %v6148 = vmul.f32 %v6084, %v6084
    %v6149 = vmul.f32 %v6085, %v6085
    %v6150 = vmul.f32 %v6086, %v6086
    %v6151 = vmul.f32 %v6087, %v6087
    %v6152 = vmul.f32 %v6088, %v6088
    %v6153 = vmul.f32 %v6089, %v6089
    %v6154 = vmul.f32 %v6090, %v6090
    %v6155 = vmul.f32 %v6091, %v6091
    %v6156 = vmul.f32 %v6092, %v6092
    %v6157 = vmul.f32 %v6093, %v6093
    %v6158 = vmul.f32 %v6094, %v6094
    %v6159 = vmul.f32 %v6095, %v6095
    %v6160 = vmul.f32 %v6096, %v6096
    %v6161 = vmul.f32 %v6097, %v6097
    %v6162 = vmul.f32 %v6098, %v6098
    %v6163 = vmul.f32 %v6099, %v6099
    %v6164 = vmul.f32 %v6100, %v6100
    %v6165 = vmul.f32 %v6101, %v6101
    %v6166 = vmul.f32 %v6102, %v6102
    %v6167 = vmul.f32 %v6103, %v6103
    %v6168 = vmul.f32 %v6104, %v6104
    %v6169 = vmul.f32 %v6105, %v6105
    %v6170 = vmul.f32 %v6106, %v6106
    %v6171 = vmul.f32 %v6107, %v6107
    %v6172 = vmul.f32 %v6108, %v6108
    %v6173 = vmul.f32 %v6109, %v6109
    %v6174 = vmul.f32 %v6110, %v6110
    %v6175 = vmul.f32 %v6111, %v6111
    %v6176 = vmul.f32 %v6112, %v6112
    %v6177 = vmul.f32 %v6113, %v6113
    %v6178 = vmul.f32 %v6114, %v6114
    %v6179 = vmul.f32 %v6115, %v6115
    %v6180 = vmul.f32 %v6116, %v6116
    %v6181 = vmul.f32 %v6117, %v6117
    %v6182 = vmul.f32 %v6118, %v6118
    %v6183 = vmul.f32 %v6119, %v6119
    %v6184 = vmul.f32 %v6120, %v6120
    %v6185 = vmul.f32 %v6121, %v6121
    %v6186 = vmul.f32 %v6122, %v6122
    %v6187 = vmul.f32 %v6123, %v6123
    %v6188 = vmul.f32 %v6124, %v6124
    %v6189 = vsub.f32 0.0, %v6125
    %v6190 = vsub.f32 0.0, %v6126
    %v6191 = vsub.f32 0.0, %v6127
    %v6192 = vsub.f32 0.0, %v6128
    %v6193 = vsub.f32 0.0, %v6129
    %v6194 = vsub.f32 0.0, %v6130
    %v6195 = vsub.f32 0.0, %v6131
    %v6196 = vsub.f32 0.0, %v6132
    %v6197 = vsub.f32 0.0, %v6133
    %v6198 = vsub.f32 0.0, %v6134
    %v6199 = vsub.f32 0.0, %v6135
    %v6200 = vsub.f32 0.0, %v6136
    %v6201 = vsub.f32 0.0, %v6137
    %v6202 = vsub.f32 0.0, %v6138
    %v6203 = vsub.f32 0.0, %v6139
    %v6204 = vsub.f32 0.0, %v6140
    %v6205 = vsub.f32 0.0, %v6141
    %v6206 = vsub.f32 0.0, %v6142
    %v6207 = vsub.f32 0.0, %v6143
    %v6208 = vsub.f32 0.0, %v6144
    %v6209 = vsub.f32 0.0, %v6145
    %v6210 = vsub.f32 0.0, %v6146
    %v6211 = vsub.f32 0.0, %v6147
    %v6212 = vsub.f32 0.0, %v6148
    %v6213 = vsub.f32 0.0, %v6149
    %v6214 = vsub.f32 0.0, %v6150
    %v6215 = vsub.f32 0.0, %v6151
    %v6216 = vsub.f32 0.0, %v6152
    %v6217 = vsub.f32 0.0, %v6153
    %v6218 = vsub.f32 0.0, %v6154
    %v6219 = vsub.f32 0.0, %v6155
    %v6220 = vsub.f32 0.0, %v6156
    %v6221 = vsub.f32 0.0, %v6157
    %v6222 = vsub.f32 0.0, %v6158
    %v6223 = vsub.f32 0.0, %v6159
    %v6224 = vsub.f32 0.0, %v6160
    %v6225 = vsub.f32 0.0, %v6161
    %v6226 = vsub.f32 0.0, %v6162
    %v6227 = vsub.f32 0.0, %v6163
    %v6228 = vsub.f32 0.0, %v6164
    %v6229 = vsub.f32 0.0, %v6165
    %v6230 = vsub.f32 0.0, %v6166
    %v6231 = vsub.f32 0.0, %v6167
    %v6232 = vsub.f32 0.0, %v6168
    %v6233 = vsub.f32 0.0, %v6169
    %v6234 = vsub.f32 0.0, %v6170
    %v6235 = vsub.f32 0.0, %v6171
    %v6236 = vsub.f32 0.0, %v6172
    %v6237 = vsub.f32 0.0, %v6173
    %v6238 = vsub.f32 0.0, %v6174
    %v6239 = vsub.f32 0.0, %v6175
    %v6240 = vsub.f32 0.0, %v6176
    %v6241 = vsub.f32 0.0, %v6177
    %v6242 = vsub.f32 0.0, %v6178
    %v6243 = vsub.f32 0.0, %v6179
    %v6244 = vsub.f32 0.0, %v6180
    %v6245 = vsub.f32 0.0, %v6181
    %v6246 = vsub.f32 0.0, %v6182
    %v6247 = vsub.f32 0.0, %v6183
    %v6248 = vsub.f32 0.0, %v6184
    %v6249 = vsub.f32 0.0, %v6185
    %v6250 = vsub.f32 0.0, %v6186
    %v6251 = vsub.f32 0.0, %v6187
    %v6252 = vsub.f32 0.0, %v6188
    %v6253 = vpack.c.bf16 %v6190, %v6189
    %v6254 = vpack.c.bf16 %v6192, %v6191
    %v6255 = vpack.c.bf16 %v6194, %v6193
    %v6256 = vpack.c.bf16 %v6196, %v6195
    %v6257 = vpack.c.bf16 %v6198, %v6197
    %v6258 = vpack.c.bf16 %v6200, %v6199
    %v6259 = vpack.c.bf16 %v6202, %v6201
    %v6260 = vpack.c.bf16 %v6204, %v6203
    %v6261 = vpack.c.bf16 %v6206, %v6205
    %v6262 = vpack.c.bf16 %v6208, %v6207
    %v6263 = vpack.c.bf16 %v6210, %v6209
    %v6264 = vpack.c.bf16 %v6212, %v6211
    %v6265 = vpack.c.bf16 %v6214, %v6213
    %v6266 = vpack.c.bf16 %v6216, %v6215
    %v6267 = vpack.c.bf16 %v6218, %v6217
    %v6268 = vpack.c.bf16 %v6220, %v6219
    %v6269 = vpack.c.bf16 %v6222, %v6221
    %v6270 = vpack.c.bf16 %v6224, %v6223
    %v6271 = vpack.c.bf16 %v6226, %v6225
    %v6272 = vpack.c.bf16 %v6228, %v6227
    %v6273 = vpack.c.bf16 %v6230, %v6229
    %v6274 = vpack.c.bf16 %v6232, %v6231
    %v6275 = vpack.c.bf16 %v6234, %v6233
    %v6276 = vpack.c.bf16 %v6236, %v6235
    %v6277 = vpack.c.bf16 %v6238, %v6237
    %v6278 = vpack.c.bf16 %v6240, %v6239
    %v6279 = vpack.c.bf16 %v6242, %v6241
    %v6280 = vpack.c.bf16 %v6244, %v6243
    %v6281 = vpack.c.bf16 %v6246, %v6245
    %v6282 = vpack.c.bf16 %v6248, %v6247
    %v6283 = vpack.c.bf16 %v6250, %v6249
    %v6284 = vpack.c.bf16 %v6252, %v6251
    %v6286 = vmul.bf16 %v6253, 1069105081
    %v6287 = vpow.bf16.pop %v6286
    %v6289 = vmul.bf16 %v6254, 1069105081
    %v6290 = vpow.bf16.pop %v6289
    %v6292 = vmul.bf16 %v6255, 1069105081
    %v6293 = vpow.bf16.pop %v6292
    %v6295 = vmul.bf16 %v6256, 1069105081
    %v6296 = vpow.bf16.pop %v6295
    %v6298 = vmul.bf16 %v6257, 1069105081
    %v6299 = vpow.bf16.pop %v6298
    %v6301 = vmul.bf16 %v6258, 1069105081
    %v6302 = vpow.bf16.pop %v6301
    %v6304 = vmul.bf16 %v6259, 1069105081
    %v6305 = vpow.bf16.pop %v6304
    %v6307 = vmul.bf16 %v6260, 1069105081
    %v6308 = vpow.bf16.pop %v6307
    %v6310 = vmul.bf16 %v6261, 1069105081
    %v6311 = vpow.bf16.pop %v6310
    %v6313 = vmul.bf16 %v6262, 1069105081
    %v6314 = vpow.bf16.pop %v6313
    %v6316 = vmul.bf16 %v6263, 1069105081
    %v6317 = vpow.bf16.pop %v6316
    %v6319 = vmul.bf16 %v6264, 1069105081
    %v6320 = vpow.bf16.pop %v6319
    %v6322 = vmul.bf16 %v6265, 1069105081
    %v6323 = vpow.bf16.pop %v6322
    %v6325 = vmul.bf16 %v6266, 1069105081
    %v6326 = vpow.bf16.pop %v6325
    %v6328 = vmul.bf16 %v6267, 1069105081
    %v6329 = vpow.bf16.pop %v6328
    %v6331 = vmul.bf16 %v6268, 1069105081
    %v6332 = vpow.bf16.pop %v6331
    %v6334 = vmul.bf16 %v6269, 1069105081
    %v6335 = vpow.bf16.pop %v6334
    %v6337 = vmul.bf16 %v6270, 1069105081
    %v6338 = vpow.bf16.pop %v6337
    %v6340 = vmul.bf16 %v6271, 1069105081
    %v6341 = vpow.bf16.pop %v6340
    %v6343 = vmul.bf16 %v6272, 1069105081
    %v6344 = vpow.bf16.pop %v6343
    %v6346 = vmul.bf16 %v6273, 1069105081
    %v6347 = vpow.bf16.pop %v6346
    %v6349 = vmul.bf16 %v6274, 1069105081
    %v6350 = vpow.bf16.pop %v6349
    %v6352 = vmul.bf16 %v6275, 1069105081
    %v6353 = vpow.bf16.pop %v6352
    %v6355 = vmul.bf16 %v6276, 1069105081
    %v6356 = vpow.bf16.pop %v6355
    %v6358 = vmul.bf16 %v6277, 1069105081
    %v6359 = vpow.bf16.pop %v6358
    %v6361 = vmul.bf16 %v6278, 1069105081
    %v6362 = vpow.bf16.pop %v6361
    %v6364 = vmul.bf16 %v6279, 1069105081
    %v6365 = vpow.bf16.pop %v6364
    %v6367 = vmul.bf16 %v6280, 1069105081
    %v6368 = vpow.bf16.pop %v6367
    %v6370 = vmul.bf16 %v6281, 1069105081
    %v6371 = vpow.bf16.pop %v6370
    %v6373 = vmul.bf16 %v6282, 1069105081
    %v6374 = vpow.bf16.pop %v6373
    %v6376 = vmul.bf16 %v6283, 1069105081
    %v6377 = vpow.bf16.pop %v6376
    %v6379 = vmul.bf16 %v6284, 1069105081
    %v6380 = vpow.bf16.pop %v6379
    %v6381 = vld [vmem:[%s48 + $0x70] sm:$0xff]
    %v6382 = vld [vmem:[%s48 + $0x78] sm:$0xff]
    %v6385 = vunpack.c.l.b16 %v6381
    %v6386 = vunpack.c.h.b16 %v6381
    %v6387 = vunpack.c.l.b16 %v6382
    %v6388 = vunpack.c.h.b16 %v6382
    %v6389 = vpack.c.b16 %v6385, %v6385
    %v6390 = vpack.c.b16 %v6386, %v6386
    %v6391 = vpack.c.b16 %v6387, %v6387
    %v6392 = vpack.c.b16 %v6388, %v6388
    %6397 = vmatprep.subr.bf16.mxu0 0
    %6398 = vmatpush1.bf16.msra.mxu0 %v6287
    %6399 = vmatprep.subr.bf16.mxu0 0
    %6400 = vmatpush1.bf16.msra.mxu0 %v6290
    %6401 = vmatprep.subr.bf16.mxu0 0
    %6402 = vmatpush1.bf16.msra.mxu0 %v6293
    %6403 = vmatprep.subr.bf16.mxu0 0
    %6404 = vmatpush1.bf16.msra.mxu0 %v6296
    %6405 = vmatprep.subr.bf16.mxu0 0
    %6406 = vmatpush1.bf16.msra.mxu0 %v6299
    %6407 = vmatprep.subr.bf16.mxu0 0
    %6408 = vmatpush1.bf16.msra.mxu0 %v6302
    %6409 = vmatprep.subr.bf16.mxu0 0
    %6410 = vmatpush1.bf16.msra.mxu0 %v6305
    %6411 = vmatprep.subr.bf16.mxu0 0
    %6412 = vmatpush1.bf16.msra.mxu0 %v6308
    %6413 = vmatprep.subr.bf16.mxu0 0
    %6414 = vmatpush1.bf16.msra.mxu0 %v6311
    %6415 = vmatprep.subr.bf16.mxu0 0
    %6416 = vmatpush1.bf16.msra.mxu0 %v6314
    %6417 = vmatprep.subr.bf16.mxu0 0
    %6418 = vmatpush1.bf16.msra.mxu0 %v6317
    %6419 = vmatprep.subr.bf16.mxu0 0
    %6420 = vmatpush1.bf16.msra.mxu0 %v6320
    %6421 = vmatprep.subr.bf16.mxu0 0
    %6422 = vmatpush1.bf16.msra.mxu0 %v6323
    %6423 = vmatprep.subr.bf16.mxu0 0
    %6424 = vmatpush1.bf16.msra.mxu0 %v6326
    %6425 = vmatprep.subr.bf16.mxu0 0
    %6426 = vmatpush1.bf16.msra.mxu0 %v6329
    %6427 = vmatprep.subr.bf16.mxu0 0
    %6428 = vmatpush1.bf16.msra.mxu0 %v6332
    %6429 = vmatprep.mubr.bf16.mxu0 %v6390
    %6430 = vmatmul.mubr.bf16.gmra.mrb[0].mxu0 %v6389
    %v6431 = vpop.f32.mrb[0].mxu0
    %v6432 = vadd.f32 0.0, %v6431
    %v6433 = vpop.f32.mrb[0].mxu0
    %v6434 = vpop.f32.mrb[0].mxu0
    %v6435 = vpop.f32.mrb[0].mxu0
    %6436 = vdwg.mxu0
    %6437 = vmatprep.subr.bf16.mxu0 0
    %6438 = vmatpush1.bf16.msra.mxu0 %v6335
    %6439 = vmatprep.subr.bf16.mxu0 0
    %6440 = vmatpush1.bf16.msra.mxu0 %v6338
    %6441 = vmatprep.subr.bf16.mxu0 0
    %6442 = vmatpush1.bf16.msra.mxu0 %v6341
    %6443 = vmatprep.subr.bf16.mxu0 0
    %6444 = vmatpush1.bf16.msra.mxu0 %v6344
    %6445 = vmatprep.subr.bf16.mxu0 0
    %6446 = vmatpush1.bf16.msra.mxu0 %v6347
    %6447 = vmatprep.subr.bf16.mxu0 0
    %6448 = vmatpush1.bf16.msra.mxu0 %v6350
    %6449 = vmatprep.subr.bf16.mxu0 0
    %6450 = vmatpush1.bf16.msra.mxu0 %v6353
    %6451 = vmatprep.subr.bf16.mxu0 0
    %6452 = vmatpush1.bf16.msra.mxu0 %v6356
    %6453 = vmatprep.subr.bf16.mxu0 0
    %6454 = vmatpush1.bf16.msra.mxu0 %v6359
    %6455 = vmatprep.subr.bf16.mxu0 0
    %6456 = vmatpush1.bf16.msra.mxu0 %v6362
    %6457 = vmatprep.subr.bf16.mxu0 0
    %6458 = vmatpush1.bf16.msra.mxu0 %v6365
    %6459 = vmatprep.subr.bf16.mxu0 0
    %6460 = vmatpush1.bf16.msra.mxu0 %v6368
    %6461 = vmatprep.subr.bf16.mxu0 0
    %6462 = vmatpush1.bf16.msra.mxu0 %v6371
    %6463 = vmatprep.subr.bf16.mxu0 0
    %6464 = vmatpush1.bf16.msra.mxu0 %v6374
    %6465 = vmatprep.subr.bf16.mxu0 0
    %6466 = vmatpush1.bf16.msra.mxu0 %v6377
    %6467 = vmatprep.subr.bf16.mxu0 0
    %6468 = vmatpush1.bf16.msra.mxu0 %v6380
    %6469 = vmatprep.mubr.bf16.mxu0 %v6392
    %6470 = vmatmul.mubr.bf16.gmra.mrb[0].mxu0 %v6391
    %v6471 = vpop.f32.mrb[0].mxu0
    %v6472 = vadd.f32 %v6432, %v6471
    %v6473 = vpop.f32.mrb[0].mxu0
    %v6474 = vpop.f32.mrb[0].mxu0
    %v6475 = vpop.f32.mrb[0].mxu0
    %6476 = vdwg.mxu0
    %v6477 = vadd.f32 %v5676, %v6472
    %v6478 = vld [vmem:[#allocation2] sm:$0xff]
    %v6479 = vadd.f32 %v6478, %v6477
    %6480 = vst [vmem:[#allocation2] sm:$0xff] %v6479
    // Predicated region
    $region18: #{tpu_custom_call.1} parent=1 // pred_check
      _
    $region19: #{tpu_custom_call.1} parent=1 // pred_check_branch
      %6482 = sbr.rel (0) target = $region21
    $region20: #{tpu_custom_call.1} parent=1 // pred_region
      %s6484 = ssub.s32 128, 128
      %6485 = vsyncadd [#allocation3], %s6484
      %s6487 = sshll.u32 [#allocation2], 4
      %s6488 = int_to_ptr.vmem [resolvable:$true] %s6487
      %6490 = dma.vmem_to_hbm [thread:$0]  %s6488, 128, %s3, [#allocation3]
    $region21: #{tpu_custom_call.1} parent=1 // pred_fallthru
      _
    // Predicated region
    $region22: #{tpu_custom_call.1} parent=1 // pred_check
      _
    $region23: #{tpu_custom_call.1} parent=1 // pred_check_branch
      %6492 = sbr.rel (0) target = $region25
    $region24: #{tpu_custom_call.1} parent=1 // pred_region
      %6493 = dma.done [#allocation3], 128
    $region25: #{tpu_custom_call.1} parent=1 // pred_fallthru
      _
    %6494 = vsyncpa [#allocation3], 1

</llo_original>
